<compile_context>
chip_gen: v7x
topology: tpu7x:2x2x1
jax: 0.10.0
libtpu: 0.0.40
codegen_flags: <defaults>
</compile_context>

<pallas_src>
import functools
import math

import jax
import jax.numpy as jnp
from jax.experimental import pallas as pl
from jax.experimental.pallas import tpu as pltpu

MM_DTYPE = jnp.bfloat16          # matmul-input / activation-stream storage dtype


# ------------------------------- small helpers ------------------------------

def _round_up(x, m):
    return ((x + m - 1) // m) * m


def _pick_tile(dim, pref, align):
    """Largest t <= pref that divides dim and is a multiple of `align`
    (or equal to dim itself, i.e. full extent)."""
    t = min(pref, dim)
    for cand in range(t, 0, -1):
        if dim % cand == 0 and (cand % align == 0 or cand == dim):
            return cand
    return dim


@functools.lru_cache(maxsize=None)
def _vmem_limit_bytes():
    # ~60% of per-core physical VMEM, capped; safe on v5e/v6e (128 MiB) and
    # v7x (64 MiB) while leaving headroom for double-buffering + internals.
    try:
        cap = int(pltpu.get_tpu_info().vmem_capacity_bytes)
    except Exception:
        cap = 64 * 1024 * 1024
    return int(min(max(cap * 3 // 5, 32 * 1024 * 1024), 100 * 1024 * 1024))


def _cparams(*sem):
    return pltpu.CompilerParams(dimension_semantics=sem,
                                vmem_limit_bytes=_vmem_limit_bytes())


def _gelu(x):
    # exact (erf) GELU in f32, matching torch nn.GELU / F.gelu defaults
    return 0.5 * x * (1.0 + jax.lax.erf(x * (1.0 / math.sqrt(2.0))))


# --------------------------- tiled matmul kernel -----------------------------
# y = act(x @ w + b) [+ residual]; bf16 MXU inputs, f32 accumulation in VMEM.

def _make_matmul_kernel(activation, has_residual):
    def kernel(*refs):
        if has_residual:
            x_ref, w_ref, b_ref, r_ref, o_ref, acc_ref = refs
        else:
            x_ref, w_ref, b_ref, o_ref, acc_ref = refs
            r_ref = None
        k = pl.program_id(2)

        @pl.when(k == 0)
        def _():
            acc_ref[...] = jnp.zeros_like(acc_ref)

        acc_ref[...] += jnp.dot(x_ref[...], w_ref[...],
                                preferred_element_type=jnp.float32)

        @pl.when(k == pl.num_programs(2) - 1)
        def _():
            y = acc_ref[...] + b_ref[...]            # bias in f32
            if activation == "gelu":
                y = _gelu(y)                         # f32 epilogue (v5e-safe)
            if has_residual:
                y = y + r_ref[...].astype(jnp.float32)
            o_ref[...] = y.astype(o_ref.dtype)

    return kernel


def pallas_matmul(x, w, b, *, activation=None, residual=None, out_dtype):
    M, K = x.shape
    N = w.shape[1]
    tm = _pick_tile(M, 512, 8)
    tn = _pick_tile(N, 512, 128)
    tk = _pick_tile(K, 640, 128)

    inputs = [x.astype(MM_DTYPE), w.astype(MM_DTYPE),
              b.reshape(1, N).astype(jnp.float32)]
    in_specs = [
        pl.BlockSpec((tm, tk), lambda i, j, k: (i, k)),
        pl.BlockSpec((tk, tn), lambda i, j, k: (k, j)),
        pl.BlockSpec((1, tn), lambda i, j, k: (0, j)),
    ]
    if residual is not None:
        inputs.append(residual.astype(MM_DTYPE))
        in_specs.append(pl.BlockSpec((tm, tn), lambda i, j, k: (i, j)))

    return pl.pallas_call(
        _make_matmul_kernel(activation, residual is not None),
        out_shape=jax.ShapeDtypeStruct((M, N), out_dtype),
        grid=(M // tm, N // tn, K // tk),
        in_specs=in_specs,
        out_specs=pl.BlockSpec((tm, tn), lambda i, j, k: (i, j)),
        scratch_shapes=[pltpu.VMEM((tm, tn), jnp.float32)],
        compiler_params=_cparams("parallel", "parallel", "arbitrary"),
    )(*inputs)


# --------------------- LayerNorm fused into a matmul -------------------------
# y = act(LN(x) @ w + b); LN is computed ONCE per row tile (at j==0) and reused
# across all N-tiles (either via a VMEM scratch or, when emit_xn=True, via the
# second output block which also hands LN(x) back to the caller).

def _make_ln_matmul_kernel(activation, eps):
    def kernel(x_ref, g_ref, bb_ref, w_ref, b_ref, *rest):
        o_ref, xn_ref = rest          # xn_ref is either an output or a scratch
        j = pl.program_id(1)

        @pl.when(j == 0)
        def _():
            x = x_ref[...].astype(jnp.float32)
            mu = jnp.mean(x, axis=-1, keepdims=True)
            xc = x - mu
            var = jnp.mean(xc * xc, axis=-1, keepdims=True)
            xn = xc * jax.lax.rsqrt(var + eps) * g_ref[...] + bb_ref[...]
            xn_ref[...] = xn.astype(xn_ref.dtype)

        y = jnp.dot(xn_ref[...], w_ref[...], preferred_element_type=jnp.float32)
        y = y + b_ref[...]
        if activation == "gelu":
            y = _gelu(y)
        o_ref[...] = y.astype(o_ref.dtype)

    return kernel


def pallas_ln_matmul(x, gamma, beta, w, b, *, activation=None, emit_xn=False,
                     out_dtype, eps=1e-5):
    M, K = x.shape
    N = w.shape[1]
    tm = _pick_tile(M, 512, 8)
    tn = _pick_tile(N, 512, 128)

    in_specs = [
        pl.BlockSpec((tm, K), lambda i, j: (i, 0)),
        pl.BlockSpec((1, K), lambda i, j: (0, 0)),
        pl.BlockSpec((1, K), lambda i, j: (0, 0)),
        pl.BlockSpec((K, tn), lambda i, j: (0, j)),
        pl.BlockSpec((1, tn), lambda i, j: (0, j)),
    ]
    args = (x.astype(MM_DTYPE),
            gamma.reshape(1, K).astype(jnp.float32),
            beta.reshape(1, K).astype(jnp.float32),
            w.astype(MM_DTYPE),
            b.reshape(1, N).astype(jnp.float32))
    kernel = _make_ln_matmul_kernel(activation, eps)
    common = dict(grid=(M // tm, N // tn), in_specs=in_specs,
                  compiler_params=_cparams("parallel", "arbitrary"))

    if emit_xn:
        return pl.pallas_call(
            kernel,
            out_shape=(jax.ShapeDtypeStruct((M, N), out_dtype),
                       jax.ShapeDtypeStruct((M, K), MM_DTYPE)),
            out_specs=(pl.BlockSpec((tm, tn), lambda i, j: (i, j)),
                       pl.BlockSpec((tm, K), lambda i, j: (i, 0))),
            **common)(*args)                     # (y, ln(x))
    return pl.pallas_call(
        kernel,
        out_shape=jax.ShapeDtypeStruct((M, N), out_dtype),
        out_specs=pl.BlockSpec((tm, tn), lambda i, j: (i, j)),
        scratch_shapes=[pltpu.VMEM((tm, K), MM_DTYPE)],
        **common)(*args)


# --------------------------- standalone LayerNorm ----------------------------
# Only used once, for the final encoder LayerNorm.

def _ln_kernel(x_ref, g_ref, b_ref, o_ref, *, eps):
    x = x_ref[...].astype(jnp.float32)
    mu = jnp.mean(x, axis=-1, keepdims=True)
    xc = x - mu
    var = jnp.mean(xc * xc, axis=-1, keepdims=True)
    o_ref[...] = (xc * jax.lax.rsqrt(var + eps) * g_ref[...]
                  + b_ref[...]).astype(o_ref.dtype)


def pallas_layernorm(x2d, gamma, beta, *, out_dtype, eps=1e-5):
    M, C = x2d.shape
    tm = _pick_tile(M, 512, 8)
    return pl.pallas_call(
        functools.partial(_ln_kernel, eps=eps),
        out_shape=jax.ShapeDtypeStruct((M, C), out_dtype),
        grid=(M // tm,),
        in_specs=[pl.BlockSpec((tm, C), lambda i: (i, 0)),
                  pl.BlockSpec((1, C), lambda i: (0, 0)),
                  pl.BlockSpec((1, C), lambda i: (0, 0))],
        out_specs=pl.BlockSpec((tm, C), lambda i: (i, 0)),
        compiler_params=_cparams("parallel"),
    )(x2d, gamma.reshape(1, C).astype(jnp.float32),
      beta.reshape(1, C).astype(jnp.float32))


# ------------------- Conv1d(k=3, pad=1, no bias) + GELU ----------------------
# 3 full matmuls per (batch, Cout-tile); the +1/+2 row shifts are applied to the
# f32 partial products (not to the bf16 MXU operand).  Positional embedding add
# (bf16 storage, f32 add) is fused into conv2's epilogue.
# TODO(synk): tile T with a 2-row halo (manual DMA) to shrink the per-program
# working set / shard across v7x's two TensorCores; full-T blocks kept here.

def _make_conv_kernel(t_out, add_pos):
    def kernel(*refs):
        if add_pos:
            x_ref, w_ref, pe_ref, o_ref = refs
        else:
            x_ref, w_ref, o_ref = refs
            pe_ref = None
        x = x_ref[0]                                   # (t_out + 2, Cin) bf16
        y0 = jnp.dot(x, w_ref[0], preferred_element_type=jnp.float32)
        y1 = jnp.dot(x, w_ref[1], preferred_element_type=jnp.float32)
        y2 = jnp.dot(x, w_ref[2], preferred_element_type=jnp.float32)
        # out[t] = y0[t] + y1[t+1] + y2[t+2]
        acc = y0[0:t_out, :] + y1[1:t_out + 1, :] + y2[2:t_out + 2, :]
        y = _gelu(acc)
        if add_pos:
            y = y + pe_ref[...].astype(jnp.float32)
        o_ref[0] = y.astype(o_ref.dtype)

    return kernel


def pallas_conv1d_gelu(x_btc, w3, pos_emb=None, *, out_dtype):
    """x_btc: (B, T, Cin) (T already padded to the stream length);
       w3: (3, Cin, Cout)  ->  (B, T, Cout) = gelu(conv1d) [+ pos]."""
    B, T, Cin = x_btc.shape
    Cout = w3.shape[2]
    tn = _pick_tile(Cout, 256, 128)

    xh = jnp.pad(x_btc.astype(MM_DTYPE), ((0, 0), (1, 1), (0, 0)))  # conv halo

    inputs = [xh, w3.astype(MM_DTYPE)]
    in_specs = [
        pl.BlockSpec((1, T + 2, Cin), lambda b, n: (b, 0, 0)),
        pl.BlockSpec((3, Cin, tn), lambda b, n: (0, 0, n)),
    ]
    add_pos = pos_emb is not None
    if add_pos:
        inputs.append(pos_emb.astype(MM_DTYPE))
        in_specs.append(pl.BlockSpec((T, tn), lambda b, n: (0, n)))

    return pl.pallas_call(
        _make_conv_kernel(T, add_pos),
        out_shape=jax.ShapeDtypeStruct((B, T, Cout), out_dtype),
        grid=(B, Cout // tn),
        in_specs=in_specs,
        out_specs=pl.BlockSpec((1, T, tn), lambda b, n: (b, 0, n)),
        compiler_params=_cparams("parallel", "parallel"),
    )(*inputs)


# --------------------------- flash attention kernel --------------------------
# Online softmax; padded KV columns are masked via an additive {0,-1e9} bias row
# (NaN-safe even if a tile were fully padded).  Scale is folded into W_q.
# TODO(synk): bf16 exp path for v6e/v7x (v5e has no bf16 EUP) not implemented.

def _make_flash_kernel(use_bias):
    def kernel(*refs):
        if use_bias:
            q_ref, k_ref, v_ref, bias_ref, o_ref, m_sc, l_sc, acc_sc = refs
        else:
            q_ref, k_ref, v_ref, o_ref, m_sc, l_sc, acc_sc = refs
            bias_ref = None
        ki = pl.program_id(2)

        @pl.when(ki == 0)
        def _():
            m_sc[...] = jnp.full_like(m_sc, -jnp.inf)
            l_sc[...] = jnp.zeros_like(l_sc)
            acc_sc[...] = jnp.zeros_like(acc_sc)

        q = q_ref[0]                                      # (tq, hs)  bf16
        k = k_ref[0]                                      # (tkv, hs) bf16
        s = jax.lax.dot_general(q, k, dimension_numbers=(((1,), (1,)), ((), ())),
                                preferred_element_type=jnp.float32)  # (tq, tkv)
        if use_bias:
            s = s + bias_ref[...]                         # (1, tkv) broadcast

        m_prev = m_sc[...]
        m_new = jnp.maximum(m_prev, jnp.max(s, axis=-1, keepdims=True))
        alpha = jnp.exp(m_prev - m_new)
        p = jnp.exp(s - m_new)
        l_sc[...] = alpha * l_sc[...] + jnp.sum(p, axis=-1, keepdims=True)
        acc_sc[...] = alpha * acc_sc[...] + jnp.dot(
            p.astype(v_ref.dtype), v_ref[0], preferred_element_type=jnp.float32)
        m_sc[...] = m_new

        @pl.when(ki == pl.num_programs(2) - 1)
        def _():
            inv = pl.reciprocal(l_sc[...], approx=True)
            o_ref[0] = (acc_sc[...] * inv).astype(o_ref.dtype)

    return kernel


def pallas_flash_attention(q, k, v, *, mask_bias=None, out_dtype):
    """q, k, v: (B*H, T_pad, hs); 1/sqrt(hs) already folded into q."""
    BH, T, hs = q.shape
    tq = _pick_tile(T, 256, 8)
    tkv = _pick_tile(T, 256, 128)
    use_bias = mask_bias is not None

    inputs = [q, k, v]
    in_specs = [
        pl.BlockSpec((1, tq, hs), lambda b, i, j: (b, i, 0)),
        pl.BlockSpec((1, tkv, hs), lambda b, i, j: (b, j, 0)),
        pl.BlockSpec((1, tkv, hs), lambda b, i, j: (b, j, 0)),
    ]
    if use_bias:
        inputs.append(mask_bias)
        in_specs.append(pl.BlockSpec((1, tkv), lambda b, i, j: (0, j)))

    return pl.pallas_call(
        _make_flash_kernel(use_bias),
        out_shape=jax.ShapeDtypeStruct((BH, T, hs), out_dtype),
        grid=(BH, T // tq, T // tkv),
        in_specs=in_specs,
        out_specs=pl.BlockSpec((1, tq, hs), lambda b, i, j: (b, i, 0)),
        scratch_shapes=[pltpu.VMEM((tq, 1), jnp.float32),
                        pltpu.VMEM((tq, 1), jnp.float32),
                        pltpu.VMEM((tq, hs), jnp.float32)],
        compiler_params=_cparams("parallel", "parallel", "arbitrary"),
    )(*inputs)


# ------------------------------ model pieces ---------------------------------

def sinusoids(length, channels, max_timescale=10000):
    assert channels % 2 == 0
    inc = math.log(max_timescale) / (channels // 2 - 1)
    inv = jnp.exp(-inc * jnp.arange(channels // 2, dtype=jnp.float32))
    t = jnp.arange(length, dtype=jnp.float32)[:, None] * inv[None, :]
    return jnp.concatenate([jnp.sin(t), jnp.cos(t)], axis=1)  # (length, channels)


def multi_head_attention(h2d, qkv2d, p, *, B, T_pad, n_head, mask_bias):
    """h2d = ln1(x) (residual base); qkv2d = h2d @ W_qkv + b_qkv (fused)."""
    M, C = h2d.shape
    hs = C // n_head
    # TODO(synk): read Q/K/V straight from the fused (B,T,3C) buffer via index_map
    # column offsets + pack 2 heads per program for a 128-lane PV/store path;
    # hs<128 blocks the straightforward BlockSpec expression, so one XLA
    # transpose each way remains here.
    qkv = jnp.transpose(qkv2d.reshape(B, T_pad, 3, n_head, hs), (2, 0, 3, 1, 4))
    q = qkv[0].reshape(B * n_head, T_pad, hs)
    k = qkv[1].reshape(B * n_head, T_pad, hs)
    v = qkv[2].reshape(B * n_head, T_pad, hs)

    y = pallas_flash_attention(q, k, v, mask_bias=mask_bias, out_dtype=MM_DTYPE)
    y = jnp.transpose(y.reshape(B, n_head, T_pad, hs), (0, 2, 1, 3)).reshape(M, C)

    # output projection with the residual (= ln1(x)) fused into the epilogue
    return pallas_matmul(y, p["wo"], p["bo"], residual=h2d, out_dtype=MM_DTYPE)


def attention_block(x2d, bp, *, B, T_pad, n_head, mask_bias):
    # Matches PyTorch: h = ln1(x); h = h + attn(h); h = h + mlp(ln3(h))
    qkv, h = pallas_ln_matmul(x2d, bp["ln1_g"], bp["ln1_b"],
                              bp["attn"]["w_qkv"], bp["attn"]["b_qkv"],
                              emit_xn=True, out_dtype=MM_DTYPE)
    h = multi_head_attention(h, qkv, bp["attn"], B=B, T_pad=T_pad,
                             n_head=n_head, mask_bias=mask_bias)
    m = pallas_ln_matmul(h, bp["ln3_g"], bp["ln3_b"],
                         bp["mlp"]["w1"], bp["mlp"]["b1"],
                         activation="gelu", out_dtype=MM_DTYPE)
    return pallas_matmul(m, bp["mlp"]["w2"], bp["mlp"]["b2"],
                         residual=h, out_dtype=MM_DTYPE)


def encoder_forward(x, params, n_head):
    # x: (B, n_mels, T) NCW like PyTorch Conv1d.
    B, n_mels, T = x.shape
    C = params["conv1_w"].shape[2]

    # Pad the time axis ONCE (conv padding + zero rows keep rows [0,T) exact;
    # padded KV columns are masked inside attention; slice once at the end).
    RT = 256 if T >= 256 else _round_up(T, 8)
    T_pad = _round_up(T, RT)

    x_btc = jnp.transpose(x, (0, 2, 1)).astype(MM_DTYPE)          # (B, T, n_mels)
    if T_pad != T:
        x_btc = jnp.pad(x_btc, ((0, 0), (0, T_pad - T), (0, 0)))

    pos = params["pos_emb"]
    if pos.shape[0] != T_pad:
        pos = jnp.pad(pos, ((0, T_pad - pos.shape[0]), (0, 0)))

    h = pallas_conv1d_gelu(x_btc, params["conv1_w"], out_dtype=MM_DTYPE)
    h = pallas_conv1d_gelu(h, params["conv2_w"], pos_emb=pos,
                           out_dtype=MM_DTYPE)                    # +pos fused

    mask_bias = None
    if T_pad != T:
        col = jax.lax.broadcasted_iota(jnp.int32, (1, T_pad), 1)
        mask_bias = jnp.where(col < T, 0.0, -1e9).astype(jnp.float32)

    h2d = h.reshape(B * T_pad, C)
    for bp in params["blocks"]:
        h2d = attention_block(h2d, bp, B=B, T_pad=T_pad, n_head=n_head,
                              mask_bias=mask_bias)

    y = pallas_layernorm(h2d, params["ln_g"], params["ln_b"],
                         out_dtype=jnp.float32).reshape(B, T_pad, C)
    return y[:, :T, :] if T_pad != T else y


# ------------------------------- param init ----------------------------------

def init_params(key, n_mels, n_ctx, n_layer, n_embd, n_head):
    hs = n_embd // n_head
    scale = 1.0 / math.sqrt(hs)

    def nrm(k, shape, s=0.02):
        return s * jax.random.normal(k, shape, jnp.float32)

    keys = jax.random.split(key, 2 + n_layer)
    params = {
        # conv weights stored as (3, Cin, Cout): w3[k, ci, co] == torch_w[co, ci, k]
        "conv1_w": nrm(keys[0], (3, n_mels, n_embd)).astype(MM_DTYPE),
        "conv2_w": nrm(keys[1], (3, n_embd, n_embd)).astype(MM_DTYPE),
        "pos_emb": sinusoids(n_ctx, n_embd).astype(MM_DTYPE),   # added in f32
        "ln_g": jnp.ones((n_embd,), jnp.float32),
        "ln_b": jnp.zeros((n_embd,), jnp.float32),
        "blocks": [],
    }
    for li in range(n_layer):
        ks = jax.random.split(keys[2 + li], 6)
        wq, wk, wv = (nrm(ks[i], (n_embd, n_embd)) for i in range(3))
        bq = bk = bv = jnp.zeros((n_embd,), jnp.float32)
        # fused QKV with the 1/sqrt(hs) scale folded into the Q slice (exact)
        w_qkv = jnp.concatenate([wq * scale, wk, wv], axis=1).astype(MM_DTYPE)
        b_qkv = jnp.concatenate([bq * scale, bk, bv], axis=0)
        block = {
            "ln1_g": jnp.ones((n_embd,), jnp.float32),
            "ln1_b": jnp.zeros((n_embd,), jnp.float32),
            "ln3_g": jnp.ones((n_embd,), jnp.float32),
            "ln3_b": jnp.zeros((n_embd,), jnp.float32),
            "attn": {
                "w_qkv": w_qkv, "b_qkv": b_qkv,
                "wo": nrm(ks[3], (n_embd, n_embd)).astype(MM_DTYPE),
                "bo": jnp.zeros((n_embd,), jnp.float32),
            },
            "mlp": {
                "w1": nrm(ks[4], (n_embd, 4 * n_embd)).astype(MM_DTYPE),
                "b1": jnp.zeros((4 * n_embd,), jnp.float32),
                "w2": nrm(ks[5], (4 * n_embd, n_embd)).astype(MM_DTYPE),
                "b2": jnp.zeros((n_embd,), jnp.float32),
            },
        }
        params["blocks"].append(block)
    return params


# ----------------------------------- main ------------------------------------

if __name__ == "__main__":
    B, n_mels, n_ctx, n_layer, n_embd, n_head = 2, 8, 16, 2, 32, 4

    key = jax.random.PRNGKey(0)
    pkey, xkey = jax.random.split(key)
    params = init_params(pkey, n_mels, n_ctx, n_layer, n_embd, n_head)
    x = jax.random.normal(xkey, (B, n_mels, n_ctx), jnp.float32)  # NCW like PyTorch

    fwd = jax.jit(functools.partial(encoder_forward, n_head=n_head))
    y = jax.block_until_ready(fwd(x, params))

    assert y.shape == (B, n_ctx, n_embd), y.shape
    assert bool(jnp.all(jnp.isfinite(y)))
    print("KERNEL_OK")
</pallas_src>

<mosaic_0001>
module attributes {stable_mosaic.version = 11 : i64} {
  func.func @kernel(%arg0: i32, %arg1: i32, %arg2: memref<1x18x8xbf16, #tpu.memory_space<vmem>>, %arg3: memref<3x8x32xbf16, #tpu.memory_space<vmem>>, %arg4: memref<1x16x32xbf16, #tpu.memory_space<vmem>>) attributes {dimension_semantics = [#tpu.dimension_semantics<parallel>, #tpu.dimension_semantics<parallel>], iteration_bounds = array<i64: 2, 1>, scalar_prefetch = 0 : i64, scratch_operands = 0 : i64, tpu.core_type = #tpu.core_type<tc>, window_params = [{transform_indices = @transform_0, window_bounds = array<i64: 1, 18, 8>}, {transform_indices = @transform_1, window_bounds = array<i64: 3, 8, 32>}, {transform_indices = @transform_2, window_bounds = array<i64: 1, 16, 32>}]} {
    %c0 = arith.constant 0 : index
    %c0_0 = arith.constant 0 : index
    %c0_1 = arith.constant 0 : index
    %0 = vector.load %arg2[%c0, %c0_0, %c0_1] : memref<1x18x8xbf16, #tpu.memory_space<vmem>>, vector<1x18x8xbf16>
    %1 = vector.shape_cast %0 : vector<1x18x8xbf16> to vector<18x8xbf16>
    %c0_2 = arith.constant 0 : index
    %c0_3 = arith.constant 0 : index
    %c0_4 = arith.constant 0 : index
    %2 = vector.load %arg3[%c0_2, %c0_3, %c0_4] : memref<3x8x32xbf16, #tpu.memory_space<vmem>>, vector<1x8x32xbf16>
    %3 = vector.shape_cast %2 : vector<1x8x32xbf16> to vector<8x32xbf16>
    %cst = arith.constant dense<0.000000e+00> : vector<18x32xf32>
    %4 = tpu.matmul %1, %3, %cst {dimension_numbers = #tpu.dot_dimension_numbers<[1], [0], [0], [1], [0, 0, 1, 1], [], []>} : vector<18x8xbf16>, vector<8x32xbf16>, vector<18x32xf32> -> vector<18x32xf32>
    %c1 = arith.constant 1 : index
    %c0_5 = arith.constant 0 : index
    %c0_6 = arith.constant 0 : index
    %5 = vector.load %arg3[%c1, %c0_5, %c0_6] : memref<3x8x32xbf16, #tpu.memory_space<vmem>>, vector<1x8x32xbf16>
    %6 = vector.shape_cast %5 : vector<1x8x32xbf16> to vector<8x32xbf16>
    %cst_7 = arith.constant dense<0.000000e+00> : vector<18x32xf32>
    %7 = tpu.matmul %1, %6, %cst_7 {dimension_numbers = #tpu.dot_dimension_numbers<[1], [0], [0], [1], [0, 0, 1, 1], [], []>} : vector<18x8xbf16>, vector<8x32xbf16>, vector<18x32xf32> -> vector<18x32xf32>
    %c2 = arith.constant 2 : index
    %c0_8 = arith.constant 0 : index
    %c0_9 = arith.constant 0 : index
    %8 = vector.load %arg3[%c2, %c0_8, %c0_9] : memref<3x8x32xbf16, #tpu.memory_space<vmem>>, vector<1x8x32xbf16>
    %9 = vector.shape_cast %8 : vector<1x8x32xbf16> to vector<8x32xbf16>
    %cst_10 = arith.constant dense<0.000000e+00> : vector<18x32xf32>
    %10 = tpu.matmul %1, %9, %cst_10 {dimension_numbers = #tpu.dot_dimension_numbers<[1], [0], [0], [1], [0, 0, 1, 1], [], []>} : vector<18x8xbf16>, vector<8x32xbf16>, vector<18x32xf32> -> vector<18x32xf32>
    %11 = vector.extract_strided_slice %4 {offsets = [0, 0], sizes = [16, 32], strides = [1, 1]} : vector<18x32xf32> to vector<16x32xf32>
    %12 = vector.extract_strided_slice %7 {offsets = [1, 0], sizes = [16, 32], strides = [1, 1]} : vector<18x32xf32> to vector<16x32xf32>
    %13 = arith.addf %11, %12 : vector<16x32xf32>
    %14 = vector.extract_strided_slice %10 {offsets = [2, 0], sizes = [16, 32], strides = [1, 1]} : vector<18x32xf32> to vector<16x32xf32>
    %15 = arith.addf %13, %14 : vector<16x32xf32>
    %cst_11 = arith.constant 5.000000e-01 : f32
    %16 = vector.broadcast %cst_11 : f32 to vector<16x32xf32>
    %17 = arith.mulf %16, %15 : vector<16x32xf32>
    %cst_12 = arith.constant 0.707106769 : f32
    %18 = vector.broadcast %cst_12 : f32 to vector<16x32xf32>
    %19 = arith.mulf %15, %18 : vector<16x32xf32>
    %20 = math.erf %19 : vector<16x32xf32>
    %cst_13 = arith.constant 1.000000e+00 : f32
    %21 = vector.broadcast %cst_13 : f32 to vector<16x32xf32>
    %22 = arith.addf %21, %20 : vector<16x32xf32>
    %23 = arith.mulf %17, %22 : vector<16x32xf32>
    %24 = arith.truncf %23 : vector<16x32xf32> to vector<16x32xbf16>
    %c0_14 = arith.constant 0 : index
    %c0_15 = arith.constant 0 : index
    %c0_16 = arith.constant 0 : index
    %25 = vector.load %arg4[%c0_14, %c0_15, %c0_16] : memref<1x16x32xbf16, #tpu.memory_space<vmem>>, vector<1x16x32xbf16>
    %26 = vector.shape_cast %25 : vector<1x16x32xbf16> to vector<16x32xbf16>
    %27 = vector.shape_cast %24 : vector<16x32xbf16> to vector<1x16x32xbf16>
    tpu.vector_store %arg4[%c0_14, %c0_15, %c0_16], %27 {strides = array<i32>} : memref<1x16x32xbf16, #tpu.memory_space<vmem>>, vector<1x16x32xbf16>,
    return
  }
  func.func @transform_0(%arg0: i32, %arg1: i32) -> (i32, i32, i32) {
    %c0_i32 = arith.constant 0 : i32
    %c0_i32_0 = arith.constant 0 : i32
    %c0_i32_1 = arith.constant 0 : i32
    return %arg0, %c0_i32, %c0_i32_0 : i32, i32, i32
  }
  func.func @transform_1(%arg0: i32, %arg1: i32) -> (i32, i32, i32) {
    %c0_i32 = arith.constant 0 : i32
    %c0_i32_0 = arith.constant 0 : i32
    %c0_i32_1 = arith.constant 0 : i32
    return %c0_i32, %c0_i32_0, %arg1 : i32, i32, i32
  }
  func.func @transform_2(%arg0: i32, %arg1: i32) -> (i32, i32, i32) {
    %c0_i32 = arith.constant 0 : i32
    %c0_i32_0 = arith.constant 0 : i32
    return %arg0, %c0_i32, %arg1 : i32, i32, i32
  }
}

module attributes {stable_mosaic.version = 11 : i64} {
  func.func @kernel(%arg0: i32, %arg1: i32, %arg2: i32, %arg3: memref<1x16x8xbf16, #tpu.memory_space<vmem>>, %arg4: memref<1x16x8xbf16, #tpu.memory_space<vmem>>, %arg5: memref<1x16x8xbf16, #tpu.memory_space<vmem>>, %arg6: memref<1x16x8xbf16, #tpu.memory_space<vmem>>, %arg7: memref<16x1xf32, #tpu.memory_space<vmem>>, %arg8: memref<16x1xf32, #tpu.memory_space<vmem>>, %arg9: memref<16x8xf32, #tpu.memory_space<vmem>>) attributes {dimension_semantics = [#tpu.dimension_semantics<parallel>, #tpu.dimension_semantics<parallel>, #tpu.dimension_semantics<arbitrary>], iteration_bounds = array<i64: 8, 1, 1>, scalar_prefetch = 0 : i64, scratch_operands = 3 : i64, tpu.core_type = #tpu.core_type<tc>, window_params = [{transform_indices = @transform_0, window_bounds = array<i64: 1, 16, 8>}, {transform_indices = @transform_1, window_bounds = array<i64: 1, 16, 8>}, {transform_indices = @transform_2, window_bounds = array<i64: 1, 16, 8>}, {transform_indices = @transform_3, window_bounds = array<i64: 1, 16, 8>}]} {
    %c0_i32 = arith.constant 0 : i32
    %0 = arith.cmpi eq, %arg2, %c0_i32 : i32
    %1 = arith.extui %0 : i1 to i32
    %c0_i32_0 = arith.constant 0 : i32
    %2 = arith.cmpi ne, %1, %c0_i32_0 : i32
    scf.if %2 {
      %cst_26 = arith.constant 0xFF800000 : f32
      %36 = vector.broadcast %cst_26 : f32 to vector<16x1xf32>
      %c0_27 = arith.constant 0 : index
      %c0_28 = arith.constant 0 : index
      %37 = vector.load %arg7[%c0_27, %c0_28] : memref<16x1xf32, #tpu.memory_space<vmem>>, vector<16x1xf32>
      tpu.vector_store %arg7[%c0_27, %c0_28], %36 {strides = array<i32>} : memref<16x1xf32, #tpu.memory_space<vmem>>, vector<16x1xf32>,
      %cst_29 = arith.constant 0.000000e+00 : f32
      %38 = vector.broadcast %cst_29 : f32 to vector<16x1xf32>
      %c0_30 = arith.constant 0 : index
      %c0_31 = arith.constant 0 : index
      %39 = vector.load %arg8[%c0_30, %c0_31] : memref<16x1xf32, #tpu.memory_space<vmem>>, vector<16x1xf32>
      tpu.vector_store %arg8[%c0_30, %c0_31], %38 {strides = array<i32>} : memref<16x1xf32, #tpu.memory_space<vmem>>, vector<16x1xf32>,
      %cst_32 = arith.constant 0.000000e+00 : f32
      %40 = vector.broadcast %cst_32 : f32 to vector<16x8xf32>
      %c0_33 = arith.constant 0 : index
      %c0_34 = arith.constant 0 : index
      %41 = vector.load %arg9[%c0_33, %c0_34] : memref<16x8xf32, #tpu.memory_space<vmem>>, vector<16x8xf32>
      tpu.vector_store %arg9[%c0_33, %c0_34], %40 {strides = array<i32>} : memref<16x8xf32, #tpu.memory_space<vmem>>, vector<16x8xf32>,
    } else {
    }
    %c0 = arith.constant 0 : index
    %c0_1 = arith.constant 0 : index
    %c0_2 = arith.constant 0 : index
    %3 = vector.load %arg3[%c0, %c0_1, %c0_2] : memref<1x16x8xbf16, #tpu.memory_space<vmem>>, vector<1x16x8xbf16>
    %4 = vector.shape_cast %3 : vector<1x16x8xbf16> to vector<16x8xbf16>
    %c0_3 = arith.constant 0 : index
    %c0_4 = arith.constant 0 : index
    %c0_5 = arith.constant 0 : index
    %5 = vector.load %arg4[%c0_3, %c0_4, %c0_5] : memref<1x16x8xbf16, #tpu.memory_space<vmem>>, vector<1x16x8xbf16>
    %6 = vector.shape_cast %5 : vector<1x16x8xbf16> to vector<16x8xbf16>
    %cst = arith.constant dense<0.000000e+00> : vector<16x16xf32>
    %7 = tpu.matmul %4, %6, %cst {dimension_numbers = #tpu.dot_dimension_numbers<[1], [1], [0], [0], [0, 0, 1, 0], [], []>} : vector<16x8xbf16>, vector<16x8xbf16>, vector<16x16xf32> -> vector<16x16xf32>
    %c0_6 = arith.constant 0 : index
    %c0_7 = arith.constant 0 : index
    %8 = vector.load %arg7[%c0_6, %c0_7] : memref<16x1xf32, #tpu.memory_space<vmem>>, vector<16x1xf32>
    %cst_8 = arith.constant dense<0xFF800000> : vector<16xf32>
    %9 = vector.multi_reduction <maximumf>, %7, %cst_8 [1] : vector<16x16xf32> to vector<16xf32>
    %10 = vector.shape_cast %9 : vector<16xf32> to vector<16x1xf32>
    %11 = arith.maximumf %8, %10 : vector<16x1xf32>
    %12 = arith.subf %8, %11 : vector<16x1xf32>
    %13 = math.exp %12 : vector<16x1xf32>
    %14 = vector.broadcast %11 : vector<16x1xf32> to vector<16x16xf32>
    %15 = arith.subf %7, %14 : vector<16x16xf32>
    %16 = math.exp %15 : vector<16x16xf32>
    %c0_9 = arith.constant 0 : index
    %c0_10 = arith.constant 0 : index
    %17 = vector.load %arg8[%c0_9, %c0_10] : memref<16x1xf32, #tpu.memory_space<vmem>>, vector<16x1xf32>
    %18 = arith.mulf %13, %17 : vector<16x1xf32>
    %cst_11 = arith.constant dense<0.000000e+00> : vector<16xf32>
    %19 = vector.multi_reduction <add>, %16, %cst_11 [1] : vector<16x16xf32> to vector<16xf32>
    %20 = vector.shape_cast %19 : vector<16xf32> to vector<16x1xf32>
    %21 = arith.addf %18, %20 : vector<16x1xf32>
    %c0_12 = arith.constant 0 : index
    %c0_13 = arith.constant 0 : index
    %22 = vector.load %arg8[%c0_12, %c0_13] : memref<16x1xf32, #tpu.memory_space<vmem>>, vector<16x1xf32>
    tpu.vector_store %arg8[%c0_12, %c0_13], %21 {strides = array<i32>} : memref<16x1xf32, #tpu.memory_space<vmem>>, vector<16x1xf32>,
    %c0_14 = arith.constant 0 : index
    %c0_15 = arith.constant 0 : index
    %23 = vector.load %arg9[%c0_14, %c0_15] : memref<16x8xf32, #tpu.memory_space<vmem>>, vector<16x8xf32>
    %24 = vector.broadcast %13 : vector<16x1xf32> to vector<16x8xf32>
    %25 = arith.mulf %24, %23 : vector<16x8xf32>
    %26 = arith.truncf %16 : vector<16x16xf32> to vector<16x16xbf16>
    %c0_16 = arith.constant 0 : index
    %c0_17 = arith.constant 0 : index
    %c0_18 = arith.constant 0 : index
    %27 = vector.load %arg5[%c0_16, %c0_17, %c0_18] : memref<1x16x8xbf16, #tpu.memory_space<vmem>>, vector<1x16x8xbf16>
    %28 = vector.shape_cast %27 : vector<1x16x8xbf16> to vector<16x8xbf16>
    %cst_19 = arith.constant dense<0.000000e+00> : vector<16x8xf32>
    %29 = tpu.matmul %26, %28, %cst_19 {dimension_numbers = #tpu.dot_dimension_numbers<[1], [0], [0], [1], [0, 0, 1, 1], [], []>} : vector<16x16xbf16>, vector<16x8xbf16>, vector<16x8xf32> -> vector<16x8xf32>
    %30 = arith.addf %25, %29 : vector<16x8xf32>
    %c0_20 = arith.constant 0 : index
    %c0_21 = arith.constant 0 : index
    %31 = vector.load %arg9[%c0_20, %c0_21] : memref<16x8xf32, #tpu.memory_space<vmem>>, vector<16x8xf32>
    tpu.vector_store %arg9[%c0_20, %c0_21], %30 {strides = array<i32>} : memref<16x8xf32, #tpu.memory_space<vmem>>, vector<16x8xf32>,
    %c0_22 = arith.constant 0 : index
    %c0_23 = arith.constant 0 : index
    %32 = vector.load %arg7[%c0_22, %c0_23] : memref<16x1xf32, #tpu.memory_space<vmem>>, vector<16x1xf32>
    tpu.vector_store %arg7[%c0_22, %c0_23], %11 {strides = array<i32>} : memref<16x1xf32, #tpu.memory_space<vmem>>, vector<16x1xf32>,
    %c0_i32_24 = arith.constant 0 : i32
    %33 = arith.cmpi eq, %arg2, %c0_i32_24 : i32
    %34 = arith.extui %33 : i1 to i32
    %c0_i32_25 = arith.constant 0 : i32
    %35 = arith.cmpi ne, %34, %c0_i32_25 : i32
    scf.if %35 {
      %c0_26 = arith.constant 0 : index
      %c0_27 = arith.constant 0 : index
      %36 = vector.load %arg8[%c0_26, %c0_27] : memref<16x1xf32, #tpu.memory_space<vmem>>, vector<16x1xf32>
      %37 = tpu.reciprocal %36 {approx = true} : vector<16x1xf32> -> vector<16x1xf32>
      %c0_28 = arith.constant 0 : index
      %c0_29 = arith.constant 0 : index
      %38 = vector.load %arg9[%c0_28, %c0_29] : memref<16x8xf32, #tpu.memory_space<vmem>>, vector<16x8xf32>
      %39 = vector.broadcast %37 : vector<16x1xf32> to vector<16x8xf32>
      %40 = arith.mulf %38, %39 : vector<16x8xf32>
      %41 = arith.truncf %40 : vector<16x8xf32> to vector<16x8xbf16>
      %c0_30 = arith.constant 0 : index
      %c0_31 = arith.constant 0 : index
      %c0_32 = arith.constant 0 : index
      %42 = vector.load %arg6[%c0_30, %c0_31, %c0_32] : memref<1x16x8xbf16, #tpu.memory_space<vmem>>, vector<1x16x8xbf16>
      %43 = vector.shape_cast %42 : vector<1x16x8xbf16> to vector<16x8xbf16>
      %44 = vector.shape_cast %41 : vector<16x8xbf16> to vector<1x16x8xbf16>
      tpu.vector_store %arg6[%c0_30, %c0_31, %c0_32], %44 {strides = array<i32>} : memref<1x16x8xbf16, #tpu.memory_space<vmem>>, vector<1x16x8xbf16>,
    } else {
    }
    return
  }
  func.func @transform_0(%arg0: i32, %arg1: i32, %arg2: i32) -> (i32, i32, i32) {
    %c0_i32 = arith.constant 0 : i32
    %c0_i32_0 = arith.constant 0 : i32
    return %arg0, %arg1, %c0_i32 : i32, i32, i32
  }
  func.func @transform_1(%arg0: i32, %arg1: i32, %arg2: i32) -> (i32, i32, i32) {
    %c0_i32 = arith.constant 0 : i32
    %c0_i32_0 = arith.constant 0 : i32
    return %arg0, %arg2, %c0_i32 : i32, i32, i32
  }
  func.func @transform_2(%arg0: i32, %arg1: i32, %arg2: i32) -> (i32, i32, i32) {
    %c0_i32 = arith.constant 0 : i32
    %c0_i32_0 = arith.constant 0 : i32
    return %arg0, %arg2, %c0_i32 : i32, i32, i32
  }
  func.func @transform_3(%arg0: i32, %arg1: i32, %arg2: i32) -> (i32, i32, i32) {
    %c0_i32 = arith.constant 0 : i32
    %c0_i32_0 = arith.constant 0 : i32
    return %arg0, %arg1, %c0_i32 : i32, i32, i32
  }
}

module attributes {stable_mosaic.version = 11 : i64} {
  func.func @kernel(%arg0: i32, %arg1: i32, %arg2: memref<32x32xbf16, #tpu.memory_space<vmem>>, %arg3: memref<1x32xf32, #tpu.memory_space<vmem>>, %arg4: memref<1x32xf32, #tpu.memory_space<vmem>>, %arg5: memref<32x96xbf16, #tpu.memory_space<vmem>>, %arg6: memref<1x96xf32, #tpu.memory_space<vmem>>, %arg7: memref<32x96xbf16, #tpu.memory_space<vmem>>, %arg8: memref<32x32xbf16, #tpu.memory_space<vmem>>) attributes {dimension_semantics = [#tpu.dimension_semantics<parallel>, #tpu.dimension_semantics<arbitrary>], iteration_bounds = array<i64: 1, 1>, scalar_prefetch = 0 : i64, scratch_operands = 0 : i64, tpu.core_type = #tpu.core_type<tc>, window_params = [{transform_indices = @transform_0, window_bounds = array<i64: 32, 32>}, {pipeline_mode = #tpu.pipeline_mode<synchronous>, transform_indices = @transform_1, window_bounds = array<i64: 1, 32>}, {pipeline_mode = #tpu.pipeline_mode<synchronous>, transform_indices = @transform_2, window_bounds = array<i64: 1, 32>}, {transform_indices = @transform_3, window_bounds = array<i64: 32, 96>}, {transform_indices = @transform_4, window_bounds = array<i64: 1, 96>}, {transform_indices = @transform_5, window_bounds = array<i64: 32, 96>}, {transform_indices = @transform_6, window_bounds = array<i64: 32, 32>}]} {
    %c0_i32 = arith.constant 0 : i32
    %0 = arith.cmpi eq, %arg1, %c0_i32 : i32
    %1 = arith.extui %0 : i1 to i32
    %c0_i32_0 = arith.constant 0 : i32
    %2 = arith.cmpi ne, %1, %c0_i32_0 : i32
    scf.if %2 {
      %c0_8 = arith.constant 0 : index
      %c0_9 = arith.constant 0 : index
      %11 = vector.load %arg2[%c0_8, %c0_9] : memref<32x32xbf16, #tpu.memory_space<vmem>>, vector<32x32xbf16>
      %12 = arith.extf %11 : vector<32x32xbf16> to vector<32x32xf32>
      %cst_10 = arith.constant dense<0.000000e+00> : vector<32xf32>
      %13 = vector.multi_reduction <add>, %12, %cst_10 [1] : vector<32x32xf32> to vector<32xf32>
      %14 = vector.shape_cast %13 : vector<32xf32> to vector<32x1xf32>
      %cst_11 = arith.constant 3.200000e+01 : f32
      %15 = vector.broadcast %cst_11 : f32 to vector<32x1xf32>
      %16 = arith.divf %14, %15 : vector<32x1xf32>
      %17 = vector.broadcast %16 : vector<32x1xf32> to vector<32x32xf32>
      %18 = arith.subf %12, %17 : vector<32x32xf32>
      %19 = arith.mulf %18, %18 : vector<32x32xf32>
      %cst_12 = arith.constant dense<0.000000e+00> : vector<32xf32>
      %20 = vector.multi_reduction <add>, %19, %cst_12 [1] : vector<32x32xf32> to vector<32xf32>
      %21 = vector.shape_cast %20 : vector<32xf32> to vector<32x1xf32>
      %cst_13 = arith.constant 3.200000e+01 : f32
      %22 = vector.broadcast %cst_13 : f32 to vector<32x1xf32>
      %23 = arith.divf %21, %22 : vector<32x1xf32>
      %cst_14 = arith.constant 9.99999974E-6 : f32
      %24 = vector.broadcast %cst_14 : f32 to vector<32x1xf32>
      %25 = arith.addf %23, %24 : vector<32x1xf32>
      %26 = math.rsqrt %25 : vector<32x1xf32>
      %27 = vector.broadcast %26 : vector<32x1xf32> to vector<32x32xf32>
      %28 = arith.mulf %18, %27 : vector<32x32xf32>
      %c0_15 = arith.constant 0 : index
      %c0_16 = arith.constant 0 : index
      %29 = vector.load %arg3[%c0_15, %c0_16] : memref<1x32xf32, #tpu.memory_space<vmem>>, vector<1x32xf32>
      %30 = vector.broadcast %29 : vector<1x32xf32> to vector<32x32xf32>
      %31 = arith.mulf %28, %30 : vector<32x32xf32>
      %c0_17 = arith.constant 0 : index
      %c0_18 = arith.constant 0 : index
      %32 = vector.load %arg4[%c0_17, %c0_18] : memref<1x32xf32, #tpu.memory_space<vmem>>, vector<1x32xf32>
      %33 = vector.broadcast %32 : vector<1x32xf32> to vector<32x32xf32>
      %34 = arith.addf %31, %33 : vector<32x32xf32>
      %35 = arith.truncf %34 : vector<32x32xf32> to vector<32x32xbf16>
      %c0_19 = arith.constant 0 : index
      %c0_20 = arith.constant 0 : index
      %36 = vector.load %arg8[%c0_19, %c0_20] : memref<32x32xbf16, #tpu.memory_space<vmem>>, vector<32x32xbf16>
      tpu.vector_store %arg8[%c0_19, %c0_20], %35 {strides = array<i32>} : memref<32x32xbf16, #tpu.memory_space<vmem>>, vector<32x32xbf16>,
    } else {
    }
    %c0 = arith.constant 0 : index
    %c0_1 = arith.constant 0 : index
    %3 = vector.load %arg8[%c0, %c0_1] : memref<32x32xbf16, #tpu.memory_space<vmem>>, vector<32x32xbf16>
    %c0_2 = arith.constant 0 : index
    %c0_3 = arith.constant 0 : index
    %4 = vector.load %arg5[%c0_2, %c0_3] : memref<32x96xbf16, #tpu.memory_space<vmem>>, vector<32x96xbf16>
    %cst = arith.constant dense<0.000000e+00> : vector<32x96xf32>
    %5 = tpu.matmul %3, %4, %cst {dimension_numbers = #tpu.dot_dimension_numbers<[1], [0], [0], [1], [0, 0, 1, 1], [], []>} : vector<32x32xbf16>, vector<32x96xbf16>, vector<32x96xf32> -> vector<32x96xf32>
    %c0_4 = arith.constant 0 : index
    %c0_5 = arith.constant 0 : index
    %6 = vector.load %arg6[%c0_4, %c0_5] : memref<1x96xf32, #tpu.memory_space<vmem>>, vector<1x96xf32>
    %7 = vector.broadcast %6 : vector<1x96xf32> to vector<32x96xf32>
    %8 = arith.addf %5, %7 : vector<32x96xf32>
    %9 = arith.truncf %8 : vector<32x96xf32> to vector<32x96xbf16>
    %c0_6 = arith.constant 0 : index
    %c0_7 = arith.constant 0 : index
    %10 = vector.load %arg7[%c0_6, %c0_7] : memref<32x96xbf16, #tpu.memory_space<vmem>>, vector<32x96xbf16>
    tpu.vector_store %arg7[%c0_6, %c0_7], %9 {strides = array<i32>} : memref<32x96xbf16, #tpu.memory_space<vmem>>, vector<32x96xbf16>,
    return
  }
  func.func @transform_0(%arg0: i32, %arg1: i32) -> (i32, i32) {
    %c0_i32 = arith.constant 0 : i32
    %c0_i32_0 = arith.constant 0 : i32
    return %arg0, %c0_i32 : i32, i32
  }
  func.func @transform_1(%arg0: i32, %arg1: i32) -> (i32, i32) {
    %c0_i32 = arith.constant 0 : i32
    %c0_i32_0 = arith.constant 0 : i32
    %c0_i32_1 = arith.constant 0 : i32
    return %c0_i32, %c0_i32_0 : i32, i32
  }
  func.func @transform_2(%arg0: i32, %arg1: i32) -> (i32, i32) {
    %c0_i32 = arith.constant 0 : i32
    %c0_i32_0 = arith.constant 0 : i32
    %c0_i32_1 = arith.constant 0 : i32
    return %c0_i32, %c0_i32_0 : i32, i32
  }
  func.func @transform_3(%arg0: i32, %arg1: i32) -> (i32, i32) {
    %c0_i32 = arith.constant 0 : i32
    %c0_i32_0 = arith.constant 0 : i32
    return %c0_i32, %arg1 : i32, i32
  }
  func.func @transform_4(%arg0: i32, %arg1: i32) -> (i32, i32) {
    %c0_i32 = arith.constant 0 : i32
    %c0_i32_0 = arith.constant 0 : i32
    return %c0_i32, %arg1 : i32, i32
  }
  func.func @transform_5(%arg0: i32, %arg1: i32) -> (i32, i32) {
    %c0_i32 = arith.constant 0 : i32
    return %arg0, %arg1 : i32, i32
  }
  func.func @transform_6(%arg0: i32, %arg1: i32) -> (i32, i32) {
    %c0_i32 = arith.constant 0 : i32
    %c0_i32_0 = arith.constant 0 : i32
    return %arg0, %c0_i32 : i32, i32
  }
}

module attributes {stable_mosaic.version = 11 : i64} {
  func.func @kernel(%arg0: i32, %arg1: i32, %arg2: memref<1x18x32xbf16, #tpu.memory_space<vmem>>, %arg3: memref<3x32x32xbf16, #tpu.memory_space<vmem>>, %arg4: memref<16x32xbf16, #tpu.memory_space<vmem>>, %arg5: memref<1x16x32xbf16, #tpu.memory_space<vmem>>) attributes {dimension_semantics = [#tpu.dimension_semantics<parallel>, #tpu.dimension_semantics<parallel>], iteration_bounds = array<i64: 2, 1>, scalar_prefetch = 0 : i64, scratch_operands = 0 : i64, tpu.core_type = #tpu.core_type<tc>, window_params = [{transform_indices = @transform_0, window_bounds = array<i64: 1, 18, 32>}, {transform_indices = @transform_1, window_bounds = array<i64: 3, 32, 32>}, {transform_indices = @transform_2, window_bounds = array<i64: 16, 32>}, {transform_indices = @transform_3, window_bounds = array<i64: 1, 16, 32>}]} {
    %c0 = arith.constant 0 : index
    %c0_0 = arith.constant 0 : index
    %c0_1 = arith.constant 0 : index
    %0 = vector.load %arg2[%c0, %c0_0, %c0_1] : memref<1x18x32xbf16, #tpu.memory_space<vmem>>, vector<1x18x32xbf16>
    %1 = vector.shape_cast %0 : vector<1x18x32xbf16> to vector<18x32xbf16>
    %c0_2 = arith.constant 0 : index
    %c0_3 = arith.constant 0 : index
    %c0_4 = arith.constant 0 : index
    %2 = vector.load %arg3[%c0_2, %c0_3, %c0_4] : memref<3x32x32xbf16, #tpu.memory_space<vmem>>, vector<1x32x32xbf16>
    %3 = vector.shape_cast %2 : vector<1x32x32xbf16> to vector<32x32xbf16>
    %cst = arith.constant dense<0.000000e+00> : vector<18x32xf32>
    %4 = tpu.matmul %1, %3, %cst {dimension_numbers = #tpu.dot_dimension_numbers<[1], [0], [0], [1], [0, 0, 1, 1], [], []>} : vector<18x32xbf16>, vector<32x32xbf16>, vector<18x32xf32> -> vector<18x32xf32>
    %c1 = arith.constant 1 : index
    %c0_5 = arith.constant 0 : index
    %c0_6 = arith.constant 0 : index
    %5 = vector.load %arg3[%c1, %c0_5, %c0_6] : memref<3x32x32xbf16, #tpu.memory_space<vmem>>, vector<1x32x32xbf16>
    %6 = vector.shape_cast %5 : vector<1x32x32xbf16> to vector<32x32xbf16>
    %cst_7 = arith.constant dense<0.000000e+00> : vector<18x32xf32>
    %7 = tpu.matmul %1, %6, %cst_7 {dimension_numbers = #tpu.dot_dimension_numbers<[1], [0], [0], [1], [0, 0, 1, 1], [], []>} : vector<18x32xbf16>, vector<32x32xbf16>, vector<18x32xf32> -> vector<18x32xf32>
    %c2 = arith.constant 2 : index
    %c0_8 = arith.constant 0 : index
    %c0_9 = arith.constant 0 : index
    %8 = vector.load %arg3[%c2, %c0_8, %c0_9] : memref<3x32x32xbf16, #tpu.memory_space<vmem>>, vector<1x32x32xbf16>
    %9 = vector.shape_cast %8 : vector<1x32x32xbf16> to vector<32x32xbf16>
    %cst_10 = arith.constant dense<0.000000e+00> : vector<18x32xf32>
    %10 = tpu.matmul %1, %9, %cst_10 {dimension_numbers = #tpu.dot_dimension_numbers<[1], [0], [0], [1], [0, 0, 1, 1], [], []>} : vector<18x32xbf16>, vector<32x32xbf16>, vector<18x32xf32> -> vector<18x32xf32>
    %11 = vector.extract_strided_slice %4 {offsets = [0, 0], sizes = [16, 32], strides = [1, 1]} : vector<18x32xf32> to vector<16x32xf32>
    %12 = vector.extract_strided_slice %7 {offsets = [1, 0], sizes = [16, 32], strides = [1, 1]} : vector<18x32xf32> to vector<16x32xf32>
    %13 = arith.addf %11, %12 : vector<16x32xf32>
    %14 = vector.extract_strided_slice %10 {offsets = [2, 0], sizes = [16, 32], strides = [1, 1]} : vector<18x32xf32> to vector<16x32xf32>
    %15 = arith.addf %13, %14 : vector<16x32xf32>
    %cst_11 = arith.constant 5.000000e-01 : f32
    %16 = vector.broadcast %cst_11 : f32 to vector<16x32xf32>
    %17 = arith.mulf %16, %15 : vector<16x32xf32>
    %cst_12 = arith.constant 0.707106769 : f32
    %18 = vector.broadcast %cst_12 : f32 to vector<16x32xf32>
    %19 = arith.mulf %15, %18 : vector<16x32xf32>
    %20 = math.erf %19 : vector<16x32xf32>
    %cst_13 = arith.constant 1.000000e+00 : f32
    %21 = vector.broadcast %cst_13 : f32 to vector<16x32xf32>
    %22 = arith.addf %21, %20 : vector<16x32xf32>
    %23 = arith.mulf %17, %22 : vector<16x32xf32>
    %c0_14 = arith.constant 0 : index
    %c0_15 = arith.constant 0 : index
    %24 = vector.load %arg4[%c0_14, %c0_15] : memref<16x32xbf16, #tpu.memory_space<vmem>>, vector<16x32xbf16>
    %25 = arith.extf %24 : vector<16x32xbf16> to vector<16x32xf32>
    %26 = arith.addf %23, %25 : vector<16x32xf32>
    %27 = arith.truncf %26 : vector<16x32xf32> to vector<16x32xbf16>
    %c0_16 = arith.constant 0 : index
    %c0_17 = arith.constant 0 : index
    %c0_18 = arith.constant 0 : index
    %28 = vector.load %arg5[%c0_16, %c0_17, %c0_18] : memref<1x16x32xbf16, #tpu.memory_space<vmem>>, vector<1x16x32xbf16>
    %29 = vector.shape_cast %28 : vector<1x16x32xbf16> to vector<16x32xbf16>
    %30 = vector.shape_cast %27 : vector<16x32xbf16> to vector<1x16x32xbf16>
    tpu.vector_store %arg5[%c0_16, %c0_17, %c0_18], %30 {strides = array<i32>} : memref<1x16x32xbf16, #tpu.memory_space<vmem>>, vector<1x16x32xbf16>,
    return
  }
  func.func @transform_0(%arg0: i32, %arg1: i32) -> (i32, i32, i32) {
    %c0_i32 = arith.constant 0 : i32
    %c0_i32_0 = arith.constant 0 : i32
    %c0_i32_1 = arith.constant 0 : i32
    return %arg0, %c0_i32, %c0_i32_0 : i32, i32, i32
  }
  func.func @transform_1(%arg0: i32, %arg1: i32) -> (i32, i32, i32) {
    %c0_i32 = arith.constant 0 : i32
    %c0_i32_0 = arith.constant 0 : i32
    %c0_i32_1 = arith.constant 0 : i32
    return %c0_i32, %c0_i32_0, %arg1 : i32, i32, i32
  }
  func.func @transform_2(%arg0: i32, %arg1: i32) -> (i32, i32) {
    %c0_i32 = arith.constant 0 : i32
    %c0_i32_0 = arith.constant 0 : i32
    return %c0_i32, %arg1 : i32, i32
  }
  func.func @transform_3(%arg0: i32, %arg1: i32) -> (i32, i32, i32) {
    %c0_i32 = arith.constant 0 : i32
    %c0_i32_0 = arith.constant 0 : i32
    return %arg0, %c0_i32, %arg1 : i32, i32, i32
  }
}

module attributes {stable_mosaic.version = 11 : i64} {
  func.func @kernel(%arg0: i32, %arg1: i32, %arg2: i32, %arg3: memref<32x32xbf16, #tpu.memory_space<vmem>>, %arg4: memref<32x32xbf16, #tpu.memory_space<vmem>>, %arg5: memref<1x32xf32, #tpu.memory_space<vmem>>, %arg6: memref<32x32xbf16, #tpu.memory_space<vmem>>, %arg7: memref<32x32xbf16, #tpu.memory_space<vmem>>, %arg8: memref<32x32xf32, #tpu.memory_space<vmem>>) attributes {dimension_semantics = [#tpu.dimension_semantics<parallel>, #tpu.dimension_semantics<parallel>, #tpu.dimension_semantics<arbitrary>], iteration_bounds = array<i64: 1, 1, 1>, scalar_prefetch = 0 : i64, scratch_operands = 1 : i64, tpu.core_type = #tpu.core_type<tc>, window_params = [{transform_indices = @transform_0, window_bounds = array<i64: 32, 32>}, {transform_indices = @transform_1, window_bounds = array<i64: 32, 32>}, {transform_indices = @transform_2, window_bounds = array<i64: 1, 32>}, {transform_indices = @transform_3, window_bounds = array<i64: 32, 32>}, {transform_indices = @transform_4, window_bounds = array<i64: 32, 32>}]} {
    %c0_i32 = arith.constant 0 : i32
    %0 = arith.cmpi eq, %arg2, %c0_i32 : i32
    %1 = arith.extui %0 : i1 to i32
    %c0_i32_0 = arith.constant 0 : i32
    %2 = arith.cmpi ne, %1, %c0_i32_0 : i32
    scf.if %2 {
      %cst_10 = arith.constant 0.000000e+00 : f32
      %12 = vector.broadcast %cst_10 : f32 to vector<32x32xf32>
      %c0_11 = arith.constant 0 : index
      %c0_12 = arith.constant 0 : index
      %13 = vector.load %arg8[%c0_11, %c0_12] : memref<32x32xf32, #tpu.memory_space<vmem>>, vector<32x32xf32>
      tpu.vector_store %arg8[%c0_11, %c0_12], %12 {strides = array<i32>} : memref<32x32xf32, #tpu.memory_space<vmem>>, vector<32x32xf32>,
    } else {
    }
    %c0 = arith.constant 0 : index
    %c0_1 = arith.constant 0 : index
    %3 = vector.load %arg8[%c0, %c0_1] : memref<32x32xf32, #tpu.memory_space<vmem>>, vector<32x32xf32>
    %c0_2 = arith.constant 0 : index
    %c0_3 = arith.constant 0 : index
    %4 = vector.load %arg3[%c0_2, %c0_3] : memref<32x32xbf16, #tpu.memory_space<vmem>>, vector<32x32xbf16>
    %c0_4 = arith.constant 0 : index
    %c0_5 = arith.constant 0 : index
    %5 = vector.load %arg4[%c0_4, %c0_5] : memref<32x32xbf16, #tpu.memory_space<vmem>>, vector<32x32xbf16>
    %cst = arith.constant dense<0.000000e+00> : vector<32x32xf32>
    %6 = tpu.matmul %4, %5, %cst {dimension_numbers = #tpu.dot_dimension_numbers<[1], [0], [0], [1], [0, 0, 1, 1], [], []>} : vector<32x32xbf16>, vector<32x32xbf16>, vector<32x32xf32> -> vector<32x32xf32>
    %7 = arith.addf %3, %6 : vector<32x32xf32>
    %c0_6 = arith.constant 0 : index
    %c0_7 = arith.constant 0 : index
    %8 = vector.load %arg8[%c0_6, %c0_7] : memref<32x32xf32, #tpu.memory_space<vmem>>, vector<32x32xf32>
    tpu.vector_store %arg8[%c0_6, %c0_7], %7 {strides = array<i32>} : memref<32x32xf32, #tpu.memory_space<vmem>>, vector<32x32xf32>,
    %c0_i32_8 = arith.constant 0 : i32
    %9 = arith.cmpi eq, %arg2, %c0_i32_8 : i32
    %10 = arith.extui %9 : i1 to i32
    %c0_i32_9 = arith.constant 0 : i32
    %11 = arith.cmpi ne, %10, %c0_i32_9 : i32
    scf.if %11 {
      %c0_10 = arith.constant 0 : index
      %c0_11 = arith.constant 0 : index
      %12 = vector.load %arg8[%c0_10, %c0_11] : memref<32x32xf32, #tpu.memory_space<vmem>>, vector<32x32xf32>
      %c0_12 = arith.constant 0 : index
      %c0_13 = arith.constant 0 : index
      %13 = vector.load %arg5[%c0_12, %c0_13] : memref<1x32xf32, #tpu.memory_space<vmem>>, vector<1x32xf32>
      %14 = vector.broadcast %13 : vector<1x32xf32> to vector<32x32xf32>
      %15 = arith.addf %12, %14 : vector<32x32xf32>
      %c0_14 = arith.constant 0 : index
      %c0_15 = arith.constant 0 : index
      %16 = vector.load %arg6[%c0_14, %c0_15] : memref<32x32xbf16, #tpu.memory_space<vmem>>, vector<32x32xbf16>
      %17 = arith.extf %16 : vector<32x32xbf16> to vector<32x32xf32>
      %18 = arith.addf %15, %17 : vector<32x32xf32>
      %19 = arith.truncf %18 : vector<32x32xf32> to vector<32x32xbf16>
      %c0_16 = arith.constant 0 : index
      %c0_17 = arith.constant 0 : index
      %20 = vector.load %arg7[%c0_16, %c0_17] : memref<32x32xbf16, #tpu.memory_space<vmem>>, vector<32x32xbf16>
      tpu.vector_store %arg7[%c0_16, %c0_17], %19 {strides = array<i32>} : memref<32x32xbf16, #tpu.memory_space<vmem>>, vector<32x32xbf16>,
    } else {
    }
    return
  }
  func.func @transform_0(%arg0: i32, %arg1: i32, %arg2: i32) -> (i32, i32) {
    %c0_i32 = arith.constant 0 : i32
    return %arg0, %arg2 : i32, i32
  }
  func.func @transform_1(%arg0: i32, %arg1: i32, %arg2: i32) -> (i32, i32) {
    %c0_i32 = arith.constant 0 : i32
    return %arg2, %arg1 : i32, i32
  }
  func.func @transform_2(%arg0: i32, %arg1: i32, %arg2: i32) -> (i32, i32) {
    %c0_i32 = arith.constant 0 : i32
    %c0_i32_0 = arith.constant 0 : i32
    return %c0_i32, %arg1 : i32, i32
  }
  func.func @transform_3(%arg0: i32, %arg1: i32, %arg2: i32) -> (i32, i32) {
    %c0_i32 = arith.constant 0 : i32
    return %arg0, %arg1 : i32, i32
  }
  func.func @transform_4(%arg0: i32, %arg1: i32, %arg2: i32) -> (i32, i32) {
    %c0_i32 = arith.constant 0 : i32
    return %arg0, %arg1 : i32, i32
  }
}

module attributes {stable_mosaic.version = 11 : i64} {
  func.func @kernel(%arg0: i32, %arg1: i32, %arg2: memref<32x32xbf16, #tpu.memory_space<vmem>>, %arg3: memref<1x32xf32, #tpu.memory_space<vmem>>, %arg4: memref<1x32xf32, #tpu.memory_space<vmem>>, %arg5: memref<32x128xbf16, #tpu.memory_space<vmem>>, %arg6: memref<1x128xf32, #tpu.memory_space<vmem>>, %arg7: memref<32x128xbf16, #tpu.memory_space<vmem>>, %arg8: memref<32x32xbf16, #tpu.memory_space<vmem>>) attributes {dimension_semantics = [#tpu.dimension_semantics<parallel>, #tpu.dimension_semantics<arbitrary>], iteration_bounds = array<i64: 1, 1>, scalar_prefetch = 0 : i64, scratch_operands = 1 : i64, tpu.core_type = #tpu.core_type<tc>, window_params = [{transform_indices = @transform_0, window_bounds = array<i64: 32, 32>}, {pipeline_mode = #tpu.pipeline_mode<synchronous>, transform_indices = @transform_1, window_bounds = array<i64: 1, 32>}, {pipeline_mode = #tpu.pipeline_mode<synchronous>, transform_indices = @transform_2, window_bounds = array<i64: 1, 32>}, {transform_indices = @transform_3, window_bounds = array<i64: 32, 128>}, {transform_indices = @transform_4, window_bounds = array<i64: 1, 128>}, {transform_indices = @transform_5, window_bounds = array<i64: 32, 128>}]} {
    %c0_i32 = arith.constant 0 : i32
    %0 = arith.cmpi eq, %arg1, %c0_i32 : i32
    %1 = arith.extui %0 : i1 to i32
    %c0_i32_0 = arith.constant 0 : i32
    %2 = arith.cmpi ne, %1, %c0_i32_0 : i32
    scf.if %2 {
      %c0_11 = arith.constant 0 : index
      %c0_12 = arith.constant 0 : index
      %19 = vector.load %arg2[%c0_11, %c0_12] : memref<32x32xbf16, #tpu.memory_space<vmem>>, vector<32x32xbf16>
      %20 = arith.extf %19 : vector<32x32xbf16> to vector<32x32xf32>
      %cst_13 = arith.constant dense<0.000000e+00> : vector<32xf32>
      %21 = vector.multi_reduction <add>, %20, %cst_13 [1] : vector<32x32xf32> to vector<32xf32>
      %22 = vector.shape_cast %21 : vector<32xf32> to vector<32x1xf32>
      %cst_14 = arith.constant 3.200000e+01 : f32
      %23 = vector.broadcast %cst_14 : f32 to vector<32x1xf32>
      %24 = arith.divf %22, %23 : vector<32x1xf32>
      %25 = vector.broadcast %24 : vector<32x1xf32> to vector<32x32xf32>
      %26 = arith.subf %20, %25 : vector<32x32xf32>
      %27 = arith.mulf %26, %26 : vector<32x32xf32>
      %cst_15 = arith.constant dense<0.000000e+00> : vector<32xf32>
      %28 = vector.multi_reduction <add>, %27, %cst_15 [1] : vector<32x32xf32> to vector<32xf32>
      %29 = vector.shape_cast %28 : vector<32xf32> to vector<32x1xf32>
      %cst_16 = arith.constant 3.200000e+01 : f32
      %30 = vector.broadcast %cst_16 : f32 to vector<32x1xf32>
      %31 = arith.divf %29, %30 : vector<32x1xf32>
      %cst_17 = arith.constant 9.99999974E-6 : f32
      %32 = vector.broadcast %cst_17 : f32 to vector<32x1xf32>
      %33 = arith.addf %31, %32 : vector<32x1xf32>
      %34 = math.rsqrt %33 : vector<32x1xf32>
      %35 = vector.broadcast %34 : vector<32x1xf32> to vector<32x32xf32>
      %36 = arith.mulf %26, %35 : vector<32x32xf32>
      %c0_18 = arith.constant 0 : index
      %c0_19 = arith.constant 0 : index
      %37 = vector.load %arg3[%c0_18, %c0_19] : memref<1x32xf32, #tpu.memory_space<vmem>>, vector<1x32xf32>
      %38 = vector.broadcast %37 : vector<1x32xf32> to vector<32x32xf32>
      %39 = arith.mulf %36, %38 : vector<32x32xf32>
      %c0_20 = arith.constant 0 : index
      %c0_21 = arith.constant 0 : index
      %40 = vector.load %arg4[%c0_20, %c0_21] : memref<1x32xf32, #tpu.memory_space<vmem>>, vector<1x32xf32>
      %41 = vector.broadcast %40 : vector<1x32xf32> to vector<32x32xf32>
      %42 = arith.addf %39, %41 : vector<32x32xf32>
      %43 = arith.truncf %42 : vector<32x32xf32> to vector<32x32xbf16>
      %c0_22 = arith.constant 0 : index
      %c0_23 = arith.constant 0 : index
      %44 = vector.load %arg8[%c0_22, %c0_23] : memref<32x32xbf16, #tpu.memory_space<vmem>>, vector<32x32xbf16>
      tpu.vector_store %arg8[%c0_22, %c0_23], %43 {strides = array<i32>} : memref<32x32xbf16, #tpu.memory_space<vmem>>, vector<32x32xbf16>,
    } else {
    }
    %c0 = arith.constant 0 : index
    %c0_1 = arith.constant 0 : index
    %3 = vector.load %arg8[%c0, %c0_1] : memref<32x32xbf16, #tpu.memory_space<vmem>>, vector<32x32xbf16>
    %c0_2 = arith.constant 0 : index
    %c0_3 = arith.constant 0 : index
    %4 = vector.load %arg5[%c0_2, %c0_3] : memref<32x128xbf16, #tpu.memory_space<vmem>>, vector<32x128xbf16>
    %cst = arith.constant dense<0.000000e+00> : vector<32x128xf32>
    %5 = tpu.matmul %3, %4, %cst {dimension_numbers = #tpu.dot_dimension_numbers<[1], [0], [0], [1], [0, 0, 1, 1], [], []>} : vector<32x32xbf16>, vector<32x128xbf16>, vector<32x128xf32> -> vector<32x128xf32>
    %c0_4 = arith.constant 0 : index
    %c0_5 = arith.constant 0 : index
    %6 = vector.load %arg6[%c0_4, %c0_5] : memref<1x128xf32, #tpu.memory_space<vmem>>, vector<1x128xf32>
    %7 = vector.broadcast %6 : vector<1x128xf32> to vector<32x128xf32>
    %8 = arith.addf %5, %7 : vector<32x128xf32>
    %cst_6 = arith.constant 5.000000e-01 : f32
    %9 = vector.broadcast %cst_6 : f32 to vector<32x128xf32>
    %10 = arith.mulf %9, %8 : vector<32x128xf32>
    %cst_7 = arith.constant 0.707106769 : f32
    %11 = vector.broadcast %cst_7 : f32 to vector<32x128xf32>
    %12 = arith.mulf %8, %11 : vector<32x128xf32>
    %13 = math.erf %12 : vector<32x128xf32>
    %cst_8 = arith.constant 1.000000e+00 : f32
    %14 = vector.broadcast %cst_8 : f32 to vector<32x128xf32>
    %15 = arith.addf %14, %13 : vector<32x128xf32>
    %16 = arith.mulf %10, %15 : vector<32x128xf32>
    %17 = arith.truncf %16 : vector<32x128xf32> to vector<32x128xbf16>
    %c0_9 = arith.constant 0 : index
    %c0_10 = arith.constant 0 : index
    %18 = vector.load %arg7[%c0_9, %c0_10] : memref<32x128xbf16, #tpu.memory_space<vmem>>, vector<32x128xbf16>
    tpu.vector_store %arg7[%c0_9, %c0_10], %17 {strides = array<i32>} : memref<32x128xbf16, #tpu.memory_space<vmem>>, vector<32x128xbf16>,
    return
  }
  func.func @transform_0(%arg0: i32, %arg1: i32) -> (i32, i32) {
    %c0_i32 = arith.constant 0 : i32
    %c0_i32_0 = arith.constant 0 : i32
    return %arg0, %c0_i32 : i32, i32
  }
  func.func @transform_1(%arg0: i32, %arg1: i32) -> (i32, i32) {
    %c0_i32 = arith.constant 0 : i32
    %c0_i32_0 = arith.constant 0 : i32
    %c0_i32_1 = arith.constant 0 : i32
    return %c0_i32, %c0_i32_0 : i32, i32
  }
  func.func @transform_2(%arg0: i32, %arg1: i32) -> (i32, i32) {
    %c0_i32 = arith.constant 0 : i32
    %c0_i32_0 = arith.constant 0 : i32
    %c0_i32_1 = arith.constant 0 : i32
    return %c0_i32, %c0_i32_0 : i32, i32
  }
  func.func @transform_3(%arg0: i32, %arg1: i32) -> (i32, i32) {
    %c0_i32 = arith.constant 0 : i32
    %c0_i32_0 = arith.constant 0 : i32
    return %c0_i32, %arg1 : i32, i32
  }
  func.func @transform_4(%arg0: i32, %arg1: i32) -> (i32, i32) {
    %c0_i32 = arith.constant 0 : i32
    %c0_i32_0 = arith.constant 0 : i32
    return %c0_i32, %arg1 : i32, i32
  }
  func.func @transform_5(%arg0: i32, %arg1: i32) -> (i32, i32) {
    %c0_i32 = arith.constant 0 : i32
    return %arg0, %arg1 : i32, i32
  }
}

module attributes {stable_mosaic.version = 11 : i64} {
  func.func @_ln_kernel(%arg0: i32, %arg1: memref<32x32xbf16, #tpu.memory_space<vmem>>, %arg2: memref<1x32xf32, #tpu.memory_space<vmem>>, %arg3: memref<1x32xf32, #tpu.memory_space<vmem>>, %arg4: memref<32x32xf32, #tpu.memory_space<vmem>>) attributes {dimension_semantics = [#tpu.dimension_semantics<parallel>], iteration_bounds = array<i64: 1>, scalar_prefetch = 0 : i64, scratch_operands = 0 : i64, tpu.core_type = #tpu.core_type<tc>, window_params = [{transform_indices = @transform_0, window_bounds = array<i64: 32, 32>}, {pipeline_mode = #tpu.pipeline_mode<synchronous>, transform_indices = @transform_1, window_bounds = array<i64: 1, 32>}, {pipeline_mode = #tpu.pipeline_mode<synchronous>, transform_indices = @transform_2, window_bounds = array<i64: 1, 32>}, {transform_indices = @transform_3, window_bounds = array<i64: 32, 32>}]} {
    %c0 = arith.constant 0 : index
    %c0_0 = arith.constant 0 : index
    %0 = vector.load %arg1[%c0, %c0_0] : memref<32x32xbf16, #tpu.memory_space<vmem>>, vector<32x32xbf16>
    %1 = arith.extf %0 : vector<32x32xbf16> to vector<32x32xf32>
    %cst = arith.constant dense<0.000000e+00> : vector<32xf32>
    %2 = vector.multi_reduction <add>, %1, %cst [1] : vector<32x32xf32> to vector<32xf32>
    %3 = vector.shape_cast %2 : vector<32xf32> to vector<32x1xf32>
    %cst_1 = arith.constant 3.200000e+01 : f32
    %4 = vector.broadcast %cst_1 : f32 to vector<32x1xf32>
    %5 = arith.divf %3, %4 : vector<32x1xf32>
    %6 = vector.broadcast %5 : vector<32x1xf32> to vector<32x32xf32>
    %7 = arith.subf %1, %6 : vector<32x32xf32>
    %8 = arith.mulf %7, %7 : vector<32x32xf32>
    %cst_2 = arith.constant dense<0.000000e+00> : vector<32xf32>
    %9 = vector.multi_reduction <add>, %8, %cst_2 [1] : vector<32x32xf32> to vector<32xf32>
    %10 = vector.shape_cast %9 : vector<32xf32> to vector<32x1xf32>
    %cst_3 = arith.constant 3.200000e+01 : f32
    %11 = vector.broadcast %cst_3 : f32 to vector<32x1xf32>
    %12 = arith.divf %10, %11 : vector<32x1xf32>
    %cst_4 = arith.constant 9.99999974E-6 : f32
    %13 = vector.broadcast %cst_4 : f32 to vector<32x1xf32>
    %14 = arith.addf %12, %13 : vector<32x1xf32>
    %15 = math.rsqrt %14 : vector<32x1xf32>
    %16 = vector.broadcast %15 : vector<32x1xf32> to vector<32x32xf32>
    %17 = arith.mulf %7, %16 : vector<32x32xf32>
    %c0_5 = arith.constant 0 : index
    %c0_6 = arith.constant 0 : index
    %18 = vector.load %arg2[%c0_5, %c0_6] : memref<1x32xf32, #tpu.memory_space<vmem>>, vector<1x32xf32>
    %19 = vector.broadcast %18 : vector<1x32xf32> to vector<32x32xf32>
    %20 = arith.mulf %17, %19 : vector<32x32xf32>
    %c0_7 = arith.constant 0 : index
    %c0_8 = arith.constant 0 : index
    %21 = vector.load %arg3[%c0_7, %c0_8] : memref<1x32xf32, #tpu.memory_space<vmem>>, vector<1x32xf32>
    %22 = vector.broadcast %21 : vector<1x32xf32> to vector<32x32xf32>
    %23 = arith.addf %20, %22 : vector<32x32xf32>
    %c0_9 = arith.constant 0 : index
    %c0_10 = arith.constant 0 : index
    %24 = vector.load %arg4[%c0_9, %c0_10] : memref<32x32xf32, #tpu.memory_space<vmem>>, vector<32x32xf32>
    tpu.vector_store %arg4[%c0_9, %c0_10], %23 {strides = array<i32>} : memref<32x32xf32, #tpu.memory_space<vmem>>, vector<32x32xf32>,
    return
  }
  func.func @transform_0(%arg0: i32) -> (i32, i32) {
    %c0_i32 = arith.constant 0 : i32
    %c0_i32_0 = arith.constant 0 : i32
    return %arg0, %c0_i32 : i32, i32
  }
  func.func @transform_1(%arg0: i32) -> (i32, i32) {
    %c0_i32 = arith.constant 0 : i32
    %c0_i32_0 = arith.constant 0 : i32
    %c0_i32_1 = arith.constant 0 : i32
    return %c0_i32, %c0_i32_0 : i32, i32
  }
  func.func @transform_2(%arg0: i32) -> (i32, i32) {
    %c0_i32 = arith.constant 0 : i32
    %c0_i32_0 = arith.constant 0 : i32
    %c0_i32_1 = arith.constant 0 : i32
    return %c0_i32, %c0_i32_0 : i32, i32
  }
  func.func @transform_3(%arg0: i32) -> (i32, i32) {
    %c0_i32 = arith.constant 0 : i32
    %c0_i32_0 = arith.constant 0 : i32
    return %arg0, %c0_i32 : i32, i32
  }
}

module attributes {stable_mosaic.version = 11 : i64} {
  func.func @kernel(%arg0: i32, %arg1: i32, %arg2: i32, %arg3: memref<32x128xbf16, #tpu.memory_space<vmem>>, %arg4: memref<128x32xbf16, #tpu.memory_space<vmem>>, %arg5: memref<1x32xf32, #tpu.memory_space<vmem>>, %arg6: memref<32x32xbf16, #tpu.memory_space<vmem>>, %arg7: memref<32x32xbf16, #tpu.memory_space<vmem>>, %arg8: memref<32x32xf32, #tpu.memory_space<vmem>>) attributes {dimension_semantics = [#tpu.dimension_semantics<parallel>, #tpu.dimension_semantics<parallel>, #tpu.dimension_semantics<arbitrary>], iteration_bounds = array<i64: 1, 1, 1>, scalar_prefetch = 0 : i64, scratch_operands = 1 : i64, tpu.core_type = #tpu.core_type<tc>, window_params = [{transform_indices = @transform_0, window_bounds = array<i64: 32, 128>}, {transform_indices = @transform_1, window_bounds = array<i64: 128, 32>}, {transform_indices = @transform_2, window_bounds = array<i64: 1, 32>}, {transform_indices = @transform_3, window_bounds = array<i64: 32, 32>}, {transform_indices = @transform_4, window_bounds = array<i64: 32, 32>}]} {
    %c0_i32 = arith.constant 0 : i32
    %0 = arith.cmpi eq, %arg2, %c0_i32 : i32
    %1 = arith.extui %0 : i1 to i32
    %c0_i32_0 = arith.constant 0 : i32
    %2 = arith.cmpi ne, %1, %c0_i32_0 : i32
    scf.if %2 {
      %cst_10 = arith.constant 0.000000e+00 : f32
      %12 = vector.broadcast %cst_10 : f32 to vector<32x32xf32>
      %c0_11 = arith.constant 0 : index
      %c0_12 = arith.constant 0 : index
      %13 = vector.load %arg8[%c0_11, %c0_12] : memref<32x32xf32, #tpu.memory_space<vmem>>, vector<32x32xf32>
      tpu.vector_store %arg8[%c0_11, %c0_12], %12 {strides = array<i32>} : memref<32x32xf32, #tpu.memory_space<vmem>>, vector<32x32xf32>,
    } else {
    }
    %c0 = arith.constant 0 : index
    %c0_1 = arith.constant 0 : index
    %3 = vector.load %arg8[%c0, %c0_1] : memref<32x32xf32, #tpu.memory_space<vmem>>, vector<32x32xf32>
    %c0_2 = arith.constant 0 : index
    %c0_3 = arith.constant 0 : index
    %4 = vector.load %arg3[%c0_2, %c0_3] : memref<32x128xbf16, #tpu.memory_space<vmem>>, vector<32x128xbf16>
    %c0_4 = arith.constant 0 : index
    %c0_5 = arith.constant 0 : index
    %5 = vector.load %arg4[%c0_4, %c0_5] : memref<128x32xbf16, #tpu.memory_space<vmem>>, vector<128x32xbf16>
    %cst = arith.constant dense<0.000000e+00> : vector<32x32xf32>
    %6 = tpu.matmul %4, %5, %cst {dimension_numbers = #tpu.dot_dimension_numbers<[1], [0], [0], [1], [0, 0, 1, 1], [], []>} : vector<32x128xbf16>, vector<128x32xbf16>, vector<32x32xf32> -> vector<32x32xf32>
    %7 = arith.addf %3, %6 : vector<32x32xf32>
    %c0_6 = arith.constant 0 : index
    %c0_7 = arith.constant 0 : index
    %8 = vector.load %arg8[%c0_6, %c0_7] : memref<32x32xf32, #tpu.memory_space<vmem>>, vector<32x32xf32>
    tpu.vector_store %arg8[%c0_6, %c0_7], %7 {strides = array<i32>} : memref<32x32xf32, #tpu.memory_space<vmem>>, vector<32x32xf32>,
    %c0_i32_8 = arith.constant 0 : i32
    %9 = arith.cmpi eq, %arg2, %c0_i32_8 : i32
    %10 = arith.extui %9 : i1 to i32
    %c0_i32_9 = arith.constant 0 : i32
    %11 = arith.cmpi ne, %10, %c0_i32_9 : i32
    scf.if %11 {
      %c0_10 = arith.constant 0 : index
      %c0_11 = arith.constant 0 : index
      %12 = vector.load %arg8[%c0_10, %c0_11] : memref<32x32xf32, #tpu.memory_space<vmem>>, vector<32x32xf32>
      %c0_12 = arith.constant 0 : index
      %c0_13 = arith.constant 0 : index
      %13 = vector.load %arg5[%c0_12, %c0_13] : memref<1x32xf32, #tpu.memory_space<vmem>>, vector<1x32xf32>
      %14 = vector.broadcast %13 : vector<1x32xf32> to vector<32x32xf32>
      %15 = arith.addf %12, %14 : vector<32x32xf32>
      %c0_14 = arith.constant 0 : index
      %c0_15 = arith.constant 0 : index
      %16 = vector.load %arg6[%c0_14, %c0_15] : memref<32x32xbf16, #tpu.memory_space<vmem>>, vector<32x32xbf16>
      %17 = arith.extf %16 : vector<32x32xbf16> to vector<32x32xf32>
      %18 = arith.addf %15, %17 : vector<32x32xf32>
      %19 = arith.truncf %18 : vector<32x32xf32> to vector<32x32xbf16>
      %c0_16 = arith.constant 0 : index
      %c0_17 = arith.constant 0 : index
      %20 = vector.load %arg7[%c0_16, %c0_17] : memref<32x32xbf16, #tpu.memory_space<vmem>>, vector<32x32xbf16>
      tpu.vector_store %arg7[%c0_16, %c0_17], %19 {strides = array<i32>} : memref<32x32xbf16, #tpu.memory_space<vmem>>, vector<32x32xbf16>,
    } else {
    }
    return
  }
  func.func @transform_0(%arg0: i32, %arg1: i32, %arg2: i32) -> (i32, i32) {
    %c0_i32 = arith.constant 0 : i32
    return %arg0, %arg2 : i32, i32
  }
  func.func @transform_1(%arg0: i32, %arg1: i32, %arg2: i32) -> (i32, i32) {
    %c0_i32 = arith.constant 0 : i32
    return %arg2, %arg1 : i32, i32
  }
  func.func @transform_2(%arg0: i32, %arg1: i32, %arg2: i32) -> (i32, i32) {
    %c0_i32 = arith.constant 0 : i32
    %c0_i32_0 = arith.constant 0 : i32
    return %c0_i32, %arg1 : i32, i32
  }
  func.func @transform_3(%arg0: i32, %arg1: i32, %arg2: i32) -> (i32, i32) {
    %c0_i32 = arith.constant 0 : i32
    return %arg0, %arg1 : i32, i32
  }
  func.func @transform_4(%arg0: i32, %arg1: i32, %arg2: i32) -> (i32, i32) {
    %c0_i32 = arith.constant 0 : i32
    return %arg0, %arg1 : i32, i32
  }
}

</mosaic_0001>

<llo_original>
// kernel: encoder_forward.13
$region0: #{encoder_forward.13}
  #allocation0 [shape = 'u32[]', space=smem, size = 0x4, offset = 0x4, fixed_abs, tag = 'smem constant byte address 0x4 - core index']
  #allocation1 [shape = 'u32[144,128]{1,0:T(1,128)}', space=vmem, size = 0x12000, scoped, tag = 'internal scratch']
  %s0 = inlined_call_operand.vmem [shape: bf16[2,18,8], index: 0, kind: input, shape index: {}]
  %s1 = inlined_call_operand.vmem [shape: bf16[3,8,32], index: 1, kind: input, shape index: {}]
  %s2 = inlined_call_operand.vmem [shape: bf16[2,16,32], index: 2, kind: output, shape index: {}]
  %s3 = sld [smem:[#allocation0]]
  $region41: #{encoder_forward.13} parent=0
    _
  %s5 = ssub.s32 1, %s3
  %s6 = scalar_select 0, %s5, %s3
  loop: start=0, step=1, limit=4
  $region2: #{encoder_forward.13} parent=0 // loop_pre_header
    _
  $region3: #{encoder_forward.13} parent=0 // loop_header
    %s8 = sphi 0, %s12
    %p9 = scmp.ge.s32.totalorder %s8, 4
    %s15 = sphi 0, %s27
    %s16 = sphi 0, %s23
    %s17 = sphi 0, %s15
    %s18 = sphi 0, %s16
    %s19 = sphi 0, %s17
    %s20 = sphi 0, %s18
    %s30 = sphi 0, %s32
    %s33 = sphi 0, %s30
    %s34 = sphi 0, %s33
    %s50 = sphi 0, %s34
    %s56 = sphi 0, %s58
    %s59 = sphi 0, %s56
    %s60 = sphi 0, %s59
    %s76 = sphi 0, %s60
    %s84 = sphi 0, %s86
    %s87 = sphi 0, %s84
    %s88 = sphi 0, %s87
    %s104 = sphi 0, %s88
  $region4: #{encoder_forward.13} parent=0 // loop_header_branch
    %11 = sbr.rel (%p9) target = $region8
  $region5: #{encoder_forward.13} parent=0 // loop_body
    %s13 = ssub.s32 %s8, 1
    %s14 = ssub.s32 %s8, 2
    %s21 = sadd.s32 1, %s16
    %p22 = scmp.ge.s32.totalorder %s21, 1
    %s23 = scalar_select %p22, 0, %s21
    %s24 = sadd.s32 1, %s15
    %s25 = scalar_select %p22, %s24, %s15
    %p26 = scmp.ge.s32.totalorder %s25, 2
    %s27 = scalar_select %p26, 0, %s25
    %s28 = ssub.s32 %s15, %s27
    %p29 = scmp.eq.s32.totalorder %s28, 0
    %s31 = sadd.s32 %s30, 1
    %s32 = scalar_select %p29, %s30, %s31
    %p35 = pneg %p29
    %p36 = scmp.eq.s32.totalorder %s8, 1
    %p37 = por %p35, %p36
    %p38 = scmp.ne.s32.totalorder %s30, %s33
    %p39 = scmp.eq.s32.totalorder %s8, 0
    %p40 = por %p38, %p39
    %p41 = scmp.ne.s32.totalorder %s30, %s33
    %p42 = scmp.eq.s32.totalorder %s13, 1
    %p43 = por %p41, %p42
    %p44 = scmp.ne.s32.totalorder %s33, %s34
    %p45 = scmp.eq.s32.totalorder %s13, 0
    %p46 = por %p44, %p45
    %p47 = scmp.ne.s32.totalorder %s33, %s34
    %p48 = scmp.eq.s32.totalorder %s14, 1
    %p49 = por %p47, %p48
    %p51 = scmp.ne.s32.totalorder %s34, %s50
    %p52 = scmp.eq.s32.totalorder %s14, 0
    %p53 = por %p51, %p52
    %s54 = ssub.s32 %s16, %s23
    %p55 = scmp.eq.s32.totalorder %s54, 0
    %s57 = sadd.s32 %s56, 1
    %s58 = scalar_select %p55, %s56, %s57
    %p61 = pneg %p55
    %p62 = scmp.eq.s32.totalorder %s8, 1
    %p63 = por %p61, %p62
    %p64 = scmp.ne.s32.totalorder %s56, %s59
    %p65 = scmp.eq.s32.totalorder %s8, 0
    %p66 = por %p64, %p65
    %p67 = scmp.ne.s32.totalorder %s56, %s59
    %p68 = scmp.eq.s32.totalorder %s13, 1
    %p69 = por %p67, %p68
    %p70 = scmp.ne.s32.totalorder %s59, %s60
    %p71 = scmp.eq.s32.totalorder %s13, 0
    %p72 = por %p70, %p71
    %p73 = scmp.ne.s32.totalorder %s59, %s60
    %p74 = scmp.eq.s32.totalorder %s14, 1
    %p75 = por %p73, %p74
    %p77 = scmp.ne.s32.totalorder %s60, %s76
    %p78 = scmp.eq.s32.totalorder %s14, 0
    %p79 = por %p77, %p78
    %s80 = ssub.s32 %s15, %s27
    %s81 = ssub.s32 %s16, %s23
    %s82 = sor.u32 %s80, %s81
    %p83 = scmp.eq.s32.totalorder %s82, 0
    %s85 = sadd.s32 %s84, 1
    %s86 = scalar_select %p83, %s84, %s85
    %p89 = pneg %p83
    %p90 = scmp.eq.s32.totalorder %s8, 1
    %p91 = por %p89, %p90
    %p92 = scmp.ne.s32.totalorder %s84, %s87
    %p93 = scmp.eq.s32.totalorder %s8, 0
    %p94 = por %p92, %p93
    %p95 = scmp.ne.s32.totalorder %s84, %s87
    %p96 = scmp.eq.s32.totalorder %s13, 1
    %p97 = por %p95, %p96
    %p98 = scmp.ne.s32.totalorder %s87, %s88
    %p99 = scmp.eq.s32.totalorder %s13, 0
    %p100 = por %p98, %p99
    %p101 = scmp.ne.s32.totalorder %s87, %s88
    %p102 = scmp.eq.s32.totalorder %s14, 1
    %p103 = por %p101, %p102
    %p105 = scmp.ne.s32.totalorder %s88, %s104
    %p106 = scmp.eq.s32.totalorder %s14, 0
    %p107 = por %p105, %p106
    %p108 = scmp.le.s32.totalorder 1, %s8
    %p109 = scmp.lt.s32.totalorder %s8, 3
    %p110 = pnand %p108, %p109
    %p111 = pneg %p110
    // Predicated region
    $region9: #{encoder_forward.13} parent=5 // pred_check
      _
    $region10: #{encoder_forward.13} parent=5 // pred_check_branch
      %113 = sbr.rel (%p110) target = $region12
    $region11: #{encoder_forward.13} parent=5 // pred_region
      %s114 = ssub.s32 %s8, 1
      // Predicated region
      $region13: #{encoder_forward.13} parent=11 // pred_check
        %p115 = pneg %p72
      $region14: #{encoder_forward.13} parent=11 // pred_check_branch
        %117 = sbr.rel (%p115) target = $region16
      $region15: #{encoder_forward.13} parent=11 // pred_region
        %p118 = scmp.lt.s32.totalorder %s18, 0
        %s119 = scalar_select %p118, %s18, 0
        %s120 = smul.addr %s119, 4
        %s121 = scalar_lea.vmem %s1, %s120
      $region16: #{encoder_forward.13} parent=11 // pred_fallthru
        _
    $region12: #{encoder_forward.13} parent=5 // pred_fallthru
      _
    %p122 = scmp.lt.s32.totalorder %s8, 2
    // Predicated region
    $region17: #{encoder_forward.13} parent=5 // pred_check
      %p123 = pneg %p122
    $region18: #{encoder_forward.13} parent=5 // pred_check_branch
      %125 = sbr.rel (%p123) target = $region20
    $region19: #{encoder_forward.13} parent=5 // pred_region
      // Predicated region
      $region21: #{encoder_forward.13} parent=19 // pred_check
        %p126 = pneg %p40
      $region22: #{encoder_forward.13} parent=19 // pred_check_branch
        %128 = sbr.rel (%p126) target = $region24
      $region23: #{encoder_forward.13} parent=19 // pred_region
        %p129 = scmp.lt.s32.totalorder %s15, 1
        %s130 = scalar_select %p129, %s15, 1
        %s131 = smul.addr %s130, 3
        %s132 = smul.addr %s131, 4
        %s133 = scalar_lea.vmem %s0, %s132
      $region24: #{encoder_forward.13} parent=19 // pred_fallthru
        _
    $region20: #{encoder_forward.13} parent=5 // pred_fallthru
      _
    %p134 = scmp.le.s32.totalorder 1, %s8
    %p135 = scmp.lt.s32.totalorder %s8, 3
    %p136 = pnand %p134, %p135
    %p137 = pneg %p136
    // Predicated region
    $region25: #{encoder_forward.13} parent=5 // pred_check
      _
    $region26: #{encoder_forward.13} parent=5 // pred_check_branch
      %139 = sbr.rel (%p136) target = $region28
    $region27: #{encoder_forward.13} parent=5 // pred_region
      %s140 = ssub.s32 %s8, 1
      %p141 = scmp.lt.s32.totalorder %s17, 1
      %s142 = scalar_select %p141, %s17, 1
      %s143 = smul.addr %s142, 3
      %s144 = smul.addr %s143, 4
      %s145 = scalar_lea.vmem %s0, %s144
      %p146 = pneg %p46
      %p147 = pneg %p43
      %p148 = scmp.lt.s32.totalorder %s18, 0
      %s149 = scalar_select %p148, %s18, 0
      %s150 = smul.addr %s149, 4
      %s151 = scalar_lea.vmem %s1, %s150
      %p152 = pneg %p72
      %p153 = pneg %p69
      %p154 = pneg %p100
      %p155 = pneg %p97
      %p156 = scmp.lt.s32.totalorder %s17, 1
      %s157 = scalar_select %p156, %s17, 1
      %p158 = scmp.lt.s32.totalorder %s18, 0
      %s159 = scalar_select %p158, %s18, 0
      %s160 = smul.addr %s157, 2
      %s161 = sadd.s32 %s159, %s160
      %s162 = smul.addr %s161, 4
      %s163 = scalar_lea.vmem %s2, %s162
      %p164 = scmp.lt.s32.totalorder %s17, 1
      %s165 = scalar_select %p164, %s17, 1
      %s166 = smul.addr %s165, 3
      %s167 = smul.addr %s166, 4
      %s168 = scalar_lea.vmem %s0, %s167
      %p169 = scmp.lt.s32.totalorder %s18, 0
      %s170 = scalar_select %p169, %s18, 0
      %s171 = smul.addr %s170, 4
      %s172 = scalar_lea.vmem %s1, %s171
      %p173 = scmp.lt.s32.totalorder %s17, 1
      %s174 = scalar_select %p173, %s17, 1
      %p175 = scmp.lt.s32.totalorder %s18, 0
      %s176 = scalar_select %p175, %s18, 0
      %s177 = smul.addr %s174, 2
      %s178 = sadd.s32 %s176, %s177
      %s179 = smul.addr %s178, 4
      %s180 = scalar_lea.vmem %s2, %s179
      %v182 = vld [vmem:[%s168] sm:$0xf]
      %v183 = vld [vmem:[%s168 + $0x4] sm:$0xf]
      %v184 = vld [vmem:[%s168 + $0x8] sm:$0x1]
      %v185 = vld [vmem:[%s172] sm:$0xf]
      %v189 = vunpack.c.l.b16 %v182
      %v190 = vunpack.c.l.b16 %v183
      %v191 = vunpack.c.l.b16 %v184
      %v192 = vpack.c.b16 %v190, %v189
      %v193 = vpack.c.b16 %v191, %v191
      %vm194 = vcmask 64512
      %v196 = vsel %vm194, %v192, 0
      %v199 = vsel %vm194, %v193, 0
      %vm201 = vcmask 1043456
      %v203 = vsel %vm201, %v185, 0
      %205 = vmatprep.subr.bf16.mxu0 0
      %206 = vmatpush1.bf16.msra.mxu0 %v203
      %207 = vmatprep.subr.bf16.mxu0 0
      %208 = vmatpush1.bf16.msra.mxu0 0
      %209 = vmatprep.subr.bf16.mxu0 0
      %210 = vmatpush1.bf16.msra.mxu0 0
      %211 = vmatprep.subr.bf16.mxu0 0
      %212 = vmatpush1.bf16.msra.mxu0 0
      %213 = vmatprep.subr.bf16.mxu0 0
      %214 = vmatpush1.bf16.msra.mxu0 0
      %215 = vmatprep.subr.bf16.mxu0 0
      %216 = vmatpush1.bf16.msra.mxu0 0
      %217 = vmatprep.subr.bf16.mxu0 0
      %218 = vmatpush1.bf16.msra.mxu0 0
      %219 = vmatprep.subr.bf16.mxu0 0
      %220 = vmatpush1.bf16.msra.mxu0 0
      %221 = vmatprep.subr.bf16.mxu0 0
      %222 = vmatpush1.bf16.msra.mxu0 0
      %223 = vmatprep.subr.bf16.mxu0 0
      %224 = vmatpush1.bf16.msra.mxu0 0
      %225 = vmatprep.subr.bf16.mxu0 0
      %226 = vmatpush1.bf16.msra.mxu0 0
      %227 = vmatprep.subr.bf16.mxu0 0
      %228 = vmatpush1.bf16.msra.mxu0 0
      %229 = vmatprep.subr.bf16.mxu0 0
      %230 = vmatpush1.bf16.msra.mxu0 0
      %231 = vmatprep.subr.bf16.mxu0 0
      %232 = vmatpush1.bf16.msra.mxu0 0
      %233 = vmatprep.subr.bf16.mxu0 0
      %234 = vmatpush1.bf16.msra.mxu0 0
      %235 = vmatprep.subr.bf16.mxu0 0
      %236 = vmatpush1.bf16.msra.mxu0 0
      %237 = vmatprep.mubr.bf16.mxu0 0
      %238 = vmatmul.mubr.bf16.gmra.mrb[0].mxu0 %v196
      %v239 = vpop.f32.mrb[0].mxu0
      %v240 = vadd.f32 0.0, %v239
      %v241 = vpop.f32.mrb[0].mxu0
      %v242 = vpop.f32.mrb[0].mxu0
      %v243 = vadd.f32 0.0, %v242
      %v244 = vpop.f32.mrb[0].mxu0
      %245 = vmatprep.mubr.bf16.mxu0 0
      %246 = vmatmul.mubr.bf16.gmra.mrb[0].mxu0 %v199
      %v247 = vpop.f32.mrb[0].mxu0
      %v248 = vpop.f32.mrb[0].mxu0
      %v249 = vpop.f32.mrb[0].mxu0
      %v250 = vpop.f32.mrb[0].mxu0
      %251 = vdwg.mxu0
      %s252 = scalar_lea.vmem %s172, 4
      %v253 = vld [vmem:[%s252] sm:$0xf]
      %v255 = vsel %vm201, %v253, 0
      %257 = vmatprep.subr.bf16.mxu0 0
      %258 = vmatpush1.bf16.msra.mxu0 %v255
      %259 = vmatprep.subr.bf16.mxu0 0
      %260 = vmatpush1.bf16.msra.mxu0 0
      %261 = vmatprep.subr.bf16.mxu0 0
      %262 = vmatpush1.bf16.msra.mxu0 0
      %263 = vmatprep.subr.bf16.mxu0 0
      %264 = vmatpush1.bf16.msra.mxu0 0
      %265 = vmatprep.subr.bf16.mxu0 0
      %266 = vmatpush1.bf16.msra.mxu0 0
      %267 = vmatprep.subr.bf16.mxu0 0
      %268 = vmatpush1.bf16.msra.mxu0 0
      %269 = vmatprep.subr.bf16.mxu0 0
      %270 = vmatpush1.bf16.msra.mxu0 0
      %271 = vmatprep.subr.bf16.mxu0 0
      %272 = vmatpush1.bf16.msra.mxu0 0
      %273 = vmatprep.subr.bf16.mxu0 0
      %274 = vmatpush1.bf16.msra.mxu0 0
      %275 = vmatprep.subr.bf16.mxu0 0
      %276 = vmatpush1.bf16.msra.mxu0 0
      %277 = vmatprep.subr.bf16.mxu0 0
      %278 = vmatpush1.bf16.msra.mxu0 0
      %279 = vmatprep.subr.bf16.mxu0 0
      %280 = vmatpush1.bf16.msra.mxu0 0
      %281 = vmatprep.subr.bf16.mxu0 0
      %282 = vmatpush1.bf16.msra.mxu0 0
      %283 = vmatprep.subr.bf16.mxu0 0
      %284 = vmatpush1.bf16.msra.mxu0 0
      %285 = vmatprep.subr.bf16.mxu0 0
      %286 = vmatpush1.bf16.msra.mxu0 0
      %287 = vmatprep.subr.bf16.mxu0 0
      %288 = vmatpush1.bf16.msra.mxu0 0
      %289 = vmatprep.mubr.bf16.mxu0 0
      %290 = vmatmul.mubr.bf16.gmra.mrb[0].mxu0 %v196
      %v291 = vpop.f32.mrb[0].mxu0
      %v292 = vadd.f32 0.0, %v291
      %v293 = vpop.f32.mrb[0].mxu0
      %v294 = vpop.f32.mrb[0].mxu0
      %v295 = vadd.f32 0.0, %v294
      %v296 = vpop.f32.mrb[0].mxu0
      %297 = vmatprep.mubr.bf16.mxu0 0
      %298 = vmatmul.mubr.bf16.gmra.mrb[0].mxu0 %v199
      %v299 = vpop.f32.mrb[0].mxu0
      %v300 = vadd.f32 0.0, %v299
      %v301 = vpop.f32.mrb[0].mxu0
      %v302 = vpop.f32.mrb[0].mxu0
      %v303 = vpop.f32.mrb[0].mxu0
      %304 = vdwg.mxu0
      %s305 = scalar_lea.vmem %s172, 8
      %v306 = vld [vmem:[%s305] sm:$0xf]
      %v308 = vsel %vm201, %v306, 0
      %310 = vmatprep.subr.bf16.mxu0 0
      %311 = vmatpush1.bf16.msra.mxu0 %v308
      %312 = vmatprep.subr.bf16.mxu0 0
      %313 = vmatpush1.bf16.msra.mxu0 0
      %314 = vmatprep.subr.bf16.mxu0 0
      %315 = vmatpush1.bf16.msra.mxu0 0
      %316 = vmatprep.subr.bf16.mxu0 0
      %317 = vmatpush1.bf16.msra.mxu0 0
      %318 = vmatprep.subr.bf16.mxu0 0
      %319 = vmatpush1.bf16.msra.mxu0 0
      %320 = vmatprep.subr.bf16.mxu0 0
      %321 = vmatpush1.bf16.msra.mxu0 0
      %322 = vmatprep.subr.bf16.mxu0 0
      %323 = vmatpush1.bf16.msra.mxu0 0
      %324 = vmatprep.subr.bf16.mxu0 0
      %325 = vmatpush1.bf16.msra.mxu0 0
      %326 = vmatprep.subr.bf16.mxu0 0
      %327 = vmatpush1.bf16.msra.mxu0 0
      %328 = vmatprep.subr.bf16.mxu0 0
      %329 = vmatpush1.bf16.msra.mxu0 0
      %330 = vmatprep.subr.bf16.mxu0 0
      %331 = vmatpush1.bf16.msra.mxu0 0
      %332 = vmatprep.subr.bf16.mxu0 0
      %333 = vmatpush1.bf16.msra.mxu0 0
      %334 = vmatprep.subr.bf16.mxu0 0
      %335 = vmatpush1.bf16.msra.mxu0 0
      %336 = vmatprep.subr.bf16.mxu0 0
      %337 = vmatpush1.bf16.msra.mxu0 0
      %338 = vmatprep.subr.bf16.mxu0 0
      %339 = vmatpush1.bf16.msra.mxu0 0
      %340 = vmatprep.subr.bf16.mxu0 0
      %341 = vmatpush1.bf16.msra.mxu0 0
      %342 = vmatprep.mubr.bf16.mxu0 0
      %343 = vmatmul.mubr.bf16.gmra.mrb[0].mxu0 %v196
      %v344 = vpop.f32.mrb[0].mxu0
      %v345 = vadd.f32 0.0, %v344
      %v346 = vpop.f32.mrb[0].mxu0
      %v347 = vpop.f32.mrb[0].mxu0
      %v348 = vadd.f32 0.0, %v347
      %v349 = vpop.f32.mrb[0].mxu0
      %350 = vmatprep.mubr.bf16.mxu0 0
      %351 = vmatmul.mubr.bf16.gmra.mrb[0].mxu0 %v199
      %v352 = vpop.f32.mrb[0].mxu0
      %v353 = vadd.f32 0.0, %v352
      %v354 = vpop.f32.mrb[0].mxu0
      %v355 = vpop.f32.mrb[0].mxu0
      %v356 = vpop.f32.mrb[0].mxu0
      %357 = vdwg.mxu0
      %vm361 = vcmask 1046528
      %v362 = vrot.slane %v292, 1
      %v363 = vrot.slane %v295, 1
      %v364 = vsel %vm361, %v362, %v363
      %v365 = vrot.slane %v300, 1
      %v366 = vsel %vm361, %v363, %v365
      %v369 = vadd.f32 %v240, %v364
      %v370 = vadd.f32 %v243, %v366
      %vm374 = vcmask 1045504
      %v375 = vrot.slane %v345, 2
      %v376 = vrot.slane %v348, 2
      %v377 = vsel %vm374, %v375, %v376
      %v378 = vrot.slane %v353, 2
      %v379 = vsel %vm374, %v376, %v378
      %v382 = vadd.f32 %v369, %v377
      %v383 = vadd.f32 %v370, %v379
      %v384 = vmul.f32 %v382, 0.5
      %v385 = vmul.f32 %v383, 0.5
      %v386 = vmul.f32 %v382, 0.70710677
      %v387 = vmul.f32 %v383, 0.70710677
      %v388 = verf.f32.pop %v386
      %v389 = verf.f32.pop %v387
      %v390 = vadd.f32 %v388, 1.0
      %v391 = vadd.f32 %v389, 1.0
      %v392 = vmul.f32 %v384, %v390
      %v393 = vmul.f32 %v385, %v391
      %v394 = vpack.c.bf16 %v393, %v392
      %v396 = vunpack.c.l.b16 %v394
      %v397 = vunpack.c.h.b16 %v394
      %v398 = vpack.c.b16 %v396, %v396
      %v399 = vpack.c.b16 %v397, %v397
      %vm402 = vcmask 257024
      %403 = vst.msk [vmem:[%s180] sm:$0xf] %vm402, %v398
      %404 = vst.msk [vmem:[%s180 + $0x4] sm:$0xf] %vm402, %v399
      %p405 = scmp.lt.s32.totalorder %s17, 1
      %s406 = scalar_select %p405, %s17, 1
      %p407 = scmp.lt.s32.totalorder %s18, 0
      %s408 = scalar_select %p407, %s18, 0
      %s409 = smul.addr %s406, 2
      %s410 = sadd.s32 %s408, %s409
      %s411 = smul.addr %s410, 4
      %s412 = scalar_lea.vmem %s2, %s411
      // Predicated region
      $region29: #{encoder_forward.13} parent=27 // pred_check
        %p413 = pneg %p97
      $region30: #{encoder_forward.13} parent=27 // pred_check_branch
        %415 = sbr.rel (%p413) target = $region32
      $region31: #{encoder_forward.13} parent=27 // pred_region
        _
      $region32: #{encoder_forward.13} parent=27 // pred_fallthru
        _
    $region28: #{encoder_forward.13} parent=5 // pred_fallthru
      _
    %p416 = scmp.le.s32.totalorder 2, %s8
    // Predicated region
    $region33: #{encoder_forward.13} parent=5 // pred_check
      %p417 = pneg %p416
    $region34: #{encoder_forward.13} parent=5 // pred_check_branch
      %419 = sbr.rel (%p417) target = $region36
    $region35: #{encoder_forward.13} parent=5 // pred_region
      %s420 = ssub.s32 %s8, 2
      // Predicated region
      $region37: #{encoder_forward.13} parent=35 // pred_check
        %p421 = pneg %p103
      $region38: #{encoder_forward.13} parent=35 // pred_check_branch
        %423 = sbr.rel (%p421) target = $region40
      $region39: #{encoder_forward.13} parent=35 // pred_region
        %p424 = scmp.lt.s32.totalorder %s19, 1
        %s425 = scalar_select %p424, %s19, 1
        %p426 = scmp.lt.s32.totalorder %s20, 0
        %s427 = scalar_select %p426, %s20, 0
        %s428 = smul.addr %s425, 2
        %s429 = sadd.s32 %s427, %s428
        %s430 = smul.addr %s429, 4
        %s431 = scalar_lea.vmem %s2, %s430
      $region40: #{encoder_forward.13} parent=35 // pred_fallthru
        _
    $region36: #{encoder_forward.13} parent=5 // pred_fallthru
      _
  $region6: #{encoder_forward.13} parent=0 // loop_footer
    %s12 = sadd.s32 1, %s8
  $region7: #{encoder_forward.13} parent=0 // loop_footer_branch
    %7 = sbr.rel target = $region3
  $region8: #{encoder_forward.13} parent=0 // loop_exit
    _

// kernel: encoder_forward.16
$region0: #{encoder_forward.16}
  #allocation0 [shape = 'u32[]', space=smem, size = 0x4, offset = 0x4, fixed_abs, tag = 'smem constant byte address 0x4 - core index']
  #allocation1 [shape = 'u32[144,128]{1,0:T(1,128)}', space=vmem, size = 0x12000, scoped, tag = 'internal scratch']
  #allocation2 [shape = 'f32[16,1]{1,0:T(8,128)}', space=vmem, size = 0x2000, scoped, tag = 'scratch operand']
  #allocation3 [shape = 'f32[16,1]{1,0:T(8,128)}', space=vmem, size = 0x2000, scoped, tag = 'scratch operand']
  #allocation4 [shape = 'f32[16,8]{1,0:T(8,128)}', space=vmem, size = 0x2000, scoped, tag = 'scratch operand']
  %s0 = inlined_call_operand.vmem [shape: bf16[8,16,8], index: 0, kind: input, shape index: {}]
  %s1 = inlined_call_operand.vmem [shape: bf16[8,16,8], index: 1, kind: input, shape index: {}]
  %s2 = inlined_call_operand.vmem [shape: bf16[8,16,8], index: 2, kind: input, shape index: {}]
  %s3 = inlined_call_operand.vmem [shape: bf16[8,16,8], index: 3, kind: output, shape index: {}]
  %s4 = sld [smem:[#allocation0]]
  $region53: #{encoder_forward.16} parent=0
    _
  %s6 = ssub.s32 1, %s4
  %s7 = scalar_select 0, %s6, %s4
  loop: start=0, step=1, limit=10
  $region2: #{encoder_forward.16} parent=0 // loop_pre_header
    _
  $region3: #{encoder_forward.16} parent=0 // loop_header
    %s9 = sphi 0, %s13
    %p10 = scmp.ge.s32.totalorder %s9, 10
    %s16 = sphi 0, %s35
    %s17 = sphi 0, %s31
    %s18 = sphi 0, %s27
    %s19 = sphi 0, %s16
    %s20 = sphi 0, %s17
    %s21 = sphi 0, %s18
    %s22 = sphi 0, %s19
    %s23 = sphi 0, %s20
    %s24 = sphi 0, %s21
    %s40 = sphi 0, %s42
    %s43 = sphi 0, %s40
    %s44 = sphi 0, %s43
    %s60 = sphi 0, %s44
    %s68 = sphi 0, %s70
    %s71 = sphi 0, %s68
    %s72 = sphi 0, %s71
    %s88 = sphi 0, %s72
    %s96 = sphi 0, %s98
    %s99 = sphi 0, %s96
    %s100 = sphi 0, %s99
    %s116 = sphi 0, %s100
    %s124 = sphi 0, %s126
    %s127 = sphi 0, %s124
    %s128 = sphi 0, %s127
    %s144 = sphi 0, %s128
  $region4: #{encoder_forward.16} parent=0 // loop_header_branch
    %12 = sbr.rel (%p10) target = $region8
  $region5: #{encoder_forward.16} parent=0 // loop_body
    %s14 = ssub.s32 %s9, 1
    %s15 = ssub.s32 %s9, 2
    %s25 = sadd.s32 1, %s18
    %p26 = scmp.ge.s32.totalorder %s25, 1
    %s27 = scalar_select %p26, 0, %s25
    %s28 = sadd.s32 1, %s17
    %s29 = scalar_select %p26, %s28, %s17
    %p30 = scmp.ge.s32.totalorder %s29, 1
    %s31 = scalar_select %p30, 0, %s29
    %s32 = sadd.s32 1, %s16
    %s33 = scalar_select %p30, %s32, %s16
    %p34 = scmp.ge.s32.totalorder %s33, 8
    %s35 = scalar_select %p34, 0, %s33
    %s36 = ssub.s32 %s16, %s35
    %s37 = ssub.s32 %s17, %s31
    %s38 = sor.u32 %s36, %s37
    %p39 = scmp.eq.s32.totalorder %s38, 0
    %s41 = sadd.s32 %s40, 1
    %s42 = scalar_select %p39, %s40, %s41
    %p45 = pneg %p39
    %p46 = scmp.eq.s32.totalorder %s9, 7
    %p47 = por %p45, %p46
    %p48 = scmp.ne.s32.totalorder %s40, %s43
    %p49 = scmp.eq.s32.totalorder %s9, 0
    %p50 = por %p48, %p49
    %p51 = scmp.ne.s32.totalorder %s40, %s43
    %p52 = scmp.eq.s32.totalorder %s14, 7
    %p53 = por %p51, %p52
    %p54 = scmp.ne.s32.totalorder %s43, %s44
    %p55 = scmp.eq.s32.totalorder %s14, 0
    %p56 = por %p54, %p55
    %p57 = scmp.ne.s32.totalorder %s43, %s44
    %p58 = scmp.eq.s32.totalorder %s15, 7
    %p59 = por %p57, %p58
    %p61 = scmp.ne.s32.totalorder %s44, %s60
    %p62 = scmp.eq.s32.totalorder %s15, 0
    %p63 = por %p61, %p62
    %s64 = ssub.s32 %s16, %s35
    %s65 = ssub.s32 %s18, %s27
    %s66 = sor.u32 %s64, %s65
    %p67 = scmp.eq.s32.totalorder %s66, 0
    %s69 = sadd.s32 %s68, 1
    %s70 = scalar_select %p67, %s68, %s69
    %p73 = pneg %p67
    %p74 = scmp.eq.s32.totalorder %s9, 7
    %p75 = por %p73, %p74
    %p76 = scmp.ne.s32.totalorder %s68, %s71
    %p77 = scmp.eq.s32.totalorder %s9, 0
    %p78 = por %p76, %p77
    %p79 = scmp.ne.s32.totalorder %s68, %s71
    %p80 = scmp.eq.s32.totalorder %s14, 7
    %p81 = por %p79, %p80
    %p82 = scmp.ne.s32.totalorder %s71, %s72
    %p83 = scmp.eq.s32.totalorder %s14, 0
    %p84 = por %p82, %p83
    %p85 = scmp.ne.s32.totalorder %s71, %s72
    %p86 = scmp.eq.s32.totalorder %s15, 7
    %p87 = por %p85, %p86
    %p89 = scmp.ne.s32.totalorder %s72, %s88
    %p90 = scmp.eq.s32.totalorder %s15, 0
    %p91 = por %p89, %p90
    %s92 = ssub.s32 %s16, %s35
    %s93 = ssub.s32 %s18, %s27
    %s94 = sor.u32 %s92, %s93
    %p95 = scmp.eq.s32.totalorder %s94, 0
    %s97 = sadd.s32 %s96, 1
    %s98 = scalar_select %p95, %s96, %s97
    %p101 = pneg %p95
    %p102 = scmp.eq.s32.totalorder %s9, 7
    %p103 = por %p101, %p102
    %p104 = scmp.ne.s32.totalorder %s96, %s99
    %p105 = scmp.eq.s32.totalorder %s9, 0
    %p106 = por %p104, %p105
    %p107 = scmp.ne.s32.totalorder %s96, %s99
    %p108 = scmp.eq.s32.totalorder %s14, 7
    %p109 = por %p107, %p108
    %p110 = scmp.ne.s32.totalorder %s99, %s100
    %p111 = scmp.eq.s32.totalorder %s14, 0
    %p112 = por %p110, %p111
    %p113 = scmp.ne.s32.totalorder %s99, %s100
    %p114 = scmp.eq.s32.totalorder %s15, 7
    %p115 = por %p113, %p114
    %p117 = scmp.ne.s32.totalorder %s100, %s116
    %p118 = scmp.eq.s32.totalorder %s15, 0
    %p119 = por %p117, %p118
    %s120 = ssub.s32 %s16, %s35
    %s121 = ssub.s32 %s17, %s31
    %s122 = sor.u32 %s120, %s121
    %p123 = scmp.eq.s32.totalorder %s122, 0
    %s125 = sadd.s32 %s124, 1
    %s126 = scalar_select %p123, %s124, %s125
    %p129 = pneg %p123
    %p130 = scmp.eq.s32.totalorder %s9, 7
    %p131 = por %p129, %p130
    %p132 = scmp.ne.s32.totalorder %s124, %s127
    %p133 = scmp.eq.s32.totalorder %s9, 0
    %p134 = por %p132, %p133
    %p135 = scmp.ne.s32.totalorder %s124, %s127
    %p136 = scmp.eq.s32.totalorder %s14, 7
    %p137 = por %p135, %p136
    %p138 = scmp.ne.s32.totalorder %s127, %s128
    %p139 = scmp.eq.s32.totalorder %s14, 0
    %p140 = por %p138, %p139
    %p141 = scmp.ne.s32.totalorder %s127, %s128
    %p142 = scmp.eq.s32.totalorder %s15, 7
    %p143 = por %p141, %p142
    %p145 = scmp.ne.s32.totalorder %s128, %s144
    %p146 = scmp.eq.s32.totalorder %s15, 0
    %p147 = por %p145, %p146
    %p148 = scmp.le.s32.totalorder 1, %s9
    %p149 = scmp.lt.s32.totalorder %s9, 9
    %p150 = pnand %p148, %p149
    %p151 = pneg %p150
    // Predicated region
    $region9: #{encoder_forward.16} parent=5 // pred_check
      _
    $region10: #{encoder_forward.16} parent=5 // pred_check_branch
      %153 = sbr.rel (%p150) target = $region12
    $region11: #{encoder_forward.16} parent=5 // pred_region
      %s154 = ssub.s32 %s9, 1
    $region12: #{encoder_forward.16} parent=5 // pred_fallthru
      _
    %p155 = scmp.lt.s32.totalorder %s9, 8
    // Predicated region
    $region13: #{encoder_forward.16} parent=5 // pred_check
      %p156 = pneg %p155
    $region14: #{encoder_forward.16} parent=5 // pred_check_branch
      %158 = sbr.rel (%p156) target = $region16
    $region15: #{encoder_forward.16} parent=5 // pred_region
      // Predicated region
      $region17: #{encoder_forward.16} parent=15 // pred_check
        %p159 = pneg %p50
      $region18: #{encoder_forward.16} parent=15 // pred_check_branch
        %161 = sbr.rel (%p159) target = $region20
      $region19: #{encoder_forward.16} parent=15 // pred_region
        %s162 = smul.u32 2, %s17
        %p163 = scmp.lt.s32.totalorder %s16, 7
        %s164 = scalar_select %p163, %s16, 7
        %p165 = scmp.lt.s32.totalorder %s162, 1
        %s166 = scalar_select %p165, %s162, 1
        %s167 = smul.addr %s164, 2
        %s168 = sadd.s32 %s166, %s167
        %s169 = smul.addr %s168, 4
        %s170 = scalar_lea.vmem %s0, %s169
        %s171 = smul.u32 2, %s17
      $region20: #{encoder_forward.16} parent=15 // pred_fallthru
        _
      // Predicated region
      $region21: #{encoder_forward.16} parent=15 // pred_check
        %p172 = pneg %p78
      $region22: #{encoder_forward.16} parent=15 // pred_check_branch
        %174 = sbr.rel (%p172) target = $region24
      $region23: #{encoder_forward.16} parent=15 // pred_region
        %s175 = smul.u32 2, %s18
        %p176 = scmp.lt.s32.totalorder %s16, 7
        %s177 = scalar_select %p176, %s16, 7
        %p178 = scmp.lt.s32.totalorder %s175, 1
        %s179 = scalar_select %p178, %s175, 1
        %s180 = smul.addr %s177, 2
        %s181 = sadd.s32 %s179, %s180
        %s182 = smul.addr %s181, 4
        %s183 = scalar_lea.vmem %s1, %s182
        %s184 = smul.u32 2, %s18
      $region24: #{encoder_forward.16} parent=15 // pred_fallthru
        _
      // Predicated region
      $region25: #{encoder_forward.16} parent=15 // pred_check
        %p185 = pneg %p106
      $region26: #{encoder_forward.16} parent=15 // pred_check_branch
        %187 = sbr.rel (%p185) target = $region28
      $region27: #{encoder_forward.16} parent=15 // pred_region
        %s188 = smul.u32 2, %s18
        %p189 = scmp.lt.s32.totalorder %s16, 7
        %s190 = scalar_select %p189, %s16, 7
        %p191 = scmp.lt.s32.totalorder %s188, 1
        %s192 = scalar_select %p191, %s188, 1
        %s193 = smul.addr %s190, 2
        %s194 = sadd.s32 %s192, %s193
        %s195 = smul.addr %s194, 4
        %s196 = scalar_lea.vmem %s2, %s195
        %s197 = smul.u32 2, %s18
      $region28: #{encoder_forward.16} parent=15 // pred_fallthru
        _
    $region16: #{encoder_forward.16} parent=5 // pred_fallthru
      _
    %p198 = scmp.le.s32.totalorder 1, %s9
    %p199 = scmp.lt.s32.totalorder %s9, 9
    %p200 = pnand %p198, %p199
    %p201 = pneg %p200
    // Predicated region
    $region29: #{encoder_forward.16} parent=5 // pred_check
      _
    $region30: #{encoder_forward.16} parent=5 // pred_check_branch
      %203 = sbr.rel (%p200) target = $region32
    $region31: #{encoder_forward.16} parent=5 // pred_region
      %s204 = ssub.s32 %s9, 1
      %s205 = smul.u32 2, %s20
      %p206 = scmp.lt.s32.totalorder %s19, 7
      %s207 = scalar_select %p206, %s19, 7
      %p208 = scmp.lt.s32.totalorder %s205, 1
      %s209 = scalar_select %p208, %s205, 1
      %s210 = smul.addr %s207, 2
      %s211 = sadd.s32 %s209, %s210
      %s212 = smul.addr %s211, 4
      %s213 = scalar_lea.vmem %s0, %s212
      %p214 = pneg %p56
      %p215 = pneg %p53
      %s216 = smul.u32 2, %s21
      %p217 = scmp.lt.s32.totalorder %s19, 7
      %s218 = scalar_select %p217, %s19, 7
      %p219 = scmp.lt.s32.totalorder %s216, 1
      %s220 = scalar_select %p219, %s216, 1
      %s221 = smul.addr %s218, 2
      %s222 = sadd.s32 %s220, %s221
      %s223 = smul.addr %s222, 4
      %s224 = scalar_lea.vmem %s1, %s223
      %p225 = pneg %p84
      %p226 = pneg %p81
      %s227 = smul.u32 2, %s21
      %p228 = scmp.lt.s32.totalorder %s19, 7
      %s229 = scalar_select %p228, %s19, 7
      %p230 = scmp.lt.s32.totalorder %s227, 1
      %s231 = scalar_select %p230, %s227, 1
      %s232 = smul.addr %s229, 2
      %s233 = sadd.s32 %s231, %s232
      %s234 = smul.addr %s233, 4
      %s235 = scalar_lea.vmem %s2, %s234
      %p236 = pneg %p112
      %p237 = pneg %p109
      %p238 = pneg %p140
      %p239 = pneg %p137
      %s240 = smul.u32 2, %s20
      %p241 = scmp.lt.s32.totalorder %s19, 7
      %s242 = scalar_select %p241, %s19, 7
      %p243 = scmp.lt.s32.totalorder %s240, 1
      %s244 = scalar_select %p243, %s240, 1
      %s245 = smul.addr %s242, 2
      %s246 = sadd.s32 %s244, %s245
      %s247 = smul.addr %s246, 4
      %s248 = scalar_lea.vmem %s3, %s247
      %s249 = smul.u32 2, %s20
      %p250 = scmp.lt.s32.totalorder %s19, 7
      %s251 = scalar_select %p250, %s19, 7
      %p252 = scmp.lt.s32.totalorder %s249, 1
      %s253 = scalar_select %p252, %s249, 1
      %s254 = smul.addr %s251, 2
      %s255 = sadd.s32 %s253, %s254
      %s256 = smul.addr %s255, 4
      %s257 = scalar_lea.vmem %s0, %s256
      %s258 = smul.u32 2, %s20
      %s259 = smul.u32 2, %s21
      %p260 = scmp.lt.s32.totalorder %s19, 7
      %s261 = scalar_select %p260, %s19, 7
      %p262 = scmp.lt.s32.totalorder %s259, 1
      %s263 = scalar_select %p262, %s259, 1
      %s264 = smul.addr %s261, 2
      %s265 = sadd.s32 %s263, %s264
      %s266 = smul.addr %s265, 4
      %s267 = scalar_lea.vmem %s1, %s266
      %s268 = smul.u32 2, %s21
      %s269 = smul.u32 2, %s21
      %p270 = scmp.lt.s32.totalorder %s19, 7
      %s271 = scalar_select %p270, %s19, 7
      %p272 = scmp.lt.s32.totalorder %s269, 1
      %s273 = scalar_select %p272, %s269, 1
      %s274 = smul.addr %s271, 2
      %s275 = sadd.s32 %s273, %s274
      %s276 = smul.addr %s275, 4
      %s277 = scalar_lea.vmem %s2, %s276
      %s278 = smul.u32 2, %s21
      %s279 = smul.u32 2, %s20
      %p280 = scmp.lt.s32.totalorder %s19, 7
      %s281 = scalar_select %p280, %s19, 7
      %p282 = scmp.lt.s32.totalorder %s279, 1
      %s283 = scalar_select %p282, %s279, 1
      %s284 = smul.addr %s281, 2
      %s285 = sadd.s32 %s283, %s284
      %s286 = smul.addr %s285, 4
      %s287 = scalar_lea.vmem %s3, %s286
      %s288 = smul.u32 2, %s20
      %p290 = scmp.eq.s32.totalorder %s21, 0
      // Predicated region
      $region33: #{encoder_forward.16} parent=31 // pred_check
        %p291 = pneg %p290
      $region34: #{encoder_forward.16} parent=31 // pred_check_branch
        %293 = sbr.rel (%p291) target = $region36
      $region35: #{encoder_forward.16} parent=31 // pred_region
        %vm294 = vcmask 7168
        %295 = vst.msk [vmem:[#allocation2] sm:$0xff] %vm294, -inf
        %296 = vst.msk [vmem:[#allocation2 + $0x8] sm:$0xff] %vm294, -inf
        %297 = vst.msk [vmem:[#allocation3] sm:$0xff] %vm294, 0.0
        %298 = vst.msk [vmem:[#allocation3 + $0x8] sm:$0xff] %vm294, 0.0
        %vm299 = vcmask 64512
        %300 = vst.msk [vmem:[#allocation4] sm:$0xff] %vm299, 0.0
        %301 = vst.msk [vmem:[#allocation4 + $0x8] sm:$0xff] %vm299, 0.0
      $region36: #{encoder_forward.16} parent=31 // pred_fallthru
        _
      %v302 = vld [vmem:[%s257] sm:$0xf]
      %v303 = vld [vmem:[%s257 + $0x4] sm:$0xf]
      %v304 = vld [vmem:[%s267] sm:$0xf]
      %v305 = vld [vmem:[%s267 + $0x4] sm:$0xf]
      %v308 = vunpack.c.l.b16 %v302
      %v309 = vunpack.c.l.b16 %v303
      %v310 = vpack.c.b16 %v309, %v308
      %v313 = vunpack.c.l.b16 %v304
      %v314 = vunpack.c.l.b16 %v305
      %v315 = vpack.c.b16 %v314, %v313
      %vm316 = vcmask 64512
      %v318 = vsel %vm316, %v310, 0
      %v321 = vsel %vm316, %v315, 0
      %323 = vmatprep.subr.bf16.mxu0 0
      %324 = vmatpush1.bf16.xpose.msra.mxu0 %v321
      %325 = vmatprep.subr.bf16.mxu0 0
      %326 = vmatpush1.bf16.xpose.msra.mxu0 0
      %327 = vmatprep.subr.bf16.mxu0 0
      %328 = vmatpush1.bf16.xpose.msra.mxu0 0
      %329 = vmatprep.subr.bf16.mxu0 0
      %330 = vmatpush1.bf16.xpose.msra.mxu0 0
      %331 = vmatprep.subr.bf16.mxu0 0
      %332 = vmatpush1.bf16.xpose.msra.mxu0 0
      %333 = vmatprep.subr.bf16.mxu0 0
      %334 = vmatpush1.bf16.xpose.msra.mxu0 0
      %335 = vmatprep.subr.bf16.mxu0 0
      %336 = vmatpush1.bf16.xpose.msra.mxu0 0
      %337 = vmatprep.subr.bf16.mxu0 0
      %338 = vmatpush1.bf16.xpose.msra.mxu0 0
      %339 = vmatprep.subr.bf16.mxu0 0
      %340 = vmatpush1.bf16.xpose.msra.mxu0 0
      %341 = vmatprep.subr.bf16.mxu0 0
      %342 = vmatpush1.bf16.xpose.msra.mxu0 0
      %343 = vmatprep.subr.bf16.mxu0 0
      %344 = vmatpush1.bf16.xpose.msra.mxu0 0
      %345 = vmatprep.subr.bf16.mxu0 0
      %346 = vmatpush1.bf16.xpose.msra.mxu0 0
      %347 = vmatprep.subr.bf16.mxu0 0
      %348 = vmatpush1.bf16.xpose.msra.mxu0 0
      %349 = vmatprep.subr.bf16.mxu0 0
      %350 = vmatpush1.bf16.xpose.msra.mxu0 0
      %351 = vmatprep.subr.bf16.mxu0 0
      %352 = vmatpush1.bf16.xpose.msra.mxu0 0
      %353 = vmatprep.subr.bf16.mxu0 0
      %354 = vmatpush1.bf16.xpose.msra.mxu0 0
      %355 = vmatprep.mubr.bf16.mxu0 0
      %356 = vmatmul.mubr.bf16.gmra.mrb[0].mxu0 %v318
      %v357 = vpop.f32.mrb[0].mxu0
      %v358 = vadd.f32 0.0, %v357
      %v359 = vpop.f32.mrb[0].mxu0
      %v360 = vpop.f32.mrb[0].mxu0
      %v361 = vadd.f32 0.0, %v360
      %v362 = vpop.f32.mrb[0].mxu0
      %363 = vdwg.mxu0
      %v364 = vld [vmem:[#allocation2] sm:$0xff]
      %v365 = vld [vmem:[#allocation2 + $0x8] sm:$0xff]
      %vm366 = vcmask 130048
      %v367 = vsel %vm366, %v358, -inf
      %368 = vmax.xlane.f32.xlu0 %v367
      %v369 = vpop.xlane.xlu0 %368
      %v370 = vsel %vm366, %v361, -inf
      %371 = vmax.xlane.f32.xlu0 %v370
      %v372 = vpop.xlane.xlu0 %371
      %v373 = vmax.f32 %v364, %v369
      %v374 = vmax.f32 %v365, %v372
      %v375 = vsub.f32 %v364, %v373
      %v376 = vsub.f32 %v365, %v374
      %v377 = vmul.f32 %v375, 1.442695
      %v378 = vpow.pop %v377
      %v379 = vmul.f32 %v376, 1.442695
      %v380 = vpow.pop %v379
      %382 = vset.pattern.permute.xlu0 0
      %383 = vperm.xlu0 %382, %v373
      %v384 = vpop.permute.xlu0 %383
      %387 = vset.pattern.permute.xlu0 0
      %388 = vperm.xlu0 %387, %v374
      %v389 = vpop.permute.xlu0 %388
      %v391 = vsub.f32 %v358, %v384
      %v392 = vsub.f32 %v361, %v389
      %v393 = vmul.f32 %v391, 1.442695
      %v394 = vpow.pop %v393
      %v395 = vmul.f32 %v392, 1.442695
      %v396 = vpow.pop %v395
      %v397 = vld [vmem:[#allocation3] sm:$0xff]
      %v398 = vld [vmem:[#allocation3 + $0x8] sm:$0xff]
      %v399 = vmul.f32 %v378, %v397
      %v400 = vmul.f32 %v380, %v398
      %v401 = vsel %vm366, %v394, 0.0
      %402 = vadd.xlane.f32.xlu0 %v401
      %v403 = vpop.xlane.xlu0 %402
      %v404 = vsel %vm366, %v396, 0.0
      %405 = vadd.xlane.f32.xlu0 %v404
      %v406 = vpop.xlane.xlu0 %405
      %v407 = vadd.f32 %v399, %v403
      %v408 = vadd.f32 %v400, %v406
      %vm409 = vcmask 7168
      %410 = vst.msk [vmem:[#allocation3] sm:$0xff] %vm409, %v407
      %411 = vst.msk [vmem:[#allocation3 + $0x8] sm:$0xff] %vm409, %v408
      %v412 = vld [vmem:[#allocation4] sm:$0xff]
      %v413 = vld [vmem:[#allocation4 + $0x8] sm:$0xff]
      %415 = vset.pattern.permute.xlu0 0
      %416 = vperm.xlu0 %415, %v378
      %v417 = vpop.permute.xlu0 %416
      %420 = vset.pattern.permute.xlu0 0
      %421 = vperm.xlu0 %420, %v380
      %v422 = vpop.permute.xlu0 %421
      %v424 = vmul.f32 %v417, %v412
      %v425 = vmul.f32 %v422, %v413
      %v426 = vpack.c.bf16 %v396, %v394
      %v427 = vld [vmem:[%s277] sm:$0xf]
      %v428 = vld [vmem:[%s277 + $0x4] sm:$0xf]
      %v431 = vunpack.c.l.b16 %v427
      %v432 = vunpack.c.l.b16 %v428
      %v433 = vpack.c.b16 %v432, %v431
      %v436 = vsel %vm366, %v426, 0
      %438 = vmatprep.subr.bf16.mxu0 0
      %439 = vmatpush1.bf16.msra.mxu0 %v433
      %440 = vmatprep.subr.bf16.mxu0 0
      %441 = vmatpush1.bf16.msra.mxu0 0
      %442 = vmatprep.subr.bf16.mxu0 0
      %443 = vmatpush1.bf16.msra.mxu0 0
      %444 = vmatprep.subr.bf16.mxu0 0
      %445 = vmatpush1.bf16.msra.mxu0 0
      %446 = vmatprep.subr.bf16.mxu0 0
      %447 = vmatpush1.bf16.msra.mxu0 0
      %448 = vmatprep.subr.bf16.mxu0 0
      %449 = vmatpush1.bf16.msra.mxu0 0
      %450 = vmatprep.subr.bf16.mxu0 0
      %451 = vmatpush1.bf16.msra.mxu0 0
      %452 = vmatprep.subr.bf16.mxu0 0
      %453 = vmatpush1.bf16.msra.mxu0 0
      %454 = vmatprep.subr.bf16.mxu0 0
      %455 = vmatpush1.bf16.msra.mxu0 0
      %456 = vmatprep.subr.bf16.mxu0 0
      %457 = vmatpush1.bf16.msra.mxu0 0
      %458 = vmatprep.subr.bf16.mxu0 0
      %459 = vmatpush1.bf16.msra.mxu0 0
      %460 = vmatprep.subr.bf16.mxu0 0
      %461 = vmatpush1.bf16.msra.mxu0 0
      %462 = vmatprep.subr.bf16.mxu0 0
      %463 = vmatpush1.bf16.msra.mxu0 0
      %464 = vmatprep.subr.bf16.mxu0 0
      %465 = vmatpush1.bf16.msra.mxu0 0
      %466 = vmatprep.subr.bf16.mxu0 0
      %467 = vmatpush1.bf16.msra.mxu0 0
      %468 = vmatprep.subr.bf16.mxu0 0
      %469 = vmatpush1.bf16.msra.mxu0 0
      %470 = vmatprep.mubr.bf16.mxu0 0
      %471 = vmatmul.mubr.bf16.gmra.mrb[0].mxu0 %v436
      %v472 = vpop.f32.mrb[0].mxu0
      %v473 = vadd.f32 0.0, %v472
      %v474 = vpop.f32.mrb[0].mxu0
      %v475 = vpop.f32.mrb[0].mxu0
      %v476 = vadd.f32 0.0, %v475
      %v477 = vpop.f32.mrb[0].mxu0
      %478 = vdwg.mxu0
      %v479 = vadd.f32 %v424, %v473
      %v480 = vadd.f32 %v425, %v476
      %481 = vst.msk [vmem:[#allocation4] sm:$0xff] %vm316, %v479
      %482 = vst.msk [vmem:[#allocation4 + $0x8] sm:$0xff] %vm316, %v480
      %483 = vst.msk [vmem:[#allocation2] sm:$0xff] %vm409, %v373
      %484 = vst.msk [vmem:[#allocation2 + $0x8] sm:$0xff] %vm409, %v374
      // Predicated region
      $region37: #{encoder_forward.16} parent=31 // pred_check
        %p485 = pneg %p290
      $region38: #{encoder_forward.16} parent=31 // pred_check_branch
        %487 = sbr.rel (%p485) target = $region40
      $region39: #{encoder_forward.16} parent=31 // pred_region
        %v488 = vld [vmem:[#allocation3] sm:$0xff]
        %v489 = vld [vmem:[#allocation3 + $0x8] sm:$0xff]
        %v490 = vrcp.pop %v488
        %v491 = vrcp.pop %v489
        %v492 = vld [vmem:[#allocation4] sm:$0xff]
        %v493 = vld [vmem:[#allocation4 + $0x8] sm:$0xff]
        %495 = vset.pattern.permute.xlu0 0
        %496 = vperm.xlu0 %495, %v490
        %v497 = vpop.permute.xlu0 %496
        %500 = vset.pattern.permute.xlu0 0
        %501 = vperm.xlu0 %500, %v491
        %v502 = vpop.permute.xlu0 %501
        %v504 = vmul.f32 %v492, %v497
        %v505 = vmul.f32 %v493, %v502
        %v506 = vpack.c.bf16 %v505, %v504
        %v508 = vunpack.c.l.b16 %v506
        %v509 = vunpack.c.h.b16 %v506
        %v510 = vpack.c.b16 %v508, %v508
        %v511 = vpack.c.b16 %v509, %v509
        %vm514 = vcmask 60416
        %515 = vst.msk [vmem:[%s287] sm:$0xf] %vm514, %v510
        %516 = vst.msk [vmem:[%s287 + $0x4] sm:$0xf] %vm514, %v511
      $region40: #{encoder_forward.16} parent=31 // pred_fallthru
        _
      %s517 = smul.u32 2, %s20
      %p518 = scmp.lt.s32.totalorder %s19, 7
      %s519 = scalar_select %p518, %s19, 7
      %p520 = scmp.lt.s32.totalorder %s517, 1
      %s521 = scalar_select %p520, %s517, 1
      %s522 = smul.addr %s519, 2
      %s523 = sadd.s32 %s521, %s522
      %s524 = smul.addr %s523, 4
      %s525 = scalar_lea.vmem %s3, %s524
      // Predicated region
      $region41: #{encoder_forward.16} parent=31 // pred_check
        %p526 = pneg %p137
      $region42: #{encoder_forward.16} parent=31 // pred_check_branch
        %528 = sbr.rel (%p526) target = $region44
      $region43: #{encoder_forward.16} parent=31 // pred_region
        %s529 = smul.u32 2, %s20
      $region44: #{encoder_forward.16} parent=31 // pred_fallthru
        _
    $region32: #{encoder_forward.16} parent=5 // pred_fallthru
      _
    %p530 = scmp.le.s32.totalorder 2, %s9
    // Predicated region
    $region45: #{encoder_forward.16} parent=5 // pred_check
      %p531 = pneg %p530
    $region46: #{encoder_forward.16} parent=5 // pred_check_branch
      %533 = sbr.rel (%p531) target = $region48
    $region47: #{encoder_forward.16} parent=5 // pred_region
      %s534 = ssub.s32 %s9, 2
      // Predicated region
      $region49: #{encoder_forward.16} parent=47 // pred_check
        %p535 = pneg %p143
      $region50: #{encoder_forward.16} parent=47 // pred_check_branch
        %537 = sbr.rel (%p535) target = $region52
      $region51: #{encoder_forward.16} parent=47 // pred_region
        %s538 = smul.u32 2, %s23
        %p539 = scmp.lt.s32.totalorder %s22, 7
        %s540 = scalar_select %p539, %s22, 7
        %p541 = scmp.lt.s32.totalorder %s538, 1
        %s542 = scalar_select %p541, %s538, 1
        %s543 = smul.addr %s540, 2
        %s544 = sadd.s32 %s542, %s543
        %s545 = smul.addr %s544, 4
        %s546 = scalar_lea.vmem %s3, %s545
      $region52: #{encoder_forward.16} parent=47 // pred_fallthru
        _
    $region48: #{encoder_forward.16} parent=5 // pred_fallthru
      _
  $region6: #{encoder_forward.16} parent=0 // loop_footer
    %s13 = sadd.s32 1, %s9
  $region7: #{encoder_forward.16} parent=0 // loop_footer_branch
    %8 = sbr.rel target = $region3
  $region8: #{encoder_forward.16} parent=0 // loop_exit
    _

// kernel: encoder_forward.15
$region0: #{encoder_forward.15}
  #allocation0 [shape = 'u32[]', space=smem, size = 0x4, offset = 0x4, fixed_abs, tag = 'smem constant byte address 0x4 - core index']
  #allocation1 [shape = 'u32[144,128]{1,0:T(1,128)}', space=vmem, size = 0x12000, scoped, tag = 'internal scratch']
  %s0 = inlined_call_operand.vmem [shape: bf16[32,32], index: 0, kind: input, shape index: {}]
  %s1 = inlined_call_operand.vmem [shape: f32[1,32], index: 1, kind: input, shape index: {}]
  %s2 = inlined_call_operand.vmem [shape: f32[1,32], index: 2, kind: input, shape index: {}]
  %s3 = inlined_call_operand.vmem [shape: bf16[32,96], index: 3, kind: input, shape index: {}]
  %s4 = inlined_call_operand.vmem [shape: f32[1,96], index: 4, kind: input, shape index: {}]
  %s5 = inlined_call_operand.vmem [shape: bf16[32,96], index: 5, kind: output, shape index: {0}]
  %s6 = inlined_call_operand.vmem [shape: bf16[32,32], index: 6, kind: output, shape index: {1}]
  %7 = xla_tuple %s5, %s6
  %s8 = sld [smem:[#allocation0]]
  $region42: #{encoder_forward.15} parent=0
    _
  %s10 = ssub.s32 1, %s8
  %s11 = scalar_select 0, %s10, %s8
  // Predicated region
  $region2: #{encoder_forward.15} parent=0 // pred_check
    _
  $region3: #{encoder_forward.15} parent=0 // pred_check_branch
    %13 = sbr.rel (0) target = $region5
  $region4: #{encoder_forward.15} parent=0 // pred_region
    _
  $region5: #{encoder_forward.15} parent=0 // pred_fallthru
    _
  // Predicated region
  $region6: #{encoder_forward.15} parent=0 // pred_check
    _
  $region7: #{encoder_forward.15} parent=0 // pred_check_branch
    %15 = sbr.rel (0) target = $region9
  $region8: #{encoder_forward.15} parent=0 // pred_region
    _
  $region9: #{encoder_forward.15} parent=0 // pred_fallthru
    _
  // Predicated region
  $region10: #{encoder_forward.15} parent=0 // pred_check
    _
  $region11: #{encoder_forward.15} parent=0 // pred_check_branch
    %17 = sbr.rel (0) target = $region13
  $region12: #{encoder_forward.15} parent=0 // pred_region
    _
  $region13: #{encoder_forward.15} parent=0 // pred_fallthru
    _
  // Predicated region
  $region14: #{encoder_forward.15} parent=0 // pred_check
    _
  $region15: #{encoder_forward.15} parent=0 // pred_check_branch
    %19 = sbr.rel (0) target = $region17
  $region16: #{encoder_forward.15} parent=0 // pred_region
    _
  $region17: #{encoder_forward.15} parent=0 // pred_fallthru
    _
  // Predicated region
  $region18: #{encoder_forward.15} parent=0 // pred_check
    _
  $region19: #{encoder_forward.15} parent=0 // pred_check_branch
    %21 = sbr.rel (0) target = $region21
  $region20: #{encoder_forward.15} parent=0 // pred_region
    _
  $region21: #{encoder_forward.15} parent=0 // pred_fallthru
    _
  %p23 = scmp.eq.s32.totalorder 0, 0
  // Predicated region
  $region22: #{encoder_forward.15} parent=0 // pred_check
    %p24 = pneg %p23
  $region23: #{encoder_forward.15} parent=0 // pred_check_branch
    %26 = sbr.rel (%p24) target = $region25
  $region24: #{encoder_forward.15} parent=0 // pred_region
    %v27 = vld [vmem:[%s0] sm:$0xf]
    %v28 = vld [vmem:[%s0 + $0x4] sm:$0xf]
    %v29 = vld [vmem:[%s0 + $0x8] sm:$0xf]
    %v30 = vld [vmem:[%s0 + $0xc] sm:$0xf]
    %v31 = vunpack.c.l.bf16 %v27
    %v32 = vunpack.c.l.bf16 %v28
    %v33 = vunpack.c.l.bf16 %v29
    %v34 = vunpack.c.l.bf16 %v30
    %vm35 = vcmask 261120
    %v36 = vsel %vm35, %v31, 0.0
    %37 = vadd.xlane.f32.xlu0 %v36
    %v38 = vpop.xlane.xlu0 %37
    %v39 = vsel %vm35, %v32, 0.0
    %40 = vadd.xlane.f32.xlu0 %v39
    %v41 = vpop.xlane.xlu0 %40
    %v42 = vsel %vm35, %v33, 0.0
    %43 = vadd.xlane.f32.xlu0 %v42
    %v44 = vpop.xlane.xlu0 %43
    %v45 = vsel %vm35, %v34, 0.0
    %46 = vadd.xlane.f32.xlu0 %v45
    %v47 = vpop.xlane.xlu0 %46
    %v48 = vrcp.pop 32.0
    %v49 = vmul.f32 %v38, %v48
    %v50 = vmul.f32 %v41, %v48
    %v51 = vmul.f32 %v44, %v48
    %v52 = vmul.f32 %v47, %v48
    %v53 = vsub.f32 %v31, %v49
    %v54 = vsub.f32 %v32, %v50
    %v55 = vsub.f32 %v33, %v51
    %v56 = vsub.f32 %v34, %v52
    %v57 = vmul.f32 %v53, %v53
    %v58 = vmul.f32 %v54, %v54
    %v59 = vmul.f32 %v55, %v55
    %v60 = vmul.f32 %v56, %v56
    %v61 = vsel %vm35, %v57, 0.0
    %62 = vadd.xlane.f32.xlu0 %v61
    %v63 = vpop.xlane.xlu0 %62
    %v64 = vsel %vm35, %v58, 0.0
    %65 = vadd.xlane.f32.xlu0 %v64
    %v66 = vpop.xlane.xlu0 %65
    %v67 = vsel %vm35, %v59, 0.0
    %68 = vadd.xlane.f32.xlu0 %v67
    %v69 = vpop.xlane.xlu0 %68
    %v70 = vsel %vm35, %v60, 0.0
    %71 = vadd.xlane.f32.xlu0 %v70
    %v72 = vpop.xlane.xlu0 %71
    %v73 = vmul.f32 %v63, %v48
    %v74 = vmul.f32 %v66, %v48
    %v75 = vmul.f32 %v69, %v48
    %v76 = vmul.f32 %v72, %v48
    %v77 = vadd.f32 %v73, 1e-05
    %v78 = vadd.f32 %v74, 1e-05
    %v79 = vadd.f32 %v75, 1e-05
    %v80 = vadd.f32 %v76, 1e-05
    %v81 = vrsqrt.pop %v77
    %v82 = vrsqrt.pop %v78
    %v83 = vrsqrt.pop %v79
    %v84 = vrsqrt.pop %v80
    %v85 = vmul.f32 %v53, %v81
    %v86 = vmul.f32 %v54, %v82
    %v87 = vmul.f32 %v55, %v83
    %v88 = vmul.f32 %v56, %v84
    %v89 = vld [vmem:[%s1] sm:$0x1]
    %v91 = vlaneseq
    %v92 = vshrl.u32 %v91, 7
    %v93 = vsub.s32 0, %v92
    %v94 = vrot.slane %v89, %v93
    %v96 = vmul.f32 %v85, %v94
    %v97 = vmul.f32 %v86, %v94
    %v98 = vmul.f32 %v87, %v94
    %v99 = vmul.f32 %v88, %v94
    %v100 = vld [vmem:[%s2] sm:$0x1]
    %v102 = vlaneseq
    %v103 = vshrl.u32 %v102, 7
    %v104 = vsub.s32 0, %v103
    %v105 = vrot.slane %v100, %v104
    %v107 = vadd.f32 %v96, %v105
    %v108 = vadd.f32 %v97, %v105
    %v109 = vadd.f32 %v98, %v105
    %v110 = vadd.f32 %v99, %v105
    %v111 = vpack.c.bf16 %v108, %v107
    %v112 = vpack.c.bf16 %v110, %v109
    %v115 = vunpack.c.l.b16 %v111
    %v116 = vunpack.c.h.b16 %v111
    %v117 = vunpack.c.l.b16 %v112
    %v118 = vunpack.c.h.b16 %v112
    %v119 = vpack.c.b16 %v115, %v115
    %v120 = vpack.c.b16 %v116, %v116
    %v121 = vpack.c.b16 %v117, %v117
    %v122 = vpack.c.b16 %v118, %v118
    %vm127 = vcmask 257024
    %128 = vst.msk [vmem:[%s6] sm:$0xf] %vm127, %v119
    %129 = vst.msk [vmem:[%s6 + $0x4] sm:$0xf] %vm127, %v120
    %130 = vst.msk [vmem:[%s6 + $0x8] sm:$0xf] %vm127, %v121
    %131 = vst.msk [vmem:[%s6 + $0xc] sm:$0xf] %vm127, %v122
  $region25: #{encoder_forward.15} parent=0 // pred_fallthru
    _
  %v132 = vld [vmem:[%s6] sm:$0xf]
  %v133 = vld [vmem:[%s6 + $0x4] sm:$0xf]
  %v134 = vld [vmem:[%s6 + $0x8] sm:$0xf]
  %v135 = vld [vmem:[%s6 + $0xc] sm:$0xf]
  %v136 = vld [vmem:[%s3] sm:$0xf]
  %v137 = vld [vmem:[%s3 + $0x4] sm:$0xf]
  %v138 = vld [vmem:[%s3 + $0x8] sm:$0xf]
  %v139 = vld [vmem:[%s3 + $0xc] sm:$0xf]
  %v140 = vld [vmem:[%s4] sm:$0x1]
  %v142 = vlaneseq
  %v143 = vshrl.u32 %v142, 7
  %v144 = vsub.s32 0, %v143
  %v145 = vrot.slane %v140, %v144
  %v151 = vunpack.c.l.b16 %v132
  %v152 = vunpack.c.l.b16 %v133
  %v153 = vunpack.c.l.b16 %v134
  %v154 = vunpack.c.l.b16 %v135
  %v155 = vpack.c.b16 %v152, %v151
  %v156 = vpack.c.b16 %v154, %v153
  %v161 = vunpack.c.l.b16 %v136
  %v162 = vunpack.c.l.b16 %v137
  %v163 = vunpack.c.l.b16 %v138
  %v164 = vunpack.c.l.b16 %v139
  %v165 = vpack.c.b16 %v162, %v161
  %v166 = vpack.c.b16 %v164, %v163
  %vm169 = vcmask 261120
  %v171 = vsel %vm169, %v155, 0
  %v174 = vsel %vm169, %v156, 0
  %176 = vmatprep.subr.bf16.mxu0 0
  %177 = vmatpush1.bf16.msra.mxu0 %v165
  %178 = vmatprep.subr.bf16.mxu0 0
  %179 = vmatpush1.bf16.msra.mxu0 %v166
  %180 = vmatprep.subr.bf16.mxu0 0
  %181 = vmatpush1.bf16.msra.mxu0 0
  %182 = vmatprep.subr.bf16.mxu0 0
  %183 = vmatpush1.bf16.msra.mxu0 0
  %184 = vmatprep.subr.bf16.mxu0 0
  %185 = vmatpush1.bf16.msra.mxu0 0
  %186 = vmatprep.subr.bf16.mxu0 0
  %187 = vmatpush1.bf16.msra.mxu0 0
  %188 = vmatprep.subr.bf16.mxu0 0
  %189 = vmatpush1.bf16.msra.mxu0 0
  %190 = vmatprep.subr.bf16.mxu0 0
  %191 = vmatpush1.bf16.msra.mxu0 0
  %192 = vmatprep.subr.bf16.mxu0 0
  %193 = vmatpush1.bf16.msra.mxu0 0
  %194 = vmatprep.subr.bf16.mxu0 0
  %195 = vmatpush1.bf16.msra.mxu0 0
  %196 = vmatprep.subr.bf16.mxu0 0
  %197 = vmatpush1.bf16.msra.mxu0 0
  %198 = vmatprep.subr.bf16.mxu0 0
  %199 = vmatpush1.bf16.msra.mxu0 0
  %200 = vmatprep.subr.bf16.mxu0 0
  %201 = vmatpush1.bf16.msra.mxu0 0
  %202 = vmatprep.subr.bf16.mxu0 0
  %203 = vmatpush1.bf16.msra.mxu0 0
  %204 = vmatprep.subr.bf16.mxu0 0
  %205 = vmatpush1.bf16.msra.mxu0 0
  %206 = vmatprep.subr.bf16.mxu0 0
  %207 = vmatpush1.bf16.msra.mxu0 0
  %208 = vmatprep.mubr.bf16.mxu0 0
  %209 = vmatmul.mubr.bf16.gmra.mrb[0].mxu0 %v171
  %v210 = vpop.f32.mrb[0].mxu0
  %v211 = vadd.f32 %v145, %v210
  %v212 = vpop.f32.mrb[0].mxu0
  %v213 = vpop.f32.mrb[0].mxu0
  %v214 = vadd.f32 %v145, %v213
  %v215 = vpop.f32.mrb[0].mxu0
  %216 = vmatprep.mubr.bf16.mxu0 0
  %217 = vmatmul.mubr.bf16.gmra.mrb[0].mxu0 %v174
  %v218 = vpop.f32.mrb[0].mxu0
  %v219 = vadd.f32 %v145, %v218
  %v220 = vpop.f32.mrb[0].mxu0
  %v221 = vpop.f32.mrb[0].mxu0
  %v222 = vadd.f32 %v145, %v221
  %v223 = vpop.f32.mrb[0].mxu0
  %224 = vdwg.mxu0
  %v225 = vpack.c.bf16 %v214, %v211
  %v226 = vpack.c.bf16 %v222, %v219
  %v229 = vunpack.c.l.b16 %v225
  %v230 = vunpack.c.h.b16 %v225
  %v231 = vunpack.c.l.b16 %v226
  %v232 = vunpack.c.h.b16 %v226
  %v233 = vpack.c.b16 %v229, %v229
  %v234 = vpack.c.b16 %v230, %v230
  %v235 = vpack.c.b16 %v231, %v231
  %v236 = vpack.c.b16 %v232, %v232
  %vm241 = vcmask 781312
  %242 = vst.msk [vmem:[%s5] sm:$0xf] %vm241, %v233
  %243 = vst.msk [vmem:[%s5 + $0x4] sm:$0xf] %vm241, %v234
  %244 = vst.msk [vmem:[%s5 + $0x8] sm:$0xf] %vm241, %v235
  %245 = vst.msk [vmem:[%s5 + $0xc] sm:$0xf] %vm241, %v236
  // Predicated region
  $region26: #{encoder_forward.15} parent=0 // pred_check
    _
  $region27: #{encoder_forward.15} parent=0 // pred_check_branch
    %247 = sbr.rel (0) target = $region29
  $region28: #{encoder_forward.15} parent=0 // pred_region
    _
  $region29: #{encoder_forward.15} parent=0 // pred_fallthru
    _
  // Predicated region
  $region30: #{encoder_forward.15} parent=0 // pred_check
    _
  $region31: #{encoder_forward.15} parent=0 // pred_check_branch
    %249 = sbr.rel (0) target = $region33
  $region32: #{encoder_forward.15} parent=0 // pred_region
    _
  $region33: #{encoder_forward.15} parent=0 // pred_fallthru
    _
  // Predicated region
  $region34: #{encoder_forward.15} parent=0 // pred_check
    _
  $region35: #{encoder_forward.15} parent=0 // pred_check_branch
    %251 = sbr.rel (0) target = $region37
  $region36: #{encoder_forward.15} parent=0 // pred_region
    _
  $region37: #{encoder_forward.15} parent=0 // pred_fallthru
    _
  // Predicated region
  $region38: #{encoder_forward.15} parent=0 // pred_check
    _
  $region39: #{encoder_forward.15} parent=0 // pred_check_branch
    %253 = sbr.rel (0) target = $region41
  $region40: #{encoder_forward.15} parent=0 // pred_region
    _
  $region41: #{encoder_forward.15} parent=0 // pred_fallthru
    _

// kernel: encoder_forward.14
$region0: #{encoder_forward.14}
  #allocation0 [shape = 'u32[]', space=smem, size = 0x4, offset = 0x4, fixed_abs, tag = 'smem constant byte address 0x4 - core index']
  #allocation1 [shape = 'u32[144,128]{1,0:T(1,128)}', space=vmem, size = 0x12000, scoped, tag = 'internal scratch']
  %s0 = inlined_call_operand.vmem [shape: bf16[2,18,32], index: 0, kind: input, shape index: {}]
  %s1 = inlined_call_operand.vmem [shape: bf16[3,32,32], index: 1, kind: input, shape index: {}]
  %s2 = inlined_call_operand.vmem [shape: bf16[16,32], index: 2, kind: input, shape index: {}]
  %s3 = inlined_call_operand.vmem [shape: bf16[2,16,32], index: 3, kind: output, shape index: {}]
  %s4 = sld [smem:[#allocation0]]
  $region45: #{encoder_forward.14} parent=0
    _
  %s6 = ssub.s32 1, %s4
  %s7 = scalar_select 0, %s6, %s4
  loop: start=0, step=1, limit=4
  $region2: #{encoder_forward.14} parent=0 // loop_pre_header
    _
  $region3: #{encoder_forward.14} parent=0 // loop_header
    %s9 = sphi 0, %s13
    %p10 = scmp.ge.s32.totalorder %s9, 4
    %s16 = sphi 0, %s28
    %s17 = sphi 0, %s24
    %s18 = sphi 0, %s16
    %s19 = sphi 0, %s17
    %s20 = sphi 0, %s18
    %s21 = sphi 0, %s19
    %s31 = sphi 0, %s33
    %s34 = sphi 0, %s31
    %s35 = sphi 0, %s34
    %s51 = sphi 0, %s35
    %s57 = sphi 0, %s59
    %s60 = sphi 0, %s57
    %s61 = sphi 0, %s60
    %s77 = sphi 0, %s61
    %s83 = sphi 0, %s85
    %s86 = sphi 0, %s83
    %s87 = sphi 0, %s86
    %s103 = sphi 0, %s87
    %s111 = sphi 0, %s113
    %s114 = sphi 0, %s111
    %s115 = sphi 0, %s114
    %s131 = sphi 0, %s115
  $region4: #{encoder_forward.14} parent=0 // loop_header_branch
    %12 = sbr.rel (%p10) target = $region8
  $region5: #{encoder_forward.14} parent=0 // loop_body
    %s14 = ssub.s32 %s9, 1
    %s15 = ssub.s32 %s9, 2
    %s22 = sadd.s32 1, %s17
    %p23 = scmp.ge.s32.totalorder %s22, 1
    %s24 = scalar_select %p23, 0, %s22
    %s25 = sadd.s32 1, %s16
    %s26 = scalar_select %p23, %s25, %s16
    %p27 = scmp.ge.s32.totalorder %s26, 2
    %s28 = scalar_select %p27, 0, %s26
    %s29 = ssub.s32 %s16, %s28
    %p30 = scmp.eq.s32.totalorder %s29, 0
    %s32 = sadd.s32 %s31, 1
    %s33 = scalar_select %p30, %s31, %s32
    %p36 = pneg %p30
    %p37 = scmp.eq.s32.totalorder %s9, 1
    %p38 = por %p36, %p37
    %p39 = scmp.ne.s32.totalorder %s31, %s34
    %p40 = scmp.eq.s32.totalorder %s9, 0
    %p41 = por %p39, %p40
    %p42 = scmp.ne.s32.totalorder %s31, %s34
    %p43 = scmp.eq.s32.totalorder %s14, 1
    %p44 = por %p42, %p43
    %p45 = scmp.ne.s32.totalorder %s34, %s35
    %p46 = scmp.eq.s32.totalorder %s14, 0
    %p47 = por %p45, %p46
    %p48 = scmp.ne.s32.totalorder %s34, %s35
    %p49 = scmp.eq.s32.totalorder %s15, 1
    %p50 = por %p48, %p49
    %p52 = scmp.ne.s32.totalorder %s35, %s51
    %p53 = scmp.eq.s32.totalorder %s15, 0
    %p54 = por %p52, %p53
    %s55 = ssub.s32 %s17, %s24
    %p56 = scmp.eq.s32.totalorder %s55, 0
    %s58 = sadd.s32 %s57, 1
    %s59 = scalar_select %p56, %s57, %s58
    %p62 = pneg %p56
    %p63 = scmp.eq.s32.totalorder %s9, 1
    %p64 = por %p62, %p63
    %p65 = scmp.ne.s32.totalorder %s57, %s60
    %p66 = scmp.eq.s32.totalorder %s9, 0
    %p67 = por %p65, %p66
    %p68 = scmp.ne.s32.totalorder %s57, %s60
    %p69 = scmp.eq.s32.totalorder %s14, 1
    %p70 = por %p68, %p69
    %p71 = scmp.ne.s32.totalorder %s60, %s61
    %p72 = scmp.eq.s32.totalorder %s14, 0
    %p73 = por %p71, %p72
    %p74 = scmp.ne.s32.totalorder %s60, %s61
    %p75 = scmp.eq.s32.totalorder %s15, 1
    %p76 = por %p74, %p75
    %p78 = scmp.ne.s32.totalorder %s61, %s77
    %p79 = scmp.eq.s32.totalorder %s15, 0
    %p80 = por %p78, %p79
    %s81 = ssub.s32 %s17, %s24
    %p82 = scmp.eq.s32.totalorder %s81, 0
    %s84 = sadd.s32 %s83, 1
    %s85 = scalar_select %p82, %s83, %s84
    %p88 = pneg %p82
    %p89 = scmp.eq.s32.totalorder %s9, 1
    %p90 = por %p88, %p89
    %p91 = scmp.ne.s32.totalorder %s83, %s86
    %p92 = scmp.eq.s32.totalorder %s9, 0
    %p93 = por %p91, %p92
    %p94 = scmp.ne.s32.totalorder %s83, %s86
    %p95 = scmp.eq.s32.totalorder %s14, 1
    %p96 = por %p94, %p95
    %p97 = scmp.ne.s32.totalorder %s86, %s87
    %p98 = scmp.eq.s32.totalorder %s14, 0
    %p99 = por %p97, %p98
    %p100 = scmp.ne.s32.totalorder %s86, %s87
    %p101 = scmp.eq.s32.totalorder %s15, 1
    %p102 = por %p100, %p101
    %p104 = scmp.ne.s32.totalorder %s87, %s103
    %p105 = scmp.eq.s32.totalorder %s15, 0
    %p106 = por %p104, %p105
    %s107 = ssub.s32 %s16, %s28
    %s108 = ssub.s32 %s17, %s24
    %s109 = sor.u32 %s107, %s108
    %p110 = scmp.eq.s32.totalorder %s109, 0
    %s112 = sadd.s32 %s111, 1
    %s113 = scalar_select %p110, %s111, %s112
    %p116 = pneg %p110
    %p117 = scmp.eq.s32.totalorder %s9, 1
    %p118 = por %p116, %p117
    %p119 = scmp.ne.s32.totalorder %s111, %s114
    %p120 = scmp.eq.s32.totalorder %s9, 0
    %p121 = por %p119, %p120
    %p122 = scmp.ne.s32.totalorder %s111, %s114
    %p123 = scmp.eq.s32.totalorder %s14, 1
    %p124 = por %p122, %p123
    %p125 = scmp.ne.s32.totalorder %s114, %s115
    %p126 = scmp.eq.s32.totalorder %s14, 0
    %p127 = por %p125, %p126
    %p128 = scmp.ne.s32.totalorder %s114, %s115
    %p129 = scmp.eq.s32.totalorder %s15, 1
    %p130 = por %p128, %p129
    %p132 = scmp.ne.s32.totalorder %s115, %s131
    %p133 = scmp.eq.s32.totalorder %s15, 0
    %p134 = por %p132, %p133
    %p135 = scmp.le.s32.totalorder 1, %s9
    %p136 = scmp.lt.s32.totalorder %s9, 3
    %p137 = pnand %p135, %p136
    %p138 = pneg %p137
    // Predicated region
    $region9: #{encoder_forward.14} parent=5 // pred_check
      _
    $region10: #{encoder_forward.14} parent=5 // pred_check_branch
      %140 = sbr.rel (%p137) target = $region12
    $region11: #{encoder_forward.14} parent=5 // pred_region
      %s141 = ssub.s32 %s9, 1
      // Predicated region
      $region13: #{encoder_forward.14} parent=11 // pred_check
        %p142 = pneg %p73
      $region14: #{encoder_forward.14} parent=11 // pred_check_branch
        %144 = sbr.rel (%p142) target = $region16
      $region15: #{encoder_forward.14} parent=11 // pred_region
        %p145 = scmp.lt.s32.totalorder %s19, 0
        %s146 = scalar_select %p145, %s19, 0
        %s147 = smul.addr %s146, 4
        %s148 = scalar_lea.vmem %s1, %s147
      $region16: #{encoder_forward.14} parent=11 // pred_fallthru
        _
      // Predicated region
      $region17: #{encoder_forward.14} parent=11 // pred_check
        %p149 = pneg %p99
      $region18: #{encoder_forward.14} parent=11 // pred_check_branch
        %151 = sbr.rel (%p149) target = $region20
      $region19: #{encoder_forward.14} parent=11 // pred_region
        %p152 = scmp.lt.s32.totalorder %s19, 0
        %s153 = scalar_select %p152, %s19, 0
        %s154 = smul.addr %s153, 4
        %s155 = scalar_lea.vmem %s2, %s154
      $region20: #{encoder_forward.14} parent=11 // pred_fallthru
        _
    $region12: #{encoder_forward.14} parent=5 // pred_fallthru
      _
    %p156 = scmp.lt.s32.totalorder %s9, 2
    // Predicated region
    $region21: #{encoder_forward.14} parent=5 // pred_check
      %p157 = pneg %p156
    $region22: #{encoder_forward.14} parent=5 // pred_check_branch
      %159 = sbr.rel (%p157) target = $region24
    $region23: #{encoder_forward.14} parent=5 // pred_region
      // Predicated region
      $region25: #{encoder_forward.14} parent=23 // pred_check
        %p160 = pneg %p41
      $region26: #{encoder_forward.14} parent=23 // pred_check_branch
        %162 = sbr.rel (%p160) target = $region28
      $region27: #{encoder_forward.14} parent=23 // pred_region
        %p163 = scmp.lt.s32.totalorder %s16, 1
        %s164 = scalar_select %p163, %s16, 1
        %s165 = smul.addr %s164, 3
        %s166 = smul.addr %s165, 4
        %s167 = scalar_lea.vmem %s0, %s166
      $region28: #{encoder_forward.14} parent=23 // pred_fallthru
        _
    $region24: #{encoder_forward.14} parent=5 // pred_fallthru
      _
    %p168 = scmp.le.s32.totalorder 1, %s9
    %p169 = scmp.lt.s32.totalorder %s9, 3
    %p170 = pnand %p168, %p169
    %p171 = pneg %p170
    // Predicated region
    $region29: #{encoder_forward.14} parent=5 // pred_check
      _
    $region30: #{encoder_forward.14} parent=5 // pred_check_branch
      %173 = sbr.rel (%p170) target = $region32
    $region31: #{encoder_forward.14} parent=5 // pred_region
      %s174 = ssub.s32 %s9, 1
      %p175 = scmp.lt.s32.totalorder %s18, 1
      %s176 = scalar_select %p175, %s18, 1
      %s177 = smul.addr %s176, 3
      %s178 = smul.addr %s177, 4
      %s179 = scalar_lea.vmem %s0, %s178
      %p180 = pneg %p47
      %p181 = pneg %p44
      %p182 = scmp.lt.s32.totalorder %s19, 0
      %s183 = scalar_select %p182, %s19, 0
      %s184 = smul.addr %s183, 4
      %s185 = scalar_lea.vmem %s1, %s184
      %p186 = pneg %p73
      %p187 = pneg %p70
      %p188 = scmp.lt.s32.totalorder %s19, 0
      %s189 = scalar_select %p188, %s19, 0
      %s190 = smul.addr %s189, 4
      %s191 = scalar_lea.vmem %s2, %s190
      %p192 = pneg %p99
      %p193 = pneg %p96
      %p194 = pneg %p127
      %p195 = pneg %p124
      %p196 = scmp.lt.s32.totalorder %s18, 1
      %s197 = scalar_select %p196, %s18, 1
      %p198 = scmp.lt.s32.totalorder %s19, 0
      %s199 = scalar_select %p198, %s19, 0
      %s200 = smul.addr %s197, 2
      %s201 = sadd.s32 %s199, %s200
      %s202 = smul.addr %s201, 4
      %s203 = scalar_lea.vmem %s3, %s202
      %p204 = scmp.lt.s32.totalorder %s18, 1
      %s205 = scalar_select %p204, %s18, 1
      %s206 = smul.addr %s205, 3
      %s207 = smul.addr %s206, 4
      %s208 = scalar_lea.vmem %s0, %s207
      %p209 = scmp.lt.s32.totalorder %s19, 0
      %s210 = scalar_select %p209, %s19, 0
      %s211 = smul.addr %s210, 4
      %s212 = scalar_lea.vmem %s1, %s211
      %p213 = scmp.lt.s32.totalorder %s19, 0
      %s214 = scalar_select %p213, %s19, 0
      %s215 = smul.addr %s214, 4
      %s216 = scalar_lea.vmem %s2, %s215
      %p217 = scmp.lt.s32.totalorder %s18, 1
      %s218 = scalar_select %p217, %s18, 1
      %p219 = scmp.lt.s32.totalorder %s19, 0
      %s220 = scalar_select %p219, %s19, 0
      %s221 = smul.addr %s218, 2
      %s222 = sadd.s32 %s220, %s221
      %s223 = smul.addr %s222, 4
      %s224 = scalar_lea.vmem %s3, %s223
      %v226 = vld [vmem:[%s208] sm:$0xf]
      %v227 = vld [vmem:[%s208 + $0x4] sm:$0xf]
      %v228 = vld [vmem:[%s208 + $0x8] sm:$0x1]
      %v229 = vld [vmem:[%s212] sm:$0xf]
      %v230 = vld [vmem:[%s212 + $0x4] sm:$0xf]
      %v231 = vld [vmem:[%s212 + $0x8] sm:$0xf]
      %v232 = vld [vmem:[%s212 + $0xc] sm:$0xf]
      %v236 = vunpack.c.l.b16 %v226
      %v237 = vunpack.c.l.b16 %v227
      %v238 = vunpack.c.l.b16 %v228
      %v239 = vpack.c.b16 %v237, %v236
      %v240 = vpack.c.b16 %v238, %v238
      %v245 = vunpack.c.l.b16 %v229
      %v246 = vunpack.c.l.b16 %v230
      %v247 = vunpack.c.l.b16 %v231
      %v248 = vunpack.c.l.b16 %v232
      %v249 = vpack.c.b16 %v246, %v245
      %v250 = vpack.c.b16 %v248, %v247
      %vm253 = vcmask 261120
      %v255 = vsel %vm253, %v239, 0
      %v258 = vsel %vm253, %v240, 0
      %260 = vmatprep.subr.bf16.mxu0 0
      %261 = vmatpush1.bf16.msra.mxu0 %v249
      %262 = vmatprep.subr.bf16.mxu0 0
      %263 = vmatpush1.bf16.msra.mxu0 %v250
      %264 = vmatprep.subr.bf16.mxu0 0
      %265 = vmatpush1.bf16.msra.mxu0 0
      %266 = vmatprep.subr.bf16.mxu0 0
      %267 = vmatpush1.bf16.msra.mxu0 0
      %268 = vmatprep.subr.bf16.mxu0 0
      %269 = vmatpush1.bf16.msra.mxu0 0
      %270 = vmatprep.subr.bf16.mxu0 0
      %271 = vmatpush1.bf16.msra.mxu0 0
      %272 = vmatprep.subr.bf16.mxu0 0
      %273 = vmatpush1.bf16.msra.mxu0 0
      %274 = vmatprep.subr.bf16.mxu0 0
      %275 = vmatpush1.bf16.msra.mxu0 0
      %276 = vmatprep.subr.bf16.mxu0 0
      %277 = vmatpush1.bf16.msra.mxu0 0
      %278 = vmatprep.subr.bf16.mxu0 0
      %279 = vmatpush1.bf16.msra.mxu0 0
      %280 = vmatprep.subr.bf16.mxu0 0
      %281 = vmatpush1.bf16.msra.mxu0 0
      %282 = vmatprep.subr.bf16.mxu0 0
      %283 = vmatpush1.bf16.msra.mxu0 0
      %284 = vmatprep.subr.bf16.mxu0 0
      %285 = vmatpush1.bf16.msra.mxu0 0
      %286 = vmatprep.subr.bf16.mxu0 0
      %287 = vmatpush1.bf16.msra.mxu0 0
      %288 = vmatprep.subr.bf16.mxu0 0
      %289 = vmatpush1.bf16.msra.mxu0 0
      %290 = vmatprep.subr.bf16.mxu0 0
      %291 = vmatpush1.bf16.msra.mxu0 0
      %292 = vmatprep.mubr.bf16.mxu0 0
      %293 = vmatmul.mubr.bf16.gmra.mrb[0].mxu0 %v255
      %v294 = vpop.f32.mrb[0].mxu0
      %v295 = vadd.f32 0.0, %v294
      %v296 = vpop.f32.mrb[0].mxu0
      %v297 = vpop.f32.mrb[0].mxu0
      %v298 = vadd.f32 0.0, %v297
      %v299 = vpop.f32.mrb[0].mxu0
      %300 = vmatprep.mubr.bf16.mxu0 0
      %301 = vmatmul.mubr.bf16.gmra.mrb[0].mxu0 %v258
      %v302 = vpop.f32.mrb[0].mxu0
      %v303 = vpop.f32.mrb[0].mxu0
      %v304 = vpop.f32.mrb[0].mxu0
      %v305 = vpop.f32.mrb[0].mxu0
      %306 = vdwg.mxu0
      %s307 = scalar_lea.vmem %s212, 16
      %v308 = vld [vmem:[%s307] sm:$0xf]
      %v309 = vld [vmem:[%s307 + $0x4] sm:$0xf]
      %v310 = vld [vmem:[%s307 + $0x8] sm:$0xf]
      %v311 = vld [vmem:[%s307 + $0xc] sm:$0xf]
      %v316 = vunpack.c.l.b16 %v308
      %v317 = vunpack.c.l.b16 %v309
      %v318 = vunpack.c.l.b16 %v310
      %v319 = vunpack.c.l.b16 %v311
      %v320 = vpack.c.b16 %v317, %v316
      %v321 = vpack.c.b16 %v319, %v318
      %324 = vmatprep.subr.bf16.mxu0 0
      %325 = vmatpush1.bf16.msra.mxu0 %v320
      %326 = vmatprep.subr.bf16.mxu0 0
      %327 = vmatpush1.bf16.msra.mxu0 %v321
      %328 = vmatprep.subr.bf16.mxu0 0
      %329 = vmatpush1.bf16.msra.mxu0 0
      %330 = vmatprep.subr.bf16.mxu0 0
      %331 = vmatpush1.bf16.msra.mxu0 0
      %332 = vmatprep.subr.bf16.mxu0 0
      %333 = vmatpush1.bf16.msra.mxu0 0
      %334 = vmatprep.subr.bf16.mxu0 0
      %335 = vmatpush1.bf16.msra.mxu0 0
      %336 = vmatprep.subr.bf16.mxu0 0
      %337 = vmatpush1.bf16.msra.mxu0 0
      %338 = vmatprep.subr.bf16.mxu0 0
      %339 = vmatpush1.bf16.msra.mxu0 0
      %340 = vmatprep.subr.bf16.mxu0 0
      %341 = vmatpush1.bf16.msra.mxu0 0
      %342 = vmatprep.subr.bf16.mxu0 0
      %343 = vmatpush1.bf16.msra.mxu0 0
      %344 = vmatprep.subr.bf16.mxu0 0
      %345 = vmatpush1.bf16.msra.mxu0 0
      %346 = vmatprep.subr.bf16.mxu0 0
      %347 = vmatpush1.bf16.msra.mxu0 0
      %348 = vmatprep.subr.bf16.mxu0 0
      %349 = vmatpush1.bf16.msra.mxu0 0
      %350 = vmatprep.subr.bf16.mxu0 0
      %351 = vmatpush1.bf16.msra.mxu0 0
      %352 = vmatprep.subr.bf16.mxu0 0
      %353 = vmatpush1.bf16.msra.mxu0 0
      %354 = vmatprep.subr.bf16.mxu0 0
      %355 = vmatpush1.bf16.msra.mxu0 0
      %356 = vmatprep.mubr.bf16.mxu0 0
      %357 = vmatmul.mubr.bf16.gmra.mrb[0].mxu0 %v255
      %v358 = vpop.f32.mrb[0].mxu0
      %v359 = vadd.f32 0.0, %v358
      %v360 = vpop.f32.mrb[0].mxu0
      %v361 = vpop.f32.mrb[0].mxu0
      %v362 = vadd.f32 0.0, %v361
      %v363 = vpop.f32.mrb[0].mxu0
      %364 = vmatprep.mubr.bf16.mxu0 0
      %365 = vmatmul.mubr.bf16.gmra.mrb[0].mxu0 %v258
      %v366 = vpop.f32.mrb[0].mxu0
      %v367 = vadd.f32 0.0, %v366
      %v368 = vpop.f32.mrb[0].mxu0
      %v369 = vpop.f32.mrb[0].mxu0
      %v370 = vpop.f32.mrb[0].mxu0
      %371 = vdwg.mxu0
      %s372 = scalar_lea.vmem %s212, 32
      %v373 = vld [vmem:[%s372] sm:$0xf]
      %v374 = vld [vmem:[%s372 + $0x4] sm:$0xf]
      %v375 = vld [vmem:[%s372 + $0x8] sm:$0xf]
      %v376 = vld [vmem:[%s372 + $0xc] sm:$0xf]
      %v381 = vunpack.c.l.b16 %v373
      %v382 = vunpack.c.l.b16 %v374
      %v383 = vunpack.c.l.b16 %v375
      %v384 = vunpack.c.l.b16 %v376
      %v385 = vpack.c.b16 %v382, %v381
      %v386 = vpack.c.b16 %v384, %v383
      %389 = vmatprep.subr.bf16.mxu0 0
      %390 = vmatpush1.bf16.msra.mxu0 %v385
      %391 = vmatprep.subr.bf16.mxu0 0
      %392 = vmatpush1.bf16.msra.mxu0 %v386
      %393 = vmatprep.subr.bf16.mxu0 0
      %394 = vmatpush1.bf16.msra.mxu0 0
      %395 = vmatprep.subr.bf16.mxu0 0
      %396 = vmatpush1.bf16.msra.mxu0 0
      %397 = vmatprep.subr.bf16.mxu0 0
      %398 = vmatpush1.bf16.msra.mxu0 0
      %399 = vmatprep.subr.bf16.mxu0 0
      %400 = vmatpush1.bf16.msra.mxu0 0
      %401 = vmatprep.subr.bf16.mxu0 0
      %402 = vmatpush1.bf16.msra.mxu0 0
      %403 = vmatprep.subr.bf16.mxu0 0
      %404 = vmatpush1.bf16.msra.mxu0 0
      %405 = vmatprep.subr.bf16.mxu0 0
      %406 = vmatpush1.bf16.msra.mxu0 0
      %407 = vmatprep.subr.bf16.mxu0 0
      %408 = vmatpush1.bf16.msra.mxu0 0
      %409 = vmatprep.subr.bf16.mxu0 0
      %410 = vmatpush1.bf16.msra.mxu0 0
      %411 = vmatprep.subr.bf16.mxu0 0
      %412 = vmatpush1.bf16.msra.mxu0 0
      %413 = vmatprep.subr.bf16.mxu0 0
      %414 = vmatpush1.bf16.msra.mxu0 0
      %415 = vmatprep.subr.bf16.mxu0 0
      %416 = vmatpush1.bf16.msra.mxu0 0
      %417 = vmatprep.subr.bf16.mxu0 0
      %418 = vmatpush1.bf16.msra.mxu0 0
      %419 = vmatprep.subr.bf16.mxu0 0
      %420 = vmatpush1.bf16.msra.mxu0 0
      %421 = vmatprep.mubr.bf16.mxu0 0
      %422 = vmatmul.mubr.bf16.gmra.mrb[0].mxu0 %v255
      %v423 = vpop.f32.mrb[0].mxu0
      %v424 = vadd.f32 0.0, %v423
      %v425 = vpop.f32.mrb[0].mxu0
      %v426 = vpop.f32.mrb[0].mxu0
      %v427 = vadd.f32 0.0, %v426
      %v428 = vpop.f32.mrb[0].mxu0
      %429 = vmatprep.mubr.bf16.mxu0 0
      %430 = vmatmul.mubr.bf16.gmra.mrb[0].mxu0 %v258
      %v431 = vpop.f32.mrb[0].mxu0
      %v432 = vadd.f32 0.0, %v431
      %v433 = vpop.f32.mrb[0].mxu0
      %v434 = vpop.f32.mrb[0].mxu0
      %v435 = vpop.f32.mrb[0].mxu0
      %436 = vdwg.mxu0
      %vm440 = vcmask 1046528
      %v441 = vrot.slane %v359, 1
      %v442 = vrot.slane %v362, 1
      %v443 = vsel %vm440, %v441, %v442
      %v444 = vrot.slane %v367, 1
      %v445 = vsel %vm440, %v442, %v444
      %v448 = vadd.f32 %v295, %v443
      %v449 = vadd.f32 %v298, %v445
      %vm453 = vcmask 1045504
      %v454 = vrot.slane %v424, 2
      %v455 = vrot.slane %v427, 2
      %v456 = vsel %vm453, %v454, %v455
      %v457 = vrot.slane %v432, 2
      %v458 = vsel %vm453, %v455, %v457
      %v461 = vadd.f32 %v448, %v456
      %v462 = vadd.f32 %v449, %v458
      %v463 = vmul.f32 %v461, 0.5
      %v464 = vmul.f32 %v462, 0.5
      %v465 = vmul.f32 %v461, 0.70710677
      %v466 = vmul.f32 %v462, 0.70710677
      %v467 = verf.f32.pop %v465
      %v468 = verf.f32.pop %v466
      %v469 = vadd.f32 %v467, 1.0
      %v470 = vadd.f32 %v468, 1.0
      %v471 = vmul.f32 %v463, %v469
      %v472 = vmul.f32 %v464, %v470
      %v473 = vld [vmem:[%s216] sm:$0xf]
      %v474 = vld [vmem:[%s216 + $0x4] sm:$0xf]
      %v475 = vunpack.c.l.bf16 %v473
      %v476 = vunpack.c.l.bf16 %v474
      %v477 = vadd.f32 %v471, %v475
      %v478 = vadd.f32 %v472, %v476
      %v479 = vpack.c.bf16 %v478, %v477
      %v481 = vunpack.c.l.b16 %v479
      %v482 = vunpack.c.h.b16 %v479
      %v483 = vpack.c.b16 %v481, %v481
      %v484 = vpack.c.b16 %v482, %v482
      %vm487 = vcmask 257024
      %488 = vst.msk [vmem:[%s224] sm:$0xf] %vm487, %v483
      %489 = vst.msk [vmem:[%s224 + $0x4] sm:$0xf] %vm487, %v484
      %p490 = scmp.lt.s32.totalorder %s18, 1
      %s491 = scalar_select %p490, %s18, 1
      %p492 = scmp.lt.s32.totalorder %s19, 0
      %s493 = scalar_select %p492, %s19, 0
      %s494 = smul.addr %s491, 2
      %s495 = sadd.s32 %s493, %s494
      %s496 = smul.addr %s495, 4
      %s497 = scalar_lea.vmem %s3, %s496
      // Predicated region
      $region33: #{encoder_forward.14} parent=31 // pred_check
        %p498 = pneg %p124
      $region34: #{encoder_forward.14} parent=31 // pred_check_branch
        %500 = sbr.rel (%p498) target = $region36
      $region35: #{encoder_forward.14} parent=31 // pred_region
        _
      $region36: #{encoder_forward.14} parent=31 // pred_fallthru
        _
    $region32: #{encoder_forward.14} parent=5 // pred_fallthru
      _
    %p501 = scmp.le.s32.totalorder 2, %s9
    // Predicated region
    $region37: #{encoder_forward.14} parent=5 // pred_check
      %p502 = pneg %p501
    $region38: #{encoder_forward.14} parent=5 // pred_check_branch
      %504 = sbr.rel (%p502) target = $region40
    $region39: #{encoder_forward.14} parent=5 // pred_region
      %s505 = ssub.s32 %s9, 2
      // Predicated region
      $region41: #{encoder_forward.14} parent=39 // pred_check
        %p506 = pneg %p130
      $region42: #{encoder_forward.14} parent=39 // pred_check_branch
        %508 = sbr.rel (%p506) target = $region44
      $region43: #{encoder_forward.14} parent=39 // pred_region
        %p509 = scmp.lt.s32.totalorder %s20, 1
        %s510 = scalar_select %p509, %s20, 1
        %p511 = scmp.lt.s32.totalorder %s21, 0
        %s512 = scalar_select %p511, %s21, 0
        %s513 = smul.addr %s510, 2
        %s514 = sadd.s32 %s512, %s513
        %s515 = smul.addr %s514, 4
        %s516 = scalar_lea.vmem %s3, %s515
      $region44: #{encoder_forward.14} parent=39 // pred_fallthru
        _
    $region40: #{encoder_forward.14} parent=5 // pred_fallthru
      _
  $region6: #{encoder_forward.14} parent=0 // loop_footer
    %s13 = sadd.s32 1, %s9
  $region7: #{encoder_forward.14} parent=0 // loop_footer_branch
    %8 = sbr.rel target = $region3
  $region8: #{encoder_forward.14} parent=0 // loop_exit
    _

// kernel: encoder_forward.17
$region0: #{encoder_forward.17}
  #allocation0 [shape = 'u32[]', space=smem, size = 0x4, offset = 0x4, fixed_abs, tag = 'smem constant byte address 0x4 - core index']
  #allocation1 [shape = 'u32[144,128]{1,0:T(1,128)}', space=vmem, size = 0x12000, scoped, tag = 'internal scratch']
  #allocation2 [shape = 'f32[32,32]{1,0:T(8,128)}', space=vmem, size = 0x4000, scoped, tag = 'scratch operand']
  %s0 = inlined_call_operand.vmem [shape: bf16[32,32], index: 0, kind: input, shape index: {}]
  %s1 = inlined_call_operand.vmem [shape: bf16[32,32], index: 1, kind: input, shape index: {}]
  %s2 = inlined_call_operand.vmem [shape: f32[1,32], index: 2, kind: input, shape index: {}]
  %s3 = inlined_call_operand.vmem [shape: bf16[32,32], index: 3, kind: input, shape index: {}]
  %s4 = inlined_call_operand.vmem [shape: bf16[32,32], index: 4, kind: output, shape index: {}]
  %s5 = sld [smem:[#allocation0]]
  $region34: #{encoder_forward.17} parent=0
    _
  %s7 = ssub.s32 1, %s5
  %s8 = scalar_select 0, %s7, %s5
  // Predicated region
  $region2: #{encoder_forward.17} parent=0 // pred_check
    _
  $region3: #{encoder_forward.17} parent=0 // pred_check_branch
    %10 = sbr.rel (0) target = $region5
  $region4: #{encoder_forward.17} parent=0 // pred_region
    _
  $region5: #{encoder_forward.17} parent=0 // pred_fallthru
    _
  // Predicated region
  $region6: #{encoder_forward.17} parent=0 // pred_check
    _
  $region7: #{encoder_forward.17} parent=0 // pred_check_branch
    %12 = sbr.rel (0) target = $region9
  $region8: #{encoder_forward.17} parent=0 // pred_region
    _
  $region9: #{encoder_forward.17} parent=0 // pred_fallthru
    _
  // Predicated region
  $region10: #{encoder_forward.17} parent=0 // pred_check
    _
  $region11: #{encoder_forward.17} parent=0 // pred_check_branch
    %14 = sbr.rel (0) target = $region13
  $region12: #{encoder_forward.17} parent=0 // pred_region
    _
  $region13: #{encoder_forward.17} parent=0 // pred_fallthru
    _
  // Predicated region
  $region14: #{encoder_forward.17} parent=0 // pred_check
    _
  $region15: #{encoder_forward.17} parent=0 // pred_check_branch
    %16 = sbr.rel (0) target = $region17
  $region16: #{encoder_forward.17} parent=0 // pred_region
    _
  $region17: #{encoder_forward.17} parent=0 // pred_fallthru
    _
  %p18 = scmp.eq.s32.totalorder 0, 0
  // Predicated region
  $region18: #{encoder_forward.17} parent=0 // pred_check
    %p19 = pneg %p18
  $region19: #{encoder_forward.17} parent=0 // pred_check_branch
    %21 = sbr.rel (%p19) target = $region21
  $region20: #{encoder_forward.17} parent=0 // pred_region
    %vm22 = vcmask 261120
    %23 = vst.msk [vmem:[#allocation2] sm:$0xff] %vm22, 0.0
    %24 = vst.msk [vmem:[#allocation2 + $0x8] sm:$0xff] %vm22, 0.0
    %25 = vst.msk [vmem:[#allocation2 + $0x10] sm:$0xff] %vm22, 0.0
    %26 = vst.msk [vmem:[#allocation2 + $0x18] sm:$0xff] %vm22, 0.0
  $region21: #{encoder_forward.17} parent=0 // pred_fallthru
    _
  %v27 = vld [vmem:[#allocation2] sm:$0xff]
  %v28 = vld [vmem:[#allocation2 + $0x8] sm:$0xff]
  %v29 = vld [vmem:[#allocation2 + $0x10] sm:$0xff]
  %v30 = vld [vmem:[#allocation2 + $0x18] sm:$0xff]
  %v31 = vld [vmem:[%s0] sm:$0xf]
  %v32 = vld [vmem:[%s0 + $0x4] sm:$0xf]
  %v33 = vld [vmem:[%s0 + $0x8] sm:$0xf]
  %v34 = vld [vmem:[%s0 + $0xc] sm:$0xf]
  %v35 = vld [vmem:[%s1] sm:$0xf]
  %v36 = vld [vmem:[%s1 + $0x4] sm:$0xf]
  %v37 = vld [vmem:[%s1 + $0x8] sm:$0xf]
  %v38 = vld [vmem:[%s1 + $0xc] sm:$0xf]
  %v43 = vunpack.c.l.b16 %v31
  %v44 = vunpack.c.l.b16 %v32
  %v45 = vunpack.c.l.b16 %v33
  %v46 = vunpack.c.l.b16 %v34
  %v47 = vpack.c.b16 %v44, %v43
  %v48 = vpack.c.b16 %v46, %v45
  %v53 = vunpack.c.l.b16 %v35
  %v54 = vunpack.c.l.b16 %v36
  %v55 = vunpack.c.l.b16 %v37
  %v56 = vunpack.c.l.b16 %v38
  %v57 = vpack.c.b16 %v54, %v53
  %v58 = vpack.c.b16 %v56, %v55
  %vm61 = vcmask 261120
  %v63 = vsel %vm61, %v47, 0
  %v66 = vsel %vm61, %v48, 0
  %68 = vmatprep.subr.bf16.mxu0 0
  %69 = vmatpush1.bf16.msra.mxu0 %v57
  %70 = vmatprep.subr.bf16.mxu0 0
  %71 = vmatpush1.bf16.msra.mxu0 %v58
  %72 = vmatprep.subr.bf16.mxu0 0
  %73 = vmatpush1.bf16.msra.mxu0 0
  %74 = vmatprep.subr.bf16.mxu0 0
  %75 = vmatpush1.bf16.msra.mxu0 0
  %76 = vmatprep.subr.bf16.mxu0 0
  %77 = vmatpush1.bf16.msra.mxu0 0
  %78 = vmatprep.subr.bf16.mxu0 0
  %79 = vmatpush1.bf16.msra.mxu0 0
  %80 = vmatprep.subr.bf16.mxu0 0
  %81 = vmatpush1.bf16.msra.mxu0 0
  %82 = vmatprep.subr.bf16.mxu0 0
  %83 = vmatpush1.bf16.msra.mxu0 0
  %84 = vmatprep.subr.bf16.mxu0 0
  %85 = vmatpush1.bf16.msra.mxu0 0
  %86 = vmatprep.subr.bf16.mxu0 0
  %87 = vmatpush1.bf16.msra.mxu0 0
  %88 = vmatprep.subr.bf16.mxu0 0
  %89 = vmatpush1.bf16.msra.mxu0 0
  %90 = vmatprep.subr.bf16.mxu0 0
  %91 = vmatpush1.bf16.msra.mxu0 0
  %92 = vmatprep.subr.bf16.mxu0 0
  %93 = vmatpush1.bf16.msra.mxu0 0
  %94 = vmatprep.subr.bf16.mxu0 0
  %95 = vmatpush1.bf16.msra.mxu0 0
  %96 = vmatprep.subr.bf16.mxu0 0
  %97 = vmatpush1.bf16.msra.mxu0 0
  %98 = vmatprep.subr.bf16.mxu0 0
  %99 = vmatpush1.bf16.msra.mxu0 0
  %100 = vmatprep.mubr.bf16.mxu0 0
  %101 = vmatmul.mubr.bf16.gmra.mrb[0].mxu0 %v63
  %v102 = vpop.f32.mrb[0].mxu0
  %v103 = vadd.f32 0.0, %v102
  %v104 = vpop.f32.mrb[0].mxu0
  %v105 = vpop.f32.mrb[0].mxu0
  %v106 = vadd.f32 0.0, %v105
  %v107 = vpop.f32.mrb[0].mxu0
  %108 = vmatprep.mubr.bf16.mxu0 0
  %109 = vmatmul.mubr.bf16.gmra.mrb[0].mxu0 %v66
  %v110 = vpop.f32.mrb[0].mxu0
  %v111 = vadd.f32 0.0, %v110
  %v112 = vpop.f32.mrb[0].mxu0
  %v113 = vpop.f32.mrb[0].mxu0
  %v114 = vadd.f32 0.0, %v113
  %v115 = vpop.f32.mrb[0].mxu0
  %116 = vdwg.mxu0
  %v117 = vadd.f32 %v27, %v103
  %v118 = vadd.f32 %v28, %v106
  %v119 = vadd.f32 %v29, %v111
  %v120 = vadd.f32 %v30, %v114
  %121 = vst.msk [vmem:[#allocation2] sm:$0xff] %vm61, %v117
  %122 = vst.msk [vmem:[#allocation2 + $0x8] sm:$0xff] %vm61, %v118
  %123 = vst.msk [vmem:[#allocation2 + $0x10] sm:$0xff] %vm61, %v119
  %124 = vst.msk [vmem:[#allocation2 + $0x18] sm:$0xff] %vm61, %v120
  // Predicated region
  $region22: #{encoder_forward.17} parent=0 // pred_check
    %p125 = pneg %p18
  $region23: #{encoder_forward.17} parent=0 // pred_check_branch
    %127 = sbr.rel (%p125) target = $region25
  $region24: #{encoder_forward.17} parent=0 // pred_region
    %v128 = vld [vmem:[#allocation2] sm:$0xff]
    %v129 = vld [vmem:[#allocation2 + $0x8] sm:$0xff]
    %v130 = vld [vmem:[#allocation2 + $0x10] sm:$0xff]
    %v131 = vld [vmem:[#allocation2 + $0x18] sm:$0xff]
    %v132 = vld [vmem:[%s2] sm:$0x1]
    %v134 = vlaneseq
    %v135 = vshrl.u32 %v134, 7
    %v136 = vsub.s32 0, %v135
    %v137 = vrot.slane %v132, %v136
    %v139 = vadd.f32 %v128, %v137
    %v140 = vadd.f32 %v129, %v137
    %v141 = vadd.f32 %v130, %v137
    %v142 = vadd.f32 %v131, %v137
    %v143 = vld [vmem:[%s3] sm:$0xf]
    %v144 = vld [vmem:[%s3 + $0x4] sm:$0xf]
    %v145 = vld [vmem:[%s3 + $0x8] sm:$0xf]
    %v146 = vld [vmem:[%s3 + $0xc] sm:$0xf]
    %v147 = vunpack.c.l.bf16 %v143
    %v148 = vunpack.c.l.bf16 %v144
    %v149 = vunpack.c.l.bf16 %v145
    %v150 = vunpack.c.l.bf16 %v146
    %v151 = vadd.f32 %v139, %v147
    %v152 = vadd.f32 %v140, %v148
    %v153 = vadd.f32 %v141, %v149
    %v154 = vadd.f32 %v142, %v150
    %v155 = vpack.c.bf16 %v152, %v151
    %v156 = vpack.c.bf16 %v154, %v153
    %v159 = vunpack.c.l.b16 %v155
    %v160 = vunpack.c.h.b16 %v155
    %v161 = vunpack.c.l.b16 %v156
    %v162 = vunpack.c.h.b16 %v156
    %v163 = vpack.c.b16 %v159, %v159
    %v164 = vpack.c.b16 %v160, %v160
    %v165 = vpack.c.b16 %v161, %v161
    %v166 = vpack.c.b16 %v162, %v162
    %vm171 = vcmask 257024
    %172 = vst.msk [vmem:[%s4] sm:$0xf] %vm171, %v163
    %173 = vst.msk [vmem:[%s4 + $0x4] sm:$0xf] %vm171, %v164
    %174 = vst.msk [vmem:[%s4 + $0x8] sm:$0xf] %vm171, %v165
    %175 = vst.msk [vmem:[%s4 + $0xc] sm:$0xf] %vm171, %v166
  $region25: #{encoder_forward.17} parent=0 // pred_fallthru
    _
  // Predicated region
  $region26: #{encoder_forward.17} parent=0 // pred_check
    _
  $region27: #{encoder_forward.17} parent=0 // pred_check_branch
    %177 = sbr.rel (0) target = $region29
  $region28: #{encoder_forward.17} parent=0 // pred_region
    _
  $region29: #{encoder_forward.17} parent=0 // pred_fallthru
    _
  // Predicated region
  $region30: #{encoder_forward.17} parent=0 // pred_check
    _
  $region31: #{encoder_forward.17} parent=0 // pred_check_branch
    %179 = sbr.rel (0) target = $region33
  $region32: #{encoder_forward.17} parent=0 // pred_region
    _
  $region33: #{encoder_forward.17} parent=0 // pred_fallthru
    _

// kernel: encoder_forward.18
$region0: #{encoder_forward.18}
  #allocation0 [shape = 'u32[]', space=smem, size = 0x4, offset = 0x4, fixed_abs, tag = 'smem constant byte address 0x4 - core index']
  #allocation1 [shape = 'u32[144,128]{1,0:T(1,128)}', space=vmem, size = 0x12000, scoped, tag = 'internal scratch']
  #allocation2 [shape = 'bf16[32,32]{1,0:T(16,128)(2,1)}', space=vmem, size = 0x2000, scoped, tag = 'scratch operand']
  %s0 = inlined_call_operand.vmem [shape: bf16[32,32], index: 0, kind: input, shape index: {}]
  %s1 = inlined_call_operand.vmem [shape: f32[1,32], index: 1, kind: input, shape index: {}]
  %s2 = inlined_call_operand.vmem [shape: f32[1,32], index: 2, kind: input, shape index: {}]
  %s3 = inlined_call_operand.vmem [shape: bf16[32,128], index: 3, kind: input, shape index: {}]
  %s4 = inlined_call_operand.vmem [shape: f32[1,128], index: 4, kind: input, shape index: {}]
  %s5 = inlined_call_operand.vmem [shape: bf16[32,128], index: 5, kind: output, shape index: {}]
  %s6 = sld [smem:[#allocation0]]
  $region34: #{encoder_forward.18} parent=0
    _
  %s8 = ssub.s32 1, %s6
  %s9 = scalar_select 0, %s8, %s6
  // Predicated region
  $region2: #{encoder_forward.18} parent=0 // pred_check
    _
  $region3: #{encoder_forward.18} parent=0 // pred_check_branch
    %11 = sbr.rel (0) target = $region5
  $region4: #{encoder_forward.18} parent=0 // pred_region
    _
  $region5: #{encoder_forward.18} parent=0 // pred_fallthru
    _
  // Predicated region
  $region6: #{encoder_forward.18} parent=0 // pred_check
    _
  $region7: #{encoder_forward.18} parent=0 // pred_check_branch
    %13 = sbr.rel (0) target = $region9
  $region8: #{encoder_forward.18} parent=0 // pred_region
    _
  $region9: #{encoder_forward.18} parent=0 // pred_fallthru
    _
  // Predicated region
  $region10: #{encoder_forward.18} parent=0 // pred_check
    _
  $region11: #{encoder_forward.18} parent=0 // pred_check_branch
    %15 = sbr.rel (0) target = $region13
  $region12: #{encoder_forward.18} parent=0 // pred_region
    _
  $region13: #{encoder_forward.18} parent=0 // pred_fallthru
    _
  // Predicated region
  $region14: #{encoder_forward.18} parent=0 // pred_check
    _
  $region15: #{encoder_forward.18} parent=0 // pred_check_branch
    %17 = sbr.rel (0) target = $region17
  $region16: #{encoder_forward.18} parent=0 // pred_region
    _
  $region17: #{encoder_forward.18} parent=0 // pred_fallthru
    _
  // Predicated region
  $region18: #{encoder_forward.18} parent=0 // pred_check
    _
  $region19: #{encoder_forward.18} parent=0 // pred_check_branch
    %19 = sbr.rel (0) target = $region21
  $region20: #{encoder_forward.18} parent=0 // pred_region
    _
  $region21: #{encoder_forward.18} parent=0 // pred_fallthru
    _
  %p21 = scmp.eq.s32.totalorder 0, 0
  // Predicated region
  $region22: #{encoder_forward.18} parent=0 // pred_check
    %p22 = pneg %p21
  $region23: #{encoder_forward.18} parent=0 // pred_check_branch
    %24 = sbr.rel (%p22) target = $region25
  $region24: #{encoder_forward.18} parent=0 // pred_region
    %v25 = vld [vmem:[%s0] sm:$0xf]
    %v26 = vld [vmem:[%s0 + $0x4] sm:$0xf]
    %v27 = vld [vmem:[%s0 + $0x8] sm:$0xf]
    %v28 = vld [vmem:[%s0 + $0xc] sm:$0xf]
    %v29 = vunpack.c.l.bf16 %v25
    %v30 = vunpack.c.l.bf16 %v26
    %v31 = vunpack.c.l.bf16 %v27
    %v32 = vunpack.c.l.bf16 %v28
    %vm33 = vcmask 261120
    %v34 = vsel %vm33, %v29, 0.0
    %35 = vadd.xlane.f32.xlu0 %v34
    %v36 = vpop.xlane.xlu0 %35
    %v37 = vsel %vm33, %v30, 0.0
    %38 = vadd.xlane.f32.xlu0 %v37
    %v39 = vpop.xlane.xlu0 %38
    %v40 = vsel %vm33, %v31, 0.0
    %41 = vadd.xlane.f32.xlu0 %v40
    %v42 = vpop.xlane.xlu0 %41
    %v43 = vsel %vm33, %v32, 0.0
    %44 = vadd.xlane.f32.xlu0 %v43
    %v45 = vpop.xlane.xlu0 %44
    %v46 = vrcp.pop 32.0
    %v47 = vmul.f32 %v36, %v46
    %v48 = vmul.f32 %v39, %v46
    %v49 = vmul.f32 %v42, %v46
    %v50 = vmul.f32 %v45, %v46
    %v51 = vsub.f32 %v29, %v47
    %v52 = vsub.f32 %v30, %v48
    %v53 = vsub.f32 %v31, %v49
    %v54 = vsub.f32 %v32, %v50
    %v55 = vmul.f32 %v51, %v51
    %v56 = vmul.f32 %v52, %v52
    %v57 = vmul.f32 %v53, %v53
    %v58 = vmul.f32 %v54, %v54
    %v59 = vsel %vm33, %v55, 0.0
    %60 = vadd.xlane.f32.xlu0 %v59
    %v61 = vpop.xlane.xlu0 %60
    %v62 = vsel %vm33, %v56, 0.0
    %63 = vadd.xlane.f32.xlu0 %v62
    %v64 = vpop.xlane.xlu0 %63
    %v65 = vsel %vm33, %v57, 0.0
    %66 = vadd.xlane.f32.xlu0 %v65
    %v67 = vpop.xlane.xlu0 %66
    %v68 = vsel %vm33, %v58, 0.0
    %69 = vadd.xlane.f32.xlu0 %v68
    %v70 = vpop.xlane.xlu0 %69
    %v71 = vmul.f32 %v61, %v46
    %v72 = vmul.f32 %v64, %v46
    %v73 = vmul.f32 %v67, %v46
    %v74 = vmul.f32 %v70, %v46
    %v75 = vadd.f32 %v71, 1e-05
    %v76 = vadd.f32 %v72, 1e-05
    %v77 = vadd.f32 %v73, 1e-05
    %v78 = vadd.f32 %v74, 1e-05
    %v79 = vrsqrt.pop %v75
    %v80 = vrsqrt.pop %v76
    %v81 = vrsqrt.pop %v77
    %v82 = vrsqrt.pop %v78
    %v83 = vmul.f32 %v51, %v79
    %v84 = vmul.f32 %v52, %v80
    %v85 = vmul.f32 %v53, %v81
    %v86 = vmul.f32 %v54, %v82
    %v87 = vld [vmem:[%s1] sm:$0x1]
    %v89 = vlaneseq
    %v90 = vshrl.u32 %v89, 7
    %v91 = vsub.s32 0, %v90
    %v92 = vrot.slane %v87, %v91
    %v94 = vmul.f32 %v83, %v92
    %v95 = vmul.f32 %v84, %v92
    %v96 = vmul.f32 %v85, %v92
    %v97 = vmul.f32 %v86, %v92
    %v98 = vld [vmem:[%s2] sm:$0x1]
    %v100 = vlaneseq
    %v101 = vshrl.u32 %v100, 7
    %v102 = vsub.s32 0, %v101
    %v103 = vrot.slane %v98, %v102
    %v105 = vadd.f32 %v94, %v103
    %v106 = vadd.f32 %v95, %v103
    %v107 = vadd.f32 %v96, %v103
    %v108 = vadd.f32 %v97, %v103
    %v109 = vpack.c.bf16 %v106, %v105
    %v110 = vpack.c.bf16 %v108, %v107
    %111 = vst.msk [vmem:[#allocation2] sm:$0xff] %vm33, %v109
    %112 = vst.msk [vmem:[#allocation2 + $0x8] sm:$0xff] %vm33, %v110
  $region25: #{encoder_forward.18} parent=0 // pred_fallthru
    _
  %v113 = vld [vmem:[#allocation2] sm:$0xff]
  %v114 = vld [vmem:[#allocation2 + $0x8] sm:$0xff]
  %v115 = vld [vmem:[%s3] sm:$0xf]
  %v116 = vld [vmem:[%s3 + $0x4] sm:$0xf]
  %v117 = vld [vmem:[%s3 + $0x8] sm:$0xf]
  %v118 = vld [vmem:[%s3 + $0xc] sm:$0xf]
  %v119 = vld [vmem:[%s4] sm:$0x1]
  %v121 = vlaneseq
  %v122 = vshrl.u32 %v121, 7
  %v123 = vsub.s32 0, %v122
  %v124 = vrot.slane %v119, %v123
  %v130 = vunpack.c.l.b16 %v115
  %v131 = vunpack.c.l.b16 %v116
  %v132 = vunpack.c.l.b16 %v117
  %v133 = vunpack.c.l.b16 %v118
  %v134 = vpack.c.b16 %v131, %v130
  %v135 = vpack.c.b16 %v133, %v132
  %vm138 = vcmask 261120
  %v140 = vsel %vm138, %v113, 0
  %v143 = vsel %vm138, %v114, 0
  %145 = vmatprep.subr.bf16.mxu0 0
  %146 = vmatpush1.bf16.msra.mxu0 %v134
  %147 = vmatprep.subr.bf16.mxu0 0
  %148 = vmatpush1.bf16.msra.mxu0 %v135
  %149 = vmatprep.subr.bf16.mxu0 0
  %150 = vmatpush1.bf16.msra.mxu0 0
  %151 = vmatprep.subr.bf16.mxu0 0
  %152 = vmatpush1.bf16.msra.mxu0 0
  %153 = vmatprep.subr.bf16.mxu0 0
  %154 = vmatpush1.bf16.msra.mxu0 0
  %155 = vmatprep.subr.bf16.mxu0 0
  %156 = vmatpush1.bf16.msra.mxu0 0
  %157 = vmatprep.subr.bf16.mxu0 0
  %158 = vmatpush1.bf16.msra.mxu0 0
  %159 = vmatprep.subr.bf16.mxu0 0
  %160 = vmatpush1.bf16.msra.mxu0 0
  %161 = vmatprep.subr.bf16.mxu0 0
  %162 = vmatpush1.bf16.msra.mxu0 0
  %163 = vmatprep.subr.bf16.mxu0 0
  %164 = vmatpush1.bf16.msra.mxu0 0
  %165 = vmatprep.subr.bf16.mxu0 0
  %166 = vmatpush1.bf16.msra.mxu0 0
  %167 = vmatprep.subr.bf16.mxu0 0
  %168 = vmatpush1.bf16.msra.mxu0 0
  %169 = vmatprep.subr.bf16.mxu0 0
  %170 = vmatpush1.bf16.msra.mxu0 0
  %171 = vmatprep.subr.bf16.mxu0 0
  %172 = vmatpush1.bf16.msra.mxu0 0
  %173 = vmatprep.subr.bf16.mxu0 0
  %174 = vmatpush1.bf16.msra.mxu0 0
  %175 = vmatprep.subr.bf16.mxu0 0
  %176 = vmatpush1.bf16.msra.mxu0 0
  %177 = vmatprep.mubr.bf16.mxu0 0
  %178 = vmatmul.mubr.bf16.gmra.mrb[0].mxu0 %v140
  %v179 = vpop.f32.mrb[0].mxu0
  %v180 = vadd.f32 %v124, %v179
  %v181 = vpop.f32.mrb[0].mxu0
  %v182 = vpop.f32.mrb[0].mxu0
  %v183 = vadd.f32 %v124, %v182
  %v184 = vpop.f32.mrb[0].mxu0
  %185 = vmatprep.mubr.bf16.mxu0 0
  %186 = vmatmul.mubr.bf16.gmra.mrb[0].mxu0 %v143
  %v187 = vpop.f32.mrb[0].mxu0
  %v188 = vadd.f32 %v124, %v187
  %v189 = vpop.f32.mrb[0].mxu0
  %v190 = vpop.f32.mrb[0].mxu0
  %v191 = vadd.f32 %v124, %v190
  %v192 = vpop.f32.mrb[0].mxu0
  %193 = vdwg.mxu0
  %v194 = vmul.f32 %v180, 0.5
  %v195 = vmul.f32 %v183, 0.5
  %v196 = vmul.f32 %v188, 0.5
  %v197 = vmul.f32 %v191, 0.5
  %v198 = vmul.f32 %v180, 0.70710677
  %v199 = vmul.f32 %v183, 0.70710677
  %v200 = vmul.f32 %v188, 0.70710677
  %v201 = vmul.f32 %v191, 0.70710677
  %v202 = verf.f32.pop %v198
  %v203 = verf.f32.pop %v199
  %v204 = verf.f32.pop %v200
  %v205 = verf.f32.pop %v201
  %v206 = vadd.f32 %v202, 1.0
  %v207 = vadd.f32 %v203, 1.0
  %v208 = vadd.f32 %v204, 1.0
  %v209 = vadd.f32 %v205, 1.0
  %v210 = vmul.f32 %v194, %v206
  %v211 = vmul.f32 %v195, %v207
  %v212 = vmul.f32 %v196, %v208
  %v213 = vmul.f32 %v197, %v209
  %v214 = vpack.c.bf16 %v211, %v210
  %v215 = vpack.c.bf16 %v213, %v212
  %v218 = vunpack.c.l.b16 %v214
  %v219 = vunpack.c.h.b16 %v214
  %v220 = vunpack.c.l.b16 %v215
  %v221 = vunpack.c.h.b16 %v215
  %v222 = vpack.c.b16 %v218, %v218
  %v223 = vpack.c.b16 %v219, %v219
  %v224 = vpack.c.b16 %v220, %v220
  %v225 = vpack.c.b16 %v221, %v221
  %230 = vst [vmem:[%s5] sm:$0xf] %v222
  %231 = vst [vmem:[%s5 + $0x4] sm:$0xf] %v223
  %232 = vst [vmem:[%s5 + $0x8] sm:$0xf] %v224
  %233 = vst [vmem:[%s5 + $0xc] sm:$0xf] %v225
  // Predicated region
  $region26: #{encoder_forward.18} parent=0 // pred_check
    _
  $region27: #{encoder_forward.18} parent=0 // pred_check_branch
    %235 = sbr.rel (0) target = $region29
  $region28: #{encoder_forward.18} parent=0 // pred_region
    _
  $region29: #{encoder_forward.18} parent=0 // pred_fallthru
    _
  // Predicated region
  $region30: #{encoder_forward.18} parent=0 // pred_check
    _
  $region31: #{encoder_forward.18} parent=0 // pred_check_branch
    %237 = sbr.rel (0) target = $region33
  $region32: #{encoder_forward.18} parent=0 // pred_region
    _
  $region33: #{encoder_forward.18} parent=0 // pred_fallthru
    _

// kernel: encoder_forward.25
$region0: #{encoder_forward.25}
  #allocation0 [shape = 'u32[]', space=smem, size = 0x4, offset = 0x4, fixed_abs, tag = 'smem constant byte address 0x4 - core index']
  #allocation1 [shape = 'u32[144,128]{1,0:T(1,128)}', space=vmem, size = 0x12000, scoped, tag = 'internal scratch']
  %s0 = inlined_call_operand.vmem [shape: bf16[32,32], index: 0, kind: input, shape index: {}]
  %s1 = inlined_call_operand.vmem [shape: f32[1,32], index: 1, kind: input, shape index: {}]
  %s2 = inlined_call_operand.vmem [shape: f32[1,32], index: 2, kind: input, shape index: {}]
  %s3 = inlined_call_operand.hbm [shape: f32[32,32], index: 3, kind: output, shape index: {}]
  %s4 = sld [smem:[#allocation0]]
  $region22: #{encoder_forward.25} parent=0
    _
  %s6 = ssub.s32 1, %s4
  %s7 = scalar_select 0, %s6, %s4
  $region1: #{encoder_forward.25} parent=0
    #allocation2 [shape = 'u8[16384]{0}', space=vmem, size = 0x4000, scoped, tag = 'output window, operand 0, single buffered']
    #allocation3 [shape = 's32[1]{0}', space=sflag, size = 0x4, scoped, tag = 'scoped memory for encoder_forward.25']
    %8 = vsyncpa [#allocation3], 0
    // Predicated region
    $region2: #{encoder_forward.25} parent=1 // pred_check
      _
    $region3: #{encoder_forward.25} parent=1 // pred_check_branch
      %10 = sbr.rel (0) target = $region5
    $region4: #{encoder_forward.25} parent=1 // pred_region
      _
    $region5: #{encoder_forward.25} parent=1 // pred_fallthru
      _
    // Predicated region
    $region6: #{encoder_forward.25} parent=1 // pred_check
      _
    $region7: #{encoder_forward.25} parent=1 // pred_check_branch
      %12 = sbr.rel (0) target = $region9
    $region8: #{encoder_forward.25} parent=1 // pred_region
      _
    $region9: #{encoder_forward.25} parent=1 // pred_fallthru
      _
    // Predicated region
    $region10: #{encoder_forward.25} parent=1 // pred_check
      _
    $region11: #{encoder_forward.25} parent=1 // pred_check_branch
      %14 = sbr.rel (0) target = $region13
    $region12: #{encoder_forward.25} parent=1 // pred_region
      _
    $region13: #{encoder_forward.25} parent=1 // pred_fallthru
      _
    %v15 = vld [vmem:[%s0] sm:$0xf]
    %v16 = vld [vmem:[%s0 + $0x4] sm:$0xf]
    %v17 = vld [vmem:[%s0 + $0x8] sm:$0xf]
    %v18 = vld [vmem:[%s0 + $0xc] sm:$0xf]
    %v19 = vunpack.c.l.bf16 %v15
    %v20 = vunpack.c.l.bf16 %v16
    %v21 = vunpack.c.l.bf16 %v17
    %v22 = vunpack.c.l.bf16 %v18
    %vm23 = vcmask 261120
    %v24 = vsel %vm23, %v19, 0.0
    %25 = vadd.xlane.f32.xlu0 %v24
    %v26 = vpop.xlane.xlu0 %25
    %v27 = vsel %vm23, %v20, 0.0
    %28 = vadd.xlane.f32.xlu0 %v27
    %v29 = vpop.xlane.xlu0 %28
    %v30 = vsel %vm23, %v21, 0.0
    %31 = vadd.xlane.f32.xlu0 %v30
    %v32 = vpop.xlane.xlu0 %31
    %v33 = vsel %vm23, %v22, 0.0
    %34 = vadd.xlane.f32.xlu0 %v33
    %v35 = vpop.xlane.xlu0 %34
    %v36 = vrcp.pop 32.0
    %v37 = vmul.f32 %v26, %v36
    %v38 = vmul.f32 %v29, %v36
    %v39 = vmul.f32 %v32, %v36
    %v40 = vmul.f32 %v35, %v36
    %v41 = vsub.f32 %v19, %v37
    %v42 = vsub.f32 %v20, %v38
    %v43 = vsub.f32 %v21, %v39
    %v44 = vsub.f32 %v22, %v40
    %v45 = vmul.f32 %v41, %v41
    %v46 = vmul.f32 %v42, %v42
    %v47 = vmul.f32 %v43, %v43
    %v48 = vmul.f32 %v44, %v44
    %v49 = vsel %vm23, %v45, 0.0
    %50 = vadd.xlane.f32.xlu0 %v49
    %v51 = vpop.xlane.xlu0 %50
    %v52 = vsel %vm23, %v46, 0.0
    %53 = vadd.xlane.f32.xlu0 %v52
    %v54 = vpop.xlane.xlu0 %53
    %v55 = vsel %vm23, %v47, 0.0
    %56 = vadd.xlane.f32.xlu0 %v55
    %v57 = vpop.xlane.xlu0 %56
    %v58 = vsel %vm23, %v48, 0.0
    %59 = vadd.xlane.f32.xlu0 %v58
    %v60 = vpop.xlane.xlu0 %59
    %v61 = vmul.f32 %v51, %v36
    %v62 = vmul.f32 %v54, %v36
    %v63 = vmul.f32 %v57, %v36
    %v64 = vmul.f32 %v60, %v36
    %v65 = vadd.f32 %v61, 1e-05
    %v66 = vadd.f32 %v62, 1e-05
    %v67 = vadd.f32 %v63, 1e-05
    %v68 = vadd.f32 %v64, 1e-05
    %v69 = vrsqrt.pop %v65
    %v70 = vrsqrt.pop %v66
    %v71 = vrsqrt.pop %v67
    %v72 = vrsqrt.pop %v68
    %v73 = vmul.f32 %v41, %v69
    %v74 = vmul.f32 %v42, %v70
    %v75 = vmul.f32 %v43, %v71
    %v76 = vmul.f32 %v44, %v72
    %v77 = vld [vmem:[%s1] sm:$0x1]
    %v79 = vlaneseq
    %v80 = vshrl.u32 %v79, 7
    %v81 = vsub.s32 0, %v80
    %v82 = vrot.slane %v77, %v81
    %v84 = vmul.f32 %v73, %v82
    %v85 = vmul.f32 %v74, %v82
    %v86 = vmul.f32 %v75, %v82
    %v87 = vmul.f32 %v76, %v82
    %v88 = vld [vmem:[%s2] sm:$0x1]
    %v90 = vlaneseq
    %v91 = vshrl.u32 %v90, 7
    %v92 = vsub.s32 0, %v91
    %v93 = vrot.slane %v88, %v92
    %v95 = vadd.f32 %v84, %v93
    %v96 = vadd.f32 %v85, %v93
    %v97 = vadd.f32 %v86, %v93
    %v98 = vadd.f32 %v87, %v93
    %99 = vst.msk [vmem:[#allocation2] sm:$0xff] %vm23, %v95
    %100 = vst.msk [vmem:[#allocation2 + $0x8] sm:$0xff] %vm23, %v96
    %101 = vst.msk [vmem:[#allocation2 + $0x10] sm:$0xff] %vm23, %v97
    %102 = vst.msk [vmem:[#allocation2 + $0x18] sm:$0xff] %vm23, %v98
    // Predicated region
    $region14: #{encoder_forward.25} parent=1 // pred_check
      _
    $region15: #{encoder_forward.25} parent=1 // pred_check_branch
      %104 = sbr.rel (0) target = $region17
    $region16: #{encoder_forward.25} parent=1 // pred_region
      %s106 = ssub.s32 512, 512
      %107 = vsyncadd [#allocation3], %s106
      %s108 = sshll.u32 [#allocation2], 4
      %s109 = int_to_ptr.vmem [resolvable:$true] %s108
      %114 = dma.vmem_to_hbm [thread:$0]  %s109, 512, %s3, [#allocation3], 128, 128, 8
    $region17: #{encoder_forward.25} parent=1 // pred_fallthru
      _
    // Predicated region
    $region18: #{encoder_forward.25} parent=1 // pred_check
      _
    $region19: #{encoder_forward.25} parent=1 // pred_check_branch
      %116 = sbr.rel (0) target = $region21
    $region20: #{encoder_forward.25} parent=1 // pred_region
      %117 = dma.done [#allocation3], 512
    $region21: #{encoder_forward.25} parent=1 // pred_fallthru
      _
    %118 = vsyncpa [#allocation3], 1

// kernel: encoder_forward.19
$region0: #{encoder_forward.19}
  #allocation0 [shape = 'u32[]', space=smem, size = 0x4, offset = 0x4, fixed_abs, tag = 'smem constant byte address 0x4 - core index']
  #allocation1 [shape = 'u32[144,128]{1,0:T(1,128)}', space=vmem, size = 0x12000, scoped, tag = 'internal scratch']
  #allocation2 [shape = 'f32[32,32]{1,0:T(8,128)}', space=vmem, size = 0x4000, scoped, tag = 'scratch operand']
  %s0 = inlined_call_operand.vmem [shape: bf16[32,128], index: 0, kind: input, shape index: {}]
  %s1 = inlined_call_operand.vmem [shape: bf16[128,32], index: 1, kind: input, shape index: {}]
  %s2 = inlined_call_operand.vmem [shape: f32[1,32], index: 2, kind: input, shape index: {}]
  %s3 = inlined_call_operand.vmem [shape: bf16[32,32], index: 3, kind: input, shape index: {}]
  %s4 = inlined_call_operand.vmem [shape: bf16[32,32], index: 4, kind: output, shape index: {}]
  %s5 = sld [smem:[#allocation0]]
  $region34: #{encoder_forward.19} parent=0
    _
  %s7 = ssub.s32 1, %s5
  %s8 = scalar_select 0, %s7, %s5
  // Predicated region
  $region2: #{encoder_forward.19} parent=0 // pred_check
    _
  $region3: #{encoder_forward.19} parent=0 // pred_check_branch
    %10 = sbr.rel (0) target = $region5
  $region4: #{encoder_forward.19} parent=0 // pred_region
    _
  $region5: #{encoder_forward.19} parent=0 // pred_fallthru
    _
  // Predicated region
  $region6: #{encoder_forward.19} parent=0 // pred_check
    _
  $region7: #{encoder_forward.19} parent=0 // pred_check_branch
    %12 = sbr.rel (0) target = $region9
  $region8: #{encoder_forward.19} parent=0 // pred_region
    _
  $region9: #{encoder_forward.19} parent=0 // pred_fallthru
    _
  // Predicated region
  $region10: #{encoder_forward.19} parent=0 // pred_check
    _
  $region11: #{encoder_forward.19} parent=0 // pred_check_branch
    %14 = sbr.rel (0) target = $region13
  $region12: #{encoder_forward.19} parent=0 // pred_region
    _
  $region13: #{encoder_forward.19} parent=0 // pred_fallthru
    _
  // Predicated region
  $region14: #{encoder_forward.19} parent=0 // pred_check
    _
  $region15: #{encoder_forward.19} parent=0 // pred_check_branch
    %16 = sbr.rel (0) target = $region17
  $region16: #{encoder_forward.19} parent=0 // pred_region
    _
  $region17: #{encoder_forward.19} parent=0 // pred_fallthru
    _
  %p18 = scmp.eq.s32.totalorder 0, 0
  // Predicated region
  $region18: #{encoder_forward.19} parent=0 // pred_check
    %p19 = pneg %p18
  $region19: #{encoder_forward.19} parent=0 // pred_check_branch
    %21 = sbr.rel (%p19) target = $region21
  $region20: #{encoder_forward.19} parent=0 // pred_region
    %vm22 = vcmask 261120
    %23 = vst.msk [vmem:[#allocation2] sm:$0xff] %vm22, 0.0
    %24 = vst.msk [vmem:[#allocation2 + $0x8] sm:$0xff] %vm22, 0.0
    %25 = vst.msk [vmem:[#allocation2 + $0x10] sm:$0xff] %vm22, 0.0
    %26 = vst.msk [vmem:[#allocation2 + $0x18] sm:$0xff] %vm22, 0.0
  $region21: #{encoder_forward.19} parent=0 // pred_fallthru
    _
  %v27 = vld [vmem:[#allocation2] sm:$0xff]
  %v28 = vld [vmem:[#allocation2 + $0x8] sm:$0xff]
  %v29 = vld [vmem:[#allocation2 + $0x10] sm:$0xff]
  %v30 = vld [vmem:[#allocation2 + $0x18] sm:$0xff]
  %v31 = vld [vmem:[%s0] sm:$0xf]
  %v32 = vld [vmem:[%s0 + $0x4] sm:$0xf]
  %v33 = vld [vmem:[%s0 + $0x8] sm:$0xf]
  %v34 = vld [vmem:[%s0 + $0xc] sm:$0xf]
  %v35 = vld [vmem:[%s1] sm:$0xf]
  %v36 = vld [vmem:[%s1 + $0x4] sm:$0xf]
  %v37 = vld [vmem:[%s1 + $0x8] sm:$0xf]
  %v38 = vld [vmem:[%s1 + $0xc] sm:$0xf]
  %v39 = vld [vmem:[%s1 + $0x10] sm:$0xf]
  %v40 = vld [vmem:[%s1 + $0x14] sm:$0xf]
  %v41 = vld [vmem:[%s1 + $0x18] sm:$0xf]
  %v42 = vld [vmem:[%s1 + $0x1c] sm:$0xf]
  %v43 = vld [vmem:[%s1 + $0x20] sm:$0xf]
  %v44 = vld [vmem:[%s1 + $0x24] sm:$0xf]
  %v45 = vld [vmem:[%s1 + $0x28] sm:$0xf]
  %v46 = vld [vmem:[%s1 + $0x2c] sm:$0xf]
  %v47 = vld [vmem:[%s1 + $0x30] sm:$0xf]
  %v48 = vld [vmem:[%s1 + $0x34] sm:$0xf]
  %v49 = vld [vmem:[%s1 + $0x38] sm:$0xf]
  %v50 = vld [vmem:[%s1 + $0x3c] sm:$0xf]
  %v55 = vunpack.c.l.b16 %v31
  %v56 = vunpack.c.l.b16 %v32
  %v57 = vunpack.c.l.b16 %v33
  %v58 = vunpack.c.l.b16 %v34
  %v59 = vpack.c.b16 %v56, %v55
  %v60 = vpack.c.b16 %v58, %v57
  %v79 = vunpack.c.l.b16 %v35
  %v80 = vunpack.c.l.b16 %v36
  %v81 = vunpack.c.l.b16 %v37
  %v82 = vunpack.c.l.b16 %v38
  %v83 = vunpack.c.l.b16 %v39
  %v84 = vunpack.c.l.b16 %v40
  %v85 = vunpack.c.l.b16 %v41
  %v86 = vunpack.c.l.b16 %v42
  %v87 = vunpack.c.l.b16 %v43
  %v88 = vunpack.c.l.b16 %v44
  %v89 = vunpack.c.l.b16 %v45
  %v90 = vunpack.c.l.b16 %v46
  %v91 = vunpack.c.l.b16 %v47
  %v92 = vunpack.c.l.b16 %v48
  %v93 = vunpack.c.l.b16 %v49
  %v94 = vunpack.c.l.b16 %v50
  %v95 = vpack.c.b16 %v80, %v79
  %v96 = vpack.c.b16 %v82, %v81
  %v97 = vpack.c.b16 %v84, %v83
  %v98 = vpack.c.b16 %v86, %v85
  %v99 = vpack.c.b16 %v88, %v87
  %v100 = vpack.c.b16 %v90, %v89
  %v101 = vpack.c.b16 %v92, %v91
  %v102 = vpack.c.b16 %v94, %v93
  %111 = vmatprep.subr.bf16.mxu0 0
  %112 = vmatpush1.bf16.msra.mxu0 %v95
  %113 = vmatprep.subr.bf16.mxu0 0
  %114 = vmatpush1.bf16.msra.mxu0 %v96
  %115 = vmatprep.subr.bf16.mxu0 0
  %116 = vmatpush1.bf16.msra.mxu0 %v97
  %117 = vmatprep.subr.bf16.mxu0 0
  %118 = vmatpush1.bf16.msra.mxu0 %v98
  %119 = vmatprep.subr.bf16.mxu0 0
  %120 = vmatpush1.bf16.msra.mxu0 %v99
  %121 = vmatprep.subr.bf16.mxu0 0
  %122 = vmatpush1.bf16.msra.mxu0 %v100
  %123 = vmatprep.subr.bf16.mxu0 0
  %124 = vmatpush1.bf16.msra.mxu0 %v101
  %125 = vmatprep.subr.bf16.mxu0 0
  %126 = vmatpush1.bf16.msra.mxu0 %v102
  %127 = vmatprep.subr.bf16.mxu0 0
  %128 = vmatpush1.bf16.msra.mxu0 0
  %129 = vmatprep.subr.bf16.mxu0 0
  %130 = vmatpush1.bf16.msra.mxu0 0
  %131 = vmatprep.subr.bf16.mxu0 0
  %132 = vmatpush1.bf16.msra.mxu0 0
  %133 = vmatprep.subr.bf16.mxu0 0
  %134 = vmatpush1.bf16.msra.mxu0 0
  %135 = vmatprep.subr.bf16.mxu0 0
  %136 = vmatpush1.bf16.msra.mxu0 0
  %137 = vmatprep.subr.bf16.mxu0 0
  %138 = vmatpush1.bf16.msra.mxu0 0
  %139 = vmatprep.subr.bf16.mxu0 0
  %140 = vmatpush1.bf16.msra.mxu0 0
  %141 = vmatprep.subr.bf16.mxu0 0
  %142 = vmatpush1.bf16.msra.mxu0 0
  %143 = vmatprep.mubr.bf16.mxu0 0
  %144 = vmatmul.mubr.bf16.gmra.mrb[0].mxu0 %v59
  %v145 = vpop.f32.mrb[0].mxu0
  %v146 = vadd.f32 0.0, %v145
  %v147 = vpop.f32.mrb[0].mxu0
  %v148 = vpop.f32.mrb[0].mxu0
  %v149 = vadd.f32 0.0, %v148
  %v150 = vpop.f32.mrb[0].mxu0
  %151 = vmatprep.mubr.bf16.mxu0 0
  %152 = vmatmul.mubr.bf16.gmra.mrb[0].mxu0 %v60
  %v153 = vpop.f32.mrb[0].mxu0
  %v154 = vadd.f32 0.0, %v153
  %v155 = vpop.f32.mrb[0].mxu0
  %v156 = vpop.f32.mrb[0].mxu0
  %v157 = vadd.f32 0.0, %v156
  %v158 = vpop.f32.mrb[0].mxu0
  %159 = vdwg.mxu0
  %v160 = vadd.f32 %v27, %v146
  %v161 = vadd.f32 %v28, %v149
  %v162 = vadd.f32 %v29, %v154
  %v163 = vadd.f32 %v30, %v157
  %vm164 = vcmask 261120
  %165 = vst.msk [vmem:[#allocation2] sm:$0xff] %vm164, %v160
  %166 = vst.msk [vmem:[#allocation2 + $0x8] sm:$0xff] %vm164, %v161
  %167 = vst.msk [vmem:[#allocation2 + $0x10] sm:$0xff] %vm164, %v162
  %168 = vst.msk [vmem:[#allocation2 + $0x18] sm:$0xff] %vm164, %v163
  // Predicated region
  $region22: #{encoder_forward.19} parent=0 // pred_check
    %p169 = pneg %p18
  $region23: #{encoder_forward.19} parent=0 // pred_check_branch
    %171 = sbr.rel (%p169) target = $region25
  $region24: #{encoder_forward.19} parent=0 // pred_region
    %v172 = vld [vmem:[#allocation2] sm:$0xff]
    %v173 = vld [vmem:[#allocation2 + $0x8] sm:$0xff]
    %v174 = vld [vmem:[#allocation2 + $0x10] sm:$0xff]
    %v175 = vld [vmem:[#allocation2 + $0x18] sm:$0xff]
    %v176 = vld [vmem:[%s2] sm:$0x1]
    %v178 = vlaneseq
    %v179 = vshrl.u32 %v178, 7
    %v180 = vsub.s32 0, %v179
    %v181 = vrot.slane %v176, %v180
    %v183 = vadd.f32 %v172, %v181
    %v184 = vadd.f32 %v173, %v181
    %v185 = vadd.f32 %v174, %v181
    %v186 = vadd.f32 %v175, %v181
    %v187 = vld [vmem:[%s3] sm:$0xf]
    %v188 = vld [vmem:[%s3 + $0x4] sm:$0xf]
    %v189 = vld [vmem:[%s3 + $0x8] sm:$0xf]
    %v190 = vld [vmem:[%s3 + $0xc] sm:$0xf]
    %v191 = vunpack.c.l.bf16 %v187
    %v192 = vunpack.c.l.bf16 %v188
    %v193 = vunpack.c.l.bf16 %v189
    %v194 = vunpack.c.l.bf16 %v190
    %v195 = vadd.f32 %v183, %v191
    %v196 = vadd.f32 %v184, %v192
    %v197 = vadd.f32 %v185, %v193
    %v198 = vadd.f32 %v186, %v194
    %v199 = vpack.c.bf16 %v196, %v195
    %v200 = vpack.c.bf16 %v198, %v197
    %v203 = vunpack.c.l.b16 %v199
    %v204 = vunpack.c.h.b16 %v199
    %v205 = vunpack.c.l.b16 %v200
    %v206 = vunpack.c.h.b16 %v200
    %v207 = vpack.c.b16 %v203, %v203
    %v208 = vpack.c.b16 %v204, %v204
    %v209 = vpack.c.b16 %v205, %v205
    %v210 = vpack.c.b16 %v206, %v206
    %vm215 = vcmask 257024
    %216 = vst.msk [vmem:[%s4] sm:$0xf] %vm215, %v207
    %217 = vst.msk [vmem:[%s4 + $0x4] sm:$0xf] %vm215, %v208
    %218 = vst.msk [vmem:[%s4 + $0x8] sm:$0xf] %vm215, %v209
    %219 = vst.msk [vmem:[%s4 + $0xc] sm:$0xf] %vm215, %v210
  $region25: #{encoder_forward.19} parent=0 // pred_fallthru
    _
  // Predicated region
  $region26: #{encoder_forward.19} parent=0 // pred_check
    _
  $region27: #{encoder_forward.19} parent=0 // pred_check_branch
    %221 = sbr.rel (0) target = $region29
  $region28: #{encoder_forward.19} parent=0 // pred_region
    _
  $region29: #{encoder_forward.19} parent=0 // pred_fallthru
    _
  // Predicated region
  $region30: #{encoder_forward.19} parent=0 // pred_check
    _
  $region31: #{encoder_forward.19} parent=0 // pred_check_branch
    %223 = sbr.rel (0) target = $region33
  $region32: #{encoder_forward.19} parent=0 // pred_region
    _
  $region33: #{encoder_forward.19} parent=0 // pred_fallthru
    _

</llo_original>
